<compile_context>
chip_gen: v7x
topology: tpu7x:2x2x1
jax: 0.10.0
libtpu: 0.0.40
codegen_flags: <defaults>
</compile_context>

<pallas_src>
import functools

import jax
import jax.numpy as jnp
from jax import lax
from jax.experimental import pallas as pl
from jax.experimental.pallas import tpu as pltpu


def _pred_layer_kernel(x_ref, w1_ref, b1_ref, w2_ref, b2_ref, y_ref, x1_ref,
                       *, tile_h, W, Cin, Cout):
    """One (batch, row-tile) grid step.

    x_ref : (1, 1, tile_h+2, W, 3*Cin) bf16  halo'd, kw-interleaved input rows
    w1_ref: (3, 3*Cin, Cout)           bf16  folded 3x3 weight, [kh, kw*Cin+c, o]
    b1_ref: (1, Cout)                  f32   folded conv+BN bias
    w2_ref: (1, Cout)                  f32   1x1 conv weight (row)
    b2_ref: (1, 1)                     f32   1x1 conv bias (SMEM scalar)
    y_ref : (1, 1, tile_h*W, Cout)           enlayer output tile (lane-dense)
    x1_ref: (1, 1, tile_h*W, 1)        f32   outlayer output tile
    """
    K3 = 3 * Cin
    rows = tile_h * W

    # 3x3 conv = 3 accumulating MXU dots with K = 3*Cin.  Each LHS is a
    # contiguous row slice of the tile, so the reshape is a free view
    # (W is a multiple of 8) and nothing is materialized in VMEM.
    acc = None
    for kh in range(3):
        lhs = x_ref[0, 0, kh:kh + tile_h].reshape(rows, K3)          # bf16
        d = jnp.dot(lhs, w1_ref[kh], preferred_element_type=jnp.float32)
        acc = d if acc is None else acc + d                          # f32 acc

    # Folded BN bias + ReLU, stored lane-dense (Cout = 2*128 lanes).
    y = jnp.maximum(acc + b1_ref[...], 0.0)                          # (rows, Cout)
    y_ref[0, 0] = y.astype(y_ref.dtype)

    # outlayer: 1x1 conv to a single channel == per-pixel dot over channels.
    # Re-read y_ref (VMEM) so `y`/`acc` do not stay live across the reduce;
    # VPU multiply + XLU lane reduction (no degenerate N=1 MXU matmul).
    yv = y_ref[0, 0].astype(jnp.float32)
    x1 = jnp.sum(yv * w2_ref[...], axis=-1, keepdims=True) + b2_ref[0, 0]
    x1_ref[0, 0] = x1.astype(x1_ref.dtype)


def _pick_tile_h(H, W, Cin, Cout, y_itemsize, budget_bytes=6 * 1024 * 1024,
                 min_spatial_tiles=2):
    """Largest row-tile (dividing H) whose double-buffered working set fits the
    budget.  Budget keeps 2x(input halo tile) + 2x(output tiles) + weights well
    under v7x's 64 MiB/TC; v5e/v6e have more VMEM so the same tile is safe."""
    def tile_bytes(t):
        rows = t * W
        in_tile = (t + 2) * W * (3 * Cin) * 2              # bf16 interleaved
        out_tile = rows * Cout * y_itemsize + rows * 4     # y + x1
        return 2 * (in_tile + out_tile)                    # double-buffered
    divisors = [t for t in range(1, H + 1) if H % t == 0]
    fitting = [t for t in divisors if tile_bytes(t) <= budget_bytes]
    if not fitting:
        return 1
    preferred = [t for t in fitting if H // t >= min_spatial_tiles]
    return max(preferred) if preferred else max(fitting)


def pred_layer_forward(x_nchw, w1_oihw, b1, bn_gamma, bn_beta, bn_mean, bn_var,
                       w2_oihw, b2, *, eps=1e-5, tile_h=None,
                       y_dtype=jnp.float32):
    """Pallas implementation of Pred_Layer.forward (inference-mode BatchNorm)."""
    N, Cin, H, W = x_nchw.shape
    Cout, Cin_w, KH, KW = w1_oihw.shape
    assert Cin == Cin_w and KH == 3 and KW == 3
    assert W % 8 == 0, "W should be a multiple of 8 for free in-kernel reshapes"
    K3 = 3 * Cin
    y_itemsize = jnp.dtype(y_dtype).itemsize

    if tile_h is None:
        tile_h = _pick_tile_h(H, W, Cin, Cout, y_itemsize)
    assert H % tile_h == 0
    n_h = H // tile_h
    rows = tile_h * W

    # ---- fold BatchNorm (eval mode) into the conv weight / bias (exact, f32)
    scale = bn_gamma / jnp.sqrt(bn_var + eps)                    # (Cout,)
    w1_folded = w1_oihw * scale[:, None, None, None]             # OIHW
    b1_folded = (b1 - bn_mean) * scale + bn_beta                 # (Cout,)

    # ---- layout glue: ONE fused producer pass over the bf16 input ----------
    # NCHW -> NHWC bf16, zero-pad, interleave the 3 kw taps along channels, and
    # gather overlapping (tile_h+2)-row halo tiles.  This replaces the old
    # separate jnp.pad pass AND the in-kernel im2col materialization.
    x_nhwc = jnp.transpose(x_nchw, (0, 2, 3, 1)).astype(jnp.bfloat16)
    x_pad = jnp.pad(x_nhwc, ((0, 0), (1, 1), (1, 1), (0, 0)))    # (N, H+2, W+2, Cin)
    x_int = jnp.concatenate([x_pad[:, :, kw:kw + W, :] for kw in range(3)],
                            axis=-1)                             # (N, H+2, W, 3*Cin)
    row_idx = (jnp.arange(n_h) * tile_h)[:, None] + jnp.arange(tile_h + 2)[None, :]
    x_tiles = x_int[:, row_idx]                                  # (N, n_h, tile_h+2, W, 3*Cin)

    # 3x3 weight: OIHW -> (KH, KW, I, O) -> (3, 3*Cin, Cout), bf16 for the MXU.
    w1_mat = jnp.transpose(w1_folded, (2, 3, 1, 0)).reshape(3, K3, Cout)
    w1_mat = w1_mat.astype(jnp.bfloat16)
    b1_row = b1_folded.reshape(1, Cout).astype(jnp.float32)
    w2_row = w2_oihw.reshape(1, Cout).astype(jnp.float32)
    b2_sc = b2.reshape(1, 1).astype(jnp.float32)

    kernel = functools.partial(_pred_layer_kernel, tile_h=tile_h, W=W,
                               Cin=Cin, Cout=Cout)

    # Explicit VMEM budget: double-buffered I/O tiles + single-buffered weights,
    # with headroom, capped below v7x's 64 MiB/TC.
    in_tile_b = (tile_h + 2) * W * K3 * 2
    out_tile_b = rows * Cout * y_itemsize + rows * 4
    w_b = 3 * K3 * Cout * 2 + 2 * Cout * 4 + 4
    est = 2 * (in_tile_b + out_tile_b) + w_b
    vmem_limit = int(min(48 * 1024 * 1024, max(32 * 1024 * 1024, 2 * est)))

    const = pl.Buffered(1)   # invariant operands: no double-buffering

    y_tiles, x1_tiles = pl.pallas_call(
        kernel,
        out_shape=(
            jax.ShapeDtypeStruct((N, n_h, rows, Cout), y_dtype),
            jax.ShapeDtypeStruct((N, n_h, rows, 1), jnp.float32),
        ),
        grid_spec=pltpu.PrefetchScalarGridSpec(
            num_scalar_prefetch=0,
            grid=(N, n_h),
            in_specs=[
                pl.BlockSpec((1, 1, tile_h + 2, W, K3),
                             lambda n, h: (n, h, 0, 0, 0)),
                pl.BlockSpec((3, K3, Cout), lambda n, h: (0, 0, 0),
                             pipeline_mode=const),
                pl.BlockSpec((1, Cout), lambda n, h: (0, 0),
                             pipeline_mode=const),
                pl.BlockSpec((1, Cout), lambda n, h: (0, 0),
                             pipeline_mode=const),
                pl.BlockSpec(memory_space=pltpu.MemorySpace.SMEM),
            ],
            out_specs=[
                pl.BlockSpec((1, 1, rows, Cout), lambda n, h: (n, h, 0, 0)),
                pl.BlockSpec((1, 1, rows, 1), lambda n, h: (n, h, 0, 0)),
            ],
        ),
        compiler_params=pltpu.CompilerParams(
            dimension_semantics=("parallel", "parallel"),
            vmem_limit_bytes=vmem_limit),
    )(x_tiles, w1_mat, b1_row, w2_row, b2_sc)

    # Back to the module's NCHW return layout.  (If the surrounding graph is
    # NHWC end-to-end, return y_tiles.reshape(N, H, W, Cout) and skip this.)
    y_nchw = jnp.transpose(y_tiles.reshape(N, H, W, Cout), (0, 3, 1, 2))
    x1_nchw = x1_tiles.reshape(N, 1, H, W)
    return y_nchw, x1_nchw


if __name__ == "__main__":
    key = jax.random.PRNGKey(0)
    ks = jax.random.split(key, 9)

    # Pred_Layer defaults: in_c=256, hidden=256, out=1.  Small spatial/batch.
    N, Cin, H, W = 2, 256, 16, 16
    Cout, KS = 256, 3
    eps = 1e-5

    x = jax.random.normal(ks[0], (N, Cin, H, W), dtype=jnp.float32)

    # Conv2d(in_c, 256, 3, padding=1) parameters (with bias).
    fan1 = Cin * KS * KS
    w1 = jax.random.normal(ks[1], (Cout, Cin, KS, KS), jnp.float32) / jnp.sqrt(float(fan1))
    b1 = jax.random.uniform(ks[2], (Cout,), jnp.float32,
                            -1.0 / jnp.sqrt(float(fan1)), 1.0 / jnp.sqrt(float(fan1)))

    # BatchNorm2d(256) parameters (non-trivial, simulating a trained module, eval mode).
    gamma = 1.0 + 0.1 * jax.random.normal(ks[3], (Cout,), jnp.float32)
    beta = 0.1 * jax.random.normal(ks[4], (Cout,), jnp.float32)
    run_mean = 0.1 * jax.random.normal(ks[5], (Cout,), jnp.float32)
    run_var = jax.random.uniform(ks[6], (Cout,), jnp.float32, 0.5, 1.5)

    # Conv2d(256, 1, 1) parameters (with bias).
    w2 = jax.random.normal(ks[7], (1, Cout, 1, 1), jnp.float32) / jnp.sqrt(float(Cout))
    b2 = jax.random.uniform(ks[8], (1,), jnp.float32,
                            -1.0 / jnp.sqrt(float(Cout)), 1.0 / jnp.sqrt(float(Cout)))

    fwd = jax.jit(functools.partial(pred_layer_forward, eps=eps))
    y_out, x1_out = fwd(x, w1, b1, gamma, beta, run_mean, run_var, w2, b2)
    jax.block_until_ready((y_out, x1_out))

    # f32 reference with explicit (unfolded) BatchNorm -> PyTorch eval semantics.
    conv1 = lax.conv_general_dilated(
        x, w1, window_strides=(1, 1), padding=((1, 1), (1, 1)),
        dimension_numbers=("NCHW", "OIHW", "NCHW")) + b1[None, :, None, None]
    bn = (conv1 - run_mean[None, :, None, None]) \
        / jnp.sqrt(run_var + eps)[None, :, None, None] \
        * gamma[None, :, None, None] + beta[None, :, None, None]
    y_ref = jnp.maximum(bn, 0.0)
    x1_ref = lax.conv_general_dilated(
        y_ref, w2, window_strides=(1, 1), padding=((0, 0), (0, 0)),
        dimension_numbers=("NCHW", "OIHW", "NCHW")) + b2[None, :, None, None]

    assert y_out.shape == (N, Cout, H, W)
    assert x1_out.shape == (N, 1, H, W)
    # bf16 matmul inputs with f32 accumulation vs full-f32 reference.
    assert jnp.allclose(y_out, y_ref, atol=5e-2, rtol=5e-2)
    assert jnp.allclose(x1_out, x1_ref, atol=5e-2, rtol=5e-2)

    print("KERNEL_OK")
</pallas_src>

<mosaic_0001>
module attributes {stable_mosaic.version = 11 : i64} {
  func.func @_pred_layer_kernel(%arg0: i32, %arg1: i32, %arg2: memref<1x1x10x16x768xbf16, #tpu.memory_space<vmem>>, %arg3: memref<3x768x256xbf16, #tpu.memory_space<vmem>>, %arg4: memref<1x256xf32, #tpu.memory_space<vmem>>, %arg5: memref<1x256xf32, #tpu.memory_space<vmem>>, %arg6: memref<1x1xf32, #tpu.memory_space<smem>>, %arg7: memref<1x1x128x256xf32, #tpu.memory_space<vmem>>, %arg8: memref<1x1x128x1xf32, #tpu.memory_space<vmem>>) attributes {dimension_semantics = [#tpu.dimension_semantics<parallel>, #tpu.dimension_semantics<parallel>], iteration_bounds = array<i64: 2, 2>, scalar_prefetch = 0 : i64, scratch_operands = 0 : i64, tpu.core_type = #tpu.core_type<tc>, window_params = [{transform_indices = @transform_0, window_bounds = array<i64: 1, 1, 10, 16, 768>}, {pipeline_mode = #tpu.pipeline_mode<synchronous>, transform_indices = @transform_1, window_bounds = array<i64: 3, 768, 256>}, {pipeline_mode = #tpu.pipeline_mode<synchronous>, transform_indices = @transform_2, window_bounds = array<i64: 1, 256>}, {pipeline_mode = #tpu.pipeline_mode<synchronous>, transform_indices = @transform_3, window_bounds = array<i64: 1, 256>}, {transform_indices = @transform_4, window_bounds = array<i64: 1, 1>}, {transform_indices = @transform_5, window_bounds = array<i64: 1, 1, 128, 256>}, {transform_indices = @transform_6, window_bounds = array<i64: 1, 1, 128, 1>}]} {
    %c0 = arith.constant 0 : index
    %c0_0 = arith.constant 0 : index
    %c0_1 = arith.constant 0 : index
    %c0_2 = arith.constant 0 : index
    %c0_3 = arith.constant 0 : index
    %0 = vector.load %arg2[%c0, %c0_0, %c0_1, %c0_2, %c0_3] : memref<1x1x10x16x768xbf16, #tpu.memory_space<vmem>>, vector<1x1x8x16x768xbf16>
    %1 = vector.shape_cast %0 : vector<1x1x8x16x768xbf16> to vector<8x16x768xbf16>
    %2 = vector.shape_cast %1 : vector<8x16x768xbf16> to vector<128x768xbf16>
    %c0_4 = arith.constant 0 : index
    %c0_5 = arith.constant 0 : index
    %c0_6 = arith.constant 0 : index
    %3 = vector.load %arg3[%c0_4, %c0_5, %c0_6] : memref<3x768x256xbf16, #tpu.memory_space<vmem>>, vector<1x768x256xbf16>
    %4 = vector.shape_cast %3 : vector<1x768x256xbf16> to vector<768x256xbf16>
    %cst = arith.constant dense<0.000000e+00> : vector<128x256xf32>
    %5 = tpu.matmul %2, %4, %cst {dimension_numbers = #tpu.dot_dimension_numbers<[1], [0], [0], [1], [0, 0, 1, 1], [], []>} : vector<128x768xbf16>, vector<768x256xbf16>, vector<128x256xf32> -> vector<128x256xf32>
    %c0_7 = arith.constant 0 : index
    %c0_8 = arith.constant 0 : index
    %c1 = arith.constant 1 : index
    %c0_9 = arith.constant 0 : index
    %c0_10 = arith.constant 0 : index
    %6 = vector.load %arg2[%c0_7, %c0_8, %c1, %c0_9, %c0_10] : memref<1x1x10x16x768xbf16, #tpu.memory_space<vmem>>, vector<1x1x8x16x768xbf16>
    %7 = vector.shape_cast %6 : vector<1x1x8x16x768xbf16> to vector<8x16x768xbf16>
    %8 = vector.shape_cast %7 : vector<8x16x768xbf16> to vector<128x768xbf16>
    %c1_11 = arith.constant 1 : index
    %c0_12 = arith.constant 0 : index
    %c0_13 = arith.constant 0 : index
    %9 = vector.load %arg3[%c1_11, %c0_12, %c0_13] : memref<3x768x256xbf16, #tpu.memory_space<vmem>>, vector<1x768x256xbf16>
    %10 = vector.shape_cast %9 : vector<1x768x256xbf16> to vector<768x256xbf16>
    %cst_14 = arith.constant dense<0.000000e+00> : vector<128x256xf32>
    %11 = tpu.matmul %8, %10, %cst_14 {dimension_numbers = #tpu.dot_dimension_numbers<[1], [0], [0], [1], [0, 0, 1, 1], [], []>} : vector<128x768xbf16>, vector<768x256xbf16>, vector<128x256xf32> -> vector<128x256xf32>
    %12 = arith.addf %5, %11 : vector<128x256xf32>
    %c0_15 = arith.constant 0 : index
    %c0_16 = arith.constant 0 : index
    %c2 = arith.constant 2 : index
    %c0_17 = arith.constant 0 : index
    %c0_18 = arith.constant 0 : index
    %13 = vector.load %arg2[%c0_15, %c0_16, %c2, %c0_17, %c0_18] : memref<1x1x10x16x768xbf16, #tpu.memory_space<vmem>>, vector<1x1x8x16x768xbf16>
    %14 = vector.shape_cast %13 : vector<1x1x8x16x768xbf16> to vector<8x16x768xbf16>
    %15 = vector.shape_cast %14 : vector<8x16x768xbf16> to vector<128x768xbf16>
    %c2_19 = arith.constant 2 : index
    %c0_20 = arith.constant 0 : index
    %c0_21 = arith.constant 0 : index
    %16 = vector.load %arg3[%c2_19, %c0_20, %c0_21] : memref<3x768x256xbf16, #tpu.memory_space<vmem>>, vector<1x768x256xbf16>
    %17 = vector.shape_cast %16 : vector<1x768x256xbf16> to vector<768x256xbf16>
    %cst_22 = arith.constant dense<0.000000e+00> : vector<128x256xf32>
    %18 = tpu.matmul %15, %17, %cst_22 {dimension_numbers = #tpu.dot_dimension_numbers<[1], [0], [0], [1], [0, 0, 1, 1], [], []>} : vector<128x768xbf16>, vector<768x256xbf16>, vector<128x256xf32> -> vector<128x256xf32>
    %19 = arith.addf %12, %18 : vector<128x256xf32>
    %c0_23 = arith.constant 0 : index
    %c0_24 = arith.constant 0 : index
    %20 = vector.load %arg4[%c0_23, %c0_24] : memref<1x256xf32, #tpu.memory_space<vmem>>, vector<1x256xf32>
    %21 = vector.broadcast %20 : vector<1x256xf32> to vector<128x256xf32>
    %22 = arith.addf %19, %21 : vector<128x256xf32>
    %cst_25 = arith.constant 0.000000e+00 : f32
    %23 = vector.broadcast %cst_25 : f32 to vector<128x256xf32>
    %24 = arith.maximumf %22, %23 : vector<128x256xf32>
    %c0_26 = arith.constant 0 : index
    %c0_27 = arith.constant 0 : index
    %c0_28 = arith.constant 0 : index
    %c0_29 = arith.constant 0 : index
    %25 = vector.load %arg7[%c0_26, %c0_27, %c0_28, %c0_29] : memref<1x1x128x256xf32, #tpu.memory_space<vmem>>, vector<1x1x128x256xf32>
    %26 = vector.shape_cast %25 : vector<1x1x128x256xf32> to vector<128x256xf32>
    %27 = vector.shape_cast %24 : vector<128x256xf32> to vector<1x1x128x256xf32>
    tpu.vector_store %arg7[%c0_26, %c0_27, %c0_28, %c0_29], %27 {strides = array<i32>} : memref<1x1x128x256xf32, #tpu.memory_space<vmem>>, vector<1x1x128x256xf32>,
    %c0_30 = arith.constant 0 : index
    %c0_31 = arith.constant 0 : index
    %c0_32 = arith.constant 0 : index
    %c0_33 = arith.constant 0 : index
    %28 = vector.load %arg7[%c0_30, %c0_31, %c0_32, %c0_33] : memref<1x1x128x256xf32, #tpu.memory_space<vmem>>, vector<1x1x128x256xf32>
    %29 = vector.shape_cast %28 : vector<1x1x128x256xf32> to vector<128x256xf32>
    %c0_34 = arith.constant 0 : index
    %c0_35 = arith.constant 0 : index
    %30 = vector.load %arg5[%c0_34, %c0_35] : memref<1x256xf32, #tpu.memory_space<vmem>>, vector<1x256xf32>
    %31 = vector.broadcast %30 : vector<1x256xf32> to vector<128x256xf32>
    %32 = arith.mulf %29, %31 : vector<128x256xf32>
    %cst_36 = arith.constant dense<0.000000e+00> : vector<128xf32>
    %33 = vector.multi_reduction <add>, %32, %cst_36 [1] : vector<128x256xf32> to vector<128xf32>
    %34 = vector.shape_cast %33 : vector<128xf32> to vector<128x1xf32>
    %c0_37 = arith.constant 0 : index
    %c0_38 = arith.constant 0 : index
    %35 = memref.load %arg6[%c0_37, %c0_38] : memref<1x1xf32, #tpu.memory_space<smem>>
    %36 = vector.broadcast %35 : f32 to vector<128x1xf32>
    %37 = arith.addf %34, %36 : vector<128x1xf32>
    %c0_39 = arith.constant 0 : index
    %c0_40 = arith.constant 0 : index
    %c0_41 = arith.constant 0 : index
    %c0_42 = arith.constant 0 : index
    %38 = vector.load %arg8[%c0_39, %c0_40, %c0_41, %c0_42] : memref<1x1x128x1xf32, #tpu.memory_space<vmem>>, vector<1x1x128x1xf32>
    %39 = vector.shape_cast %38 : vector<1x1x128x1xf32> to vector<128x1xf32>
    %40 = vector.shape_cast %37 : vector<128x1xf32> to vector<1x1x128x1xf32>
    tpu.vector_store %arg8[%c0_39, %c0_40, %c0_41, %c0_42], %40 {strides = array<i32>} : memref<1x1x128x1xf32, #tpu.memory_space<vmem>>, vector<1x1x128x1xf32>,
    return
  }
  func.func @transform_0(%arg0: i32, %arg1: i32) -> (i32, i32, i32, i32, i32) {
    %c0_i32 = arith.constant 0 : i32
    %c0_i32_0 = arith.constant 0 : i32
    %c0_i32_1 = arith.constant 0 : i32
    %c0_i32_2 = arith.constant 0 : i32
    return %arg0, %arg1, %c0_i32, %c0_i32_0, %c0_i32_1 : i32, i32, i32, i32, i32
  }
  func.func @transform_1(%arg0: i32, %arg1: i32) -> (i32, i32, i32) {
    %c0_i32 = arith.constant 0 : i32
    %c0_i32_0 = arith.constant 0 : i32
    %c0_i32_1 = arith.constant 0 : i32
    %c0_i32_2 = arith.constant 0 : i32
    return %c0_i32, %c0_i32_0, %c0_i32_1 : i32, i32, i32
  }
  func.func @transform_2(%arg0: i32, %arg1: i32) -> (i32, i32) {
    %c0_i32 = arith.constant 0 : i32
    %c0_i32_0 = arith.constant 0 : i32
    %c0_i32_1 = arith.constant 0 : i32
    return %c0_i32, %c0_i32_0 : i32, i32
  }
  func.func @transform_3(%arg0: i32, %arg1: i32) -> (i32, i32) {
    %c0_i32 = arith.constant 0 : i32
    %c0_i32_0 = arith.constant 0 : i32
    %c0_i32_1 = arith.constant 0 : i32
    return %c0_i32, %c0_i32_0 : i32, i32
  }
  func.func @transform_4(%arg0: i32, %arg1: i32) -> (i32, i32) {
    %c0_i32 = arith.constant 0 : i32
    %c0_i32_0 = arith.constant 0 : i32
    %c0_i32_1 = arith.constant 0 : i32
    return %c0_i32, %c0_i32_0 : i32, i32
  }
  func.func @transform_5(%arg0: i32, %arg1: i32) -> (i32, i32, i32, i32) {
    %c0_i32 = arith.constant 0 : i32
    %c0_i32_0 = arith.constant 0 : i32
    %c0_i32_1 = arith.constant 0 : i32
    return %arg0, %arg1, %c0_i32, %c0_i32_0 : i32, i32, i32, i32
  }
  func.func @transform_6(%arg0: i32, %arg1: i32) -> (i32, i32, i32, i32) {
    %c0_i32 = arith.constant 0 : i32
    %c0_i32_0 = arith.constant 0 : i32
    %c0_i32_1 = arith.constant 0 : i32
    return %arg0, %arg1, %c0_i32, %c0_i32_0 : i32, i32, i32, i32
  }
}

</mosaic_0001>

<llo_original>
// kernel: pred_layer_forward.1
$region0: #{pred_layer_forward.1}
  #allocation0 [shape = 'u32[]', space=smem, size = 0x4, offset = 0x4, fixed_abs, tag = 'smem constant byte address 0x4 - core index']
  #allocation1 [shape = 'u32[144,128]{1,0:T(1,128)}', space=vmem, size = 0x12000, scoped, tag = 'internal scratch']
  #allocation2 [shape = 'f32[1,1]{1,0:T(1,128)S(6)}', space=smem, size = 0x200, scoped, tag = 'scoped memory for pred_layer_forward.1']
  %s0 = inlined_call_operand.vmem [shape: bf16[2,2,10,16,768], index: 0, kind: input, shape index: {}]
  %s1 = inlined_call_operand.vmem [shape: bf16[3,768,256], index: 1, kind: input, shape index: {}]
  %s2 = inlined_call_operand.vmem [shape: f32[1,256], index: 2, kind: input, shape index: {}]
  %s3 = inlined_call_operand.vmem [shape: f32[1,256], index: 3, kind: input, shape index: {}]
  %s4 = inlined_call_operand.<no memory space> [shape: f32[1,1], index: 4, kind: input, shape index: {}]
  %s5 = inlined_call_operand.hbm [shape: f32[2,2,128,256], index: 5, kind: output, shape index: {0}]
  %s6 = inlined_call_operand.vmem [shape: f32[2,2,128,1], index: 6, kind: output, shape index: {1}]
  %7 = xla_tuple %s5, %s6
  %s8 = sld [smem:[#allocation0]]
  $region61: #{pred_layer_forward.1} parent=0
    _
  %s10 = ssub.s32 1, %s8
  %s11 = scalar_select 0, %s10, %s8
  %12 = sst [smem:[#allocation2]] %s4
  $region1: #{pred_layer_forward.1} parent=0
    #allocation3 [shape = 'u8[262144]{0}', space=vmem, size = 0x40000, scoped, tag = 'output window, operand 0']
    #allocation4 [shape = 's32[2]{0}', space=sflag, size = 0x8, scoped, tag = 'scoped memory for pred_layer_forward.1']
    %13 = vsyncpa [#allocation4], 0
    %s14 = scalar_lea.sflag [#allocation4], 1
    %15 = vsyncpa %s14, 0
    loop: start=0, step=1, limit=6
    $region2: #{pred_layer_forward.1} parent=1 // loop_pre_header
      _
    $region3: #{pred_layer_forward.1} parent=1 // loop_header
      %s17 = sphi 0, %s21
      %p18 = scmp.ge.s32.totalorder %s17, 6
      %s24 = sphi 0, %s36
      %s25 = sphi 0, %s32
      %s26 = sphi 0, %s24
      %s27 = sphi 0, %s25
      %s28 = sphi 0, %s26
      %s29 = sphi 0, %s27
      %s41 = sphi 0, %s43
      %s44 = sphi 0, %s41
      %s45 = sphi 0, %s44
      %s61 = sphi 0, %s45
      %s65 = sphi 0, %s65
      %s67 = sphi 0, %s65
      %s68 = sphi 0, %s67
      %s82 = sphi 0, %s68
      %s86 = sphi 0, %s86
      %s88 = sphi 0, %s86
      %s89 = sphi 0, %s88
      %s103 = sphi 0, %s89
      %s107 = sphi 0, %s107
      %s109 = sphi 0, %s107
      %s110 = sphi 0, %s109
      %s124 = sphi 0, %s110
      %s128 = sphi 0, %s128
      %s130 = sphi 0, %s128
      %s131 = sphi 0, %s130
      %s145 = sphi 0, %s131
      %s153 = sphi 0, %s155
      %s156 = sphi 0, %s153
      %s157 = sphi 0, %s156
      %s173 = sphi 0, %s157
      %s181 = sphi 0, %s183
      %s184 = sphi 0, %s181
      %s185 = sphi 0, %s184
      %s201 = sphi 0, %s185
    $region4: #{pred_layer_forward.1} parent=1 // loop_header_branch
      %20 = sbr.rel (%p18) target = $region8
    $region5: #{pred_layer_forward.1} parent=1 // loop_body
      %s22 = ssub.s32 %s17, 1
      %s23 = ssub.s32 %s17, 2
      %s30 = sadd.s32 1, %s25
      %p31 = scmp.ge.s32.totalorder %s30, 2
      %s32 = scalar_select %p31, 0, %s30
      %s33 = sadd.s32 1, %s24
      %s34 = scalar_select %p31, %s33, %s24
      %p35 = scmp.ge.s32.totalorder %s34, 2
      %s36 = scalar_select %p35, 0, %s34
      %s37 = ssub.s32 %s24, %s36
      %s38 = ssub.s32 %s25, %s32
      %s39 = sor.u32 %s37, %s38
      %p40 = scmp.eq.s32.totalorder %s39, 0
      %s42 = sadd.s32 %s41, 1
      %s43 = scalar_select %p40, %s41, %s42
      %p46 = pneg %p40
      %p47 = scmp.eq.s32.totalorder %s17, 3
      %p48 = por %p46, %p47
      %p49 = scmp.ne.s32.totalorder %s41, %s44
      %p50 = scmp.eq.s32.totalorder %s17, 0
      %p51 = por %p49, %p50
      %p52 = scmp.ne.s32.totalorder %s41, %s44
      %p53 = scmp.eq.s32.totalorder %s22, 3
      %p54 = por %p52, %p53
      %p55 = scmp.ne.s32.totalorder %s44, %s45
      %p56 = scmp.eq.s32.totalorder %s22, 0
      %p57 = por %p55, %p56
      %p58 = scmp.ne.s32.totalorder %s44, %s45
      %p59 = scmp.eq.s32.totalorder %s23, 3
      %p60 = por %p58, %p59
      %p62 = scmp.ne.s32.totalorder %s45, %s61
      %p63 = scmp.eq.s32.totalorder %s23, 0
      %p64 = por %p62, %p63
      %s66 = sadd.s32 %s65, 1
      %p69 = scmp.eq.s32.totalorder %s17, 3
      %p70 = scmp.ne.s32.totalorder %s65, %s67
      %p71 = scmp.eq.s32.totalorder %s17, 0
      %p72 = por %p70, %p71
      %p73 = scmp.ne.s32.totalorder %s65, %s67
      %p74 = scmp.eq.s32.totalorder %s22, 3
      %p75 = por %p73, %p74
      %p76 = scmp.ne.s32.totalorder %s67, %s68
      %p77 = scmp.eq.s32.totalorder %s22, 0
      %p78 = por %p76, %p77
      %p79 = scmp.ne.s32.totalorder %s67, %s68
      %p80 = scmp.eq.s32.totalorder %s23, 3
      %p81 = por %p79, %p80
      %p83 = scmp.ne.s32.totalorder %s68, %s82
      %p84 = scmp.eq.s32.totalorder %s23, 0
      %p85 = por %p83, %p84
      %s87 = sadd.s32 %s86, 1
      %p90 = scmp.eq.s32.totalorder %s17, 3
      %p91 = scmp.ne.s32.totalorder %s86, %s88
      %p92 = scmp.eq.s32.totalorder %s17, 0
      %p93 = por %p91, %p92
      %p94 = scmp.ne.s32.totalorder %s86, %s88
      %p95 = scmp.eq.s32.totalorder %s22, 3
      %p96 = por %p94, %p95
      %p97 = scmp.ne.s32.totalorder %s88, %s89
      %p98 = scmp.eq.s32.totalorder %s22, 0
      %p99 = por %p97, %p98
      %p100 = scmp.ne.s32.totalorder %s88, %s89
      %p101 = scmp.eq.s32.totalorder %s23, 3
      %p102 = por %p100, %p101
      %p104 = scmp.ne.s32.totalorder %s89, %s103
      %p105 = scmp.eq.s32.totalorder %s23, 0
      %p106 = por %p104, %p105
      %s108 = sadd.s32 %s107, 1
      %p111 = scmp.eq.s32.totalorder %s17, 3
      %p112 = scmp.ne.s32.totalorder %s107, %s109
      %p113 = scmp.eq.s32.totalorder %s17, 0
      %p114 = por %p112, %p113
      %p115 = scmp.ne.s32.totalorder %s107, %s109
      %p116 = scmp.eq.s32.totalorder %s22, 3
      %p117 = por %p115, %p116
      %p118 = scmp.ne.s32.totalorder %s109, %s110
      %p119 = scmp.eq.s32.totalorder %s22, 0
      %p120 = por %p118, %p119
      %p121 = scmp.ne.s32.totalorder %s109, %s110
      %p122 = scmp.eq.s32.totalorder %s23, 3
      %p123 = por %p121, %p122
      %p125 = scmp.ne.s32.totalorder %s110, %s124
      %p126 = scmp.eq.s32.totalorder %s23, 0
      %p127 = por %p125, %p126
      %s129 = sadd.s32 %s128, 1
      %p132 = scmp.eq.s32.totalorder %s17, 3
      %p133 = scmp.ne.s32.totalorder %s128, %s130
      %p134 = scmp.eq.s32.totalorder %s17, 0
      %p135 = por %p133, %p134
      %p136 = scmp.ne.s32.totalorder %s128, %s130
      %p137 = scmp.eq.s32.totalorder %s22, 3
      %p138 = por %p136, %p137
      %p139 = scmp.ne.s32.totalorder %s130, %s131
      %p140 = scmp.eq.s32.totalorder %s22, 0
      %p141 = por %p139, %p140
      %p142 = scmp.ne.s32.totalorder %s130, %s131
      %p143 = scmp.eq.s32.totalorder %s23, 3
      %p144 = por %p142, %p143
      %p146 = scmp.ne.s32.totalorder %s131, %s145
      %p147 = scmp.eq.s32.totalorder %s23, 0
      %p148 = por %p146, %p147
      %s149 = ssub.s32 %s24, %s36
      %s150 = ssub.s32 %s25, %s32
      %s151 = sor.u32 %s149, %s150
      %p152 = scmp.eq.s32.totalorder %s151, 0
      %s154 = sadd.s32 %s153, 1
      %s155 = scalar_select %p152, %s153, %s154
      %p158 = pneg %p152
      %p159 = scmp.eq.s32.totalorder %s17, 3
      %p160 = por %p158, %p159
      %p161 = scmp.ne.s32.totalorder %s153, %s156
      %p162 = scmp.eq.s32.totalorder %s17, 0
      %p163 = por %p161, %p162
      %p164 = scmp.ne.s32.totalorder %s153, %s156
      %p165 = scmp.eq.s32.totalorder %s22, 3
      %p166 = por %p164, %p165
      %p167 = scmp.ne.s32.totalorder %s156, %s157
      %p168 = scmp.eq.s32.totalorder %s22, 0
      %p169 = por %p167, %p168
      %p170 = scmp.ne.s32.totalorder %s156, %s157
      %p171 = scmp.eq.s32.totalorder %s23, 3
      %p172 = por %p170, %p171
      %p174 = scmp.ne.s32.totalorder %s157, %s173
      %p175 = scmp.eq.s32.totalorder %s23, 0
      %p176 = por %p174, %p175
      %s177 = ssub.s32 %s24, %s36
      %s178 = ssub.s32 %s25, %s32
      %s179 = sor.u32 %s177, %s178
      %p180 = scmp.eq.s32.totalorder %s179, 0
      %s182 = sadd.s32 %s181, 1
      %s183 = scalar_select %p180, %s181, %s182
      %p186 = pneg %p180
      %p187 = scmp.eq.s32.totalorder %s17, 3
      %p188 = por %p186, %p187
      %p189 = scmp.ne.s32.totalorder %s181, %s184
      %p190 = scmp.eq.s32.totalorder %s17, 0
      %p191 = por %p189, %p190
      %p192 = scmp.ne.s32.totalorder %s181, %s184
      %p193 = scmp.eq.s32.totalorder %s22, 3
      %p194 = por %p192, %p193
      %p195 = scmp.ne.s32.totalorder %s184, %s185
      %p196 = scmp.eq.s32.totalorder %s22, 0
      %p197 = por %p195, %p196
      %p198 = scmp.ne.s32.totalorder %s184, %s185
      %p199 = scmp.eq.s32.totalorder %s23, 3
      %p200 = por %p198, %p199
      %p202 = scmp.ne.s32.totalorder %s185, %s201
      %p203 = scmp.eq.s32.totalorder %s23, 0
      %p204 = por %p202, %p203
      %p205 = scmp.le.s32.totalorder 1, %s17
      %p206 = scmp.lt.s32.totalorder %s17, 5
      %p207 = pnand %p205, %p206
      %p208 = pneg %p207
      // Predicated region
      $region9: #{pred_layer_forward.1} parent=5 // pred_check
        _
      $region10: #{pred_layer_forward.1} parent=5 // pred_check_branch
        %210 = sbr.rel (%p207) target = $region12
      $region11: #{pred_layer_forward.1} parent=5 // pred_region
        %s211 = ssub.s32 %s17, 1
        // Predicated region
        $region13: #{pred_layer_forward.1} parent=11 // pred_check
          %p212 = pneg %p78
        $region14: #{pred_layer_forward.1} parent=11 // pred_check_branch
          %214 = sbr.rel (%p212) target = $region16
        $region15: #{pred_layer_forward.1} parent=11 // pred_region
          _
        $region16: #{pred_layer_forward.1} parent=11 // pred_fallthru
          _
        // Predicated region
        $region17: #{pred_layer_forward.1} parent=11 // pred_check
          %p215 = pneg %p99
        $region18: #{pred_layer_forward.1} parent=11 // pred_check_branch
          %217 = sbr.rel (%p215) target = $region20
        $region19: #{pred_layer_forward.1} parent=11 // pred_region
          _
        $region20: #{pred_layer_forward.1} parent=11 // pred_fallthru
          _
        // Predicated region
        $region21: #{pred_layer_forward.1} parent=11 // pred_check
          %p218 = pneg %p120
        $region22: #{pred_layer_forward.1} parent=11 // pred_check_branch
          %220 = sbr.rel (%p218) target = $region24
        $region23: #{pred_layer_forward.1} parent=11 // pred_region
          _
        $region24: #{pred_layer_forward.1} parent=11 // pred_fallthru
          _
        // Predicated region
        $region25: #{pred_layer_forward.1} parent=11 // pred_check
          %p221 = pneg %p141
        $region26: #{pred_layer_forward.1} parent=11 // pred_check_branch
          %223 = sbr.rel (%p221) target = $region28
        $region27: #{pred_layer_forward.1} parent=11 // pred_region
          _
        $region28: #{pred_layer_forward.1} parent=11 // pred_fallthru
          _
      $region12: #{pred_layer_forward.1} parent=5 // pred_fallthru
        _
      %p224 = scmp.lt.s32.totalorder %s17, 4
      // Predicated region
      $region29: #{pred_layer_forward.1} parent=5 // pred_check
        %p225 = pneg %p224
      $region30: #{pred_layer_forward.1} parent=5 // pred_check_branch
        %227 = sbr.rel (%p225) target = $region32
      $region31: #{pred_layer_forward.1} parent=5 // pred_region
        // Predicated region
        $region33: #{pred_layer_forward.1} parent=31 // pred_check
          %p228 = pneg %p51
        $region34: #{pred_layer_forward.1} parent=31 // pred_check_branch
          %230 = sbr.rel (%p228) target = $region36
        $region35: #{pred_layer_forward.1} parent=31 // pred_region
          %p231 = scmp.lt.s32.totalorder %s24, 1
          %s232 = scalar_select %p231, %s24, 1
          %p233 = scmp.lt.s32.totalorder %s25, 1
          %s234 = scalar_select %p233, %s25, 1
          %s235 = smul.addr %s234, 120
          %s236 = smul.addr %s232, 240
          %s237 = sadd.s32 %s235, %s236
          %s238 = smul.addr %s237, 4
          %s239 = scalar_lea.vmem %s0, %s238
        $region36: #{pred_layer_forward.1} parent=31 // pred_fallthru
          _
      $region32: #{pred_layer_forward.1} parent=5 // pred_fallthru
        _
      %p240 = scmp.le.s32.totalorder 1, %s17
      %p241 = scmp.lt.s32.totalorder %s17, 5
      %p242 = pnand %p240, %p241
      %p243 = pneg %p242
      // Predicated region
      $region37: #{pred_layer_forward.1} parent=5 // pred_check
        _
      $region38: #{pred_layer_forward.1} parent=5 // pred_check_branch
        %245 = sbr.rel (%p242) target = $region40
      $region39: #{pred_layer_forward.1} parent=5 // pred_region
        %s246 = ssub.s32 %s17, 1
        %p247 = scmp.lt.s32.totalorder %s26, 1
        %s248 = scalar_select %p247, %s26, 1
        %p249 = scmp.lt.s32.totalorder %s27, 1
        %s250 = scalar_select %p249, %s27, 1
        %s251 = smul.addr %s250, 120
        %s252 = smul.addr %s248, 240
        %s253 = sadd.s32 %s251, %s252
        %s254 = smul.addr %s253, 4
        %s255 = scalar_lea.vmem %s0, %s254
        %p256 = pneg %p57
        %p257 = pneg %p54
        %p258 = pneg %p78
        %p259 = pneg %p75
        %p260 = pneg %p99
        %p261 = pneg %p96
        %p262 = pneg %p120
        %p263 = pneg %p117
        %p264 = pneg %p141
        %p265 = pneg %p138
        %p266 = pneg %p169
        %p267 = pneg %p166
        %s268 = sand.u32 %s156, 1
        %s269 = scalar_lea.sflag [#allocation4], %s268
        %s270 = sand.u32 %s156, 1
        %s271 = smul.addr %s270, 256
        %s272 = scalar_lea.vmem [#allocation3], %s271
        %p273 = pneg %p197
        %p274 = pneg %p194
        %p275 = scmp.lt.s32.totalorder %s26, 1
        %s276 = scalar_select %p275, %s26, 1
        %p277 = scmp.lt.s32.totalorder %s27, 1
        %s278 = scalar_select %p277, %s27, 1
        %s279 = smul.addr %s278, 16
        %s280 = smul.addr %s276, 32
        %s281 = sadd.s32 %s279, %s280
        %s282 = smul.addr %s281, 8
        %s283 = scalar_lea.vmem %s6, %s282
        %p284 = scmp.lt.s32.totalorder %s26, 1
        %s285 = scalar_select %p284, %s26, 1
        %p286 = scmp.lt.s32.totalorder %s27, 1
        %s287 = scalar_select %p286, %s27, 1
        %s288 = smul.addr %s287, 120
        %s289 = smul.addr %s285, 240
        %s290 = sadd.s32 %s288, %s289
        %s291 = smul.addr %s290, 4
        %s292 = scalar_lea.vmem %s0, %s291
        %p293 = scmp.lt.s32.totalorder %s26, 1
        %s294 = scalar_select %p293, %s26, 1
        %p295 = scmp.lt.s32.totalorder %s27, 1
        %s296 = scalar_select %p295, %s27, 1
        %s297 = smul.addr %s296, 16
        %s298 = smul.addr %s294, 32
        %s299 = sadd.s32 %s297, %s298
        %s300 = smul.addr %s299, 8
        %s301 = scalar_lea.vmem %s6, %s300
        %v302 = vld [vmem:[%s292] sm:$0xff]
        %v303 = vld [vmem:[%s292 + $0x8] sm:$0xff]
        %v304 = vld [vmem:[%s292 + $0x10] sm:$0xff]
        %v305 = vld [vmem:[%s292 + $0x18] sm:$0xff]
        %v306 = vld [vmem:[%s292 + $0x20] sm:$0xff]
        %v307 = vld [vmem:[%s292 + $0x28] sm:$0xff]
        %v308 = vld [vmem:[%s292 + $0x30] sm:$0xff]
        %v309 = vld [vmem:[%s292 + $0x38] sm:$0xff]
        %v310 = vld [vmem:[%s292 + $0x40] sm:$0xff]
        %v311 = vld [vmem:[%s292 + $0x48] sm:$0xff]
        %v312 = vld [vmem:[%s292 + $0x50] sm:$0xff]
        %v313 = vld [vmem:[%s292 + $0x58] sm:$0xff]
        %v314 = vld [vmem:[%s292 + $0x60] sm:$0xff]
        %v315 = vld [vmem:[%s292 + $0x68] sm:$0xff]
        %v316 = vld [vmem:[%s292 + $0x70] sm:$0xff]
        %v317 = vld [vmem:[%s292 + $0x78] sm:$0xff]
        %v318 = vld [vmem:[%s292 + $0x80] sm:$0xff]
        %v319 = vld [vmem:[%s292 + $0x88] sm:$0xff]
        %v320 = vld [vmem:[%s292 + $0x90] sm:$0xff]
        %v321 = vld [vmem:[%s292 + $0x98] sm:$0xff]
        %v322 = vld [vmem:[%s292 + $0xa0] sm:$0xff]
        %v323 = vld [vmem:[%s292 + $0xa8] sm:$0xff]
        %v324 = vld [vmem:[%s292 + $0xb0] sm:$0xff]
        %v325 = vld [vmem:[%s292 + $0xb8] sm:$0xff]
        %v326 = vld [vmem:[%s292 + $0xc0] sm:$0xff]
        %v327 = vld [vmem:[%s292 + $0xc8] sm:$0xff]
        %v328 = vld [vmem:[%s292 + $0xd0] sm:$0xff]
        %v329 = vld [vmem:[%s292 + $0xd8] sm:$0xff]
        %v330 = vld [vmem:[%s292 + $0xe0] sm:$0xff]
        %v331 = vld [vmem:[%s292 + $0xe8] sm:$0xff]
        %v332 = vld [vmem:[%s292 + $0xf0] sm:$0xff]
        %v333 = vld [vmem:[%s292 + $0xf8] sm:$0xff]
        %v334 = vld [vmem:[%s292 + $0x100] sm:$0xff]
        %v335 = vld [vmem:[%s292 + $0x108] sm:$0xff]
        %v336 = vld [vmem:[%s292 + $0x110] sm:$0xff]
        %v337 = vld [vmem:[%s292 + $0x118] sm:$0xff]
        %v338 = vld [vmem:[%s292 + $0x120] sm:$0xff]
        %v339 = vld [vmem:[%s292 + $0x128] sm:$0xff]
        %v340 = vld [vmem:[%s292 + $0x130] sm:$0xff]
        %v341 = vld [vmem:[%s292 + $0x138] sm:$0xff]
        %v342 = vld [vmem:[%s292 + $0x140] sm:$0xff]
        %v343 = vld [vmem:[%s292 + $0x148] sm:$0xff]
        %v344 = vld [vmem:[%s292 + $0x150] sm:$0xff]
        %v345 = vld [vmem:[%s292 + $0x158] sm:$0xff]
        %v346 = vld [vmem:[%s292 + $0x160] sm:$0xff]
        %v347 = vld [vmem:[%s292 + $0x168] sm:$0xff]
        %v348 = vld [vmem:[%s292 + $0x170] sm:$0xff]
        %v349 = vld [vmem:[%s292 + $0x178] sm:$0xff]
        %v350 = vld [vmem:[%s1] sm:$0xff]
        %v351 = vld [vmem:[%s1 + $0x8] sm:$0xff]
        %v352 = vld [vmem:[%s1 + $0x10] sm:$0xff]
        %v353 = vld [vmem:[%s1 + $0x18] sm:$0xff]
        %v354 = vld [vmem:[%s1 + $0x20] sm:$0xff]
        %v355 = vld [vmem:[%s1 + $0x28] sm:$0xff]
        %v356 = vld [vmem:[%s1 + $0x30] sm:$0xff]
        %v357 = vld [vmem:[%s1 + $0x38] sm:$0xff]
        %v358 = vld [vmem:[%s1 + $0x40] sm:$0xff]
        %v359 = vld [vmem:[%s1 + $0x48] sm:$0xff]
        %v360 = vld [vmem:[%s1 + $0x50] sm:$0xff]
        %v361 = vld [vmem:[%s1 + $0x58] sm:$0xff]
        %v362 = vld [vmem:[%s1 + $0x60] sm:$0xff]
        %v363 = vld [vmem:[%s1 + $0x68] sm:$0xff]
        %v364 = vld [vmem:[%s1 + $0x70] sm:$0xff]
        %v365 = vld [vmem:[%s1 + $0x78] sm:$0xff]
        %v366 = vld [vmem:[%s1 + $0x80] sm:$0xff]
        %v367 = vld [vmem:[%s1 + $0x88] sm:$0xff]
        %v368 = vld [vmem:[%s1 + $0x90] sm:$0xff]
        %v369 = vld [vmem:[%s1 + $0x98] sm:$0xff]
        %v370 = vld [vmem:[%s1 + $0xa0] sm:$0xff]
        %v371 = vld [vmem:[%s1 + $0xa8] sm:$0xff]
        %v372 = vld [vmem:[%s1 + $0xb0] sm:$0xff]
        %v373 = vld [vmem:[%s1 + $0xb8] sm:$0xff]
        %v374 = vld [vmem:[%s1 + $0xc0] sm:$0xff]
        %v375 = vld [vmem:[%s1 + $0xc8] sm:$0xff]
        %v376 = vld [vmem:[%s1 + $0xd0] sm:$0xff]
        %v377 = vld [vmem:[%s1 + $0xd8] sm:$0xff]
        %v378 = vld [vmem:[%s1 + $0xe0] sm:$0xff]
        %v379 = vld [vmem:[%s1 + $0xe8] sm:$0xff]
        %v380 = vld [vmem:[%s1 + $0xf0] sm:$0xff]
        %v381 = vld [vmem:[%s1 + $0xf8] sm:$0xff]
        %v382 = vld [vmem:[%s1 + $0x100] sm:$0xff]
        %v383 = vld [vmem:[%s1 + $0x108] sm:$0xff]
        %v384 = vld [vmem:[%s1 + $0x110] sm:$0xff]
        %v385 = vld [vmem:[%s1 + $0x118] sm:$0xff]
        %v386 = vld [vmem:[%s1 + $0x120] sm:$0xff]
        %v387 = vld [vmem:[%s1 + $0x128] sm:$0xff]
        %v388 = vld [vmem:[%s1 + $0x130] sm:$0xff]
        %v389 = vld [vmem:[%s1 + $0x138] sm:$0xff]
        %v390 = vld [vmem:[%s1 + $0x140] sm:$0xff]
        %v391 = vld [vmem:[%s1 + $0x148] sm:$0xff]
        %v392 = vld [vmem:[%s1 + $0x150] sm:$0xff]
        %v393 = vld [vmem:[%s1 + $0x158] sm:$0xff]
        %v394 = vld [vmem:[%s1 + $0x160] sm:$0xff]
        %v395 = vld [vmem:[%s1 + $0x168] sm:$0xff]
        %v396 = vld [vmem:[%s1 + $0x170] sm:$0xff]
        %v397 = vld [vmem:[%s1 + $0x178] sm:$0xff]
        %v398 = vld [vmem:[%s1 + $0x180] sm:$0xff]
        %v399 = vld [vmem:[%s1 + $0x188] sm:$0xff]
        %v400 = vld [vmem:[%s1 + $0x190] sm:$0xff]
        %v401 = vld [vmem:[%s1 + $0x198] sm:$0xff]
        %v402 = vld [vmem:[%s1 + $0x1a0] sm:$0xff]
        %v403 = vld [vmem:[%s1 + $0x1a8] sm:$0xff]
        %v404 = vld [vmem:[%s1 + $0x1b0] sm:$0xff]
        %v405 = vld [vmem:[%s1 + $0x1b8] sm:$0xff]
        %v406 = vld [vmem:[%s1 + $0x1c0] sm:$0xff]
        %v407 = vld [vmem:[%s1 + $0x1c8] sm:$0xff]
        %v408 = vld [vmem:[%s1 + $0x1d0] sm:$0xff]
        %v409 = vld [vmem:[%s1 + $0x1d8] sm:$0xff]
        %v410 = vld [vmem:[%s1 + $0x1e0] sm:$0xff]
        %v411 = vld [vmem:[%s1 + $0x1e8] sm:$0xff]
        %v412 = vld [vmem:[%s1 + $0x1f0] sm:$0xff]
        %v413 = vld [vmem:[%s1 + $0x1f8] sm:$0xff]
        %v414 = vld [vmem:[%s1 + $0x200] sm:$0xff]
        %v415 = vld [vmem:[%s1 + $0x208] sm:$0xff]
        %v416 = vld [vmem:[%s1 + $0x210] sm:$0xff]
        %v417 = vld [vmem:[%s1 + $0x218] sm:$0xff]
        %v418 = vld [vmem:[%s1 + $0x220] sm:$0xff]
        %v419 = vld [vmem:[%s1 + $0x228] sm:$0xff]
        %v420 = vld [vmem:[%s1 + $0x230] sm:$0xff]
        %v421 = vld [vmem:[%s1 + $0x238] sm:$0xff]
        %v422 = vld [vmem:[%s1 + $0x240] sm:$0xff]
        %v423 = vld [vmem:[%s1 + $0x248] sm:$0xff]
        %v424 = vld [vmem:[%s1 + $0x250] sm:$0xff]
        %v425 = vld [vmem:[%s1 + $0x258] sm:$0xff]
        %v426 = vld [vmem:[%s1 + $0x260] sm:$0xff]
        %v427 = vld [vmem:[%s1 + $0x268] sm:$0xff]
        %v428 = vld [vmem:[%s1 + $0x270] sm:$0xff]
        %v429 = vld [vmem:[%s1 + $0x278] sm:$0xff]
        %v430 = vld [vmem:[%s1 + $0x280] sm:$0xff]
        %v431 = vld [vmem:[%s1 + $0x288] sm:$0xff]
        %v432 = vld [vmem:[%s1 + $0x290] sm:$0xff]
        %v433 = vld [vmem:[%s1 + $0x298] sm:$0xff]
        %v434 = vld [vmem:[%s1 + $0x2a0] sm:$0xff]
        %v435 = vld [vmem:[%s1 + $0x2a8] sm:$0xff]
        %v436 = vld [vmem:[%s1 + $0x2b0] sm:$0xff]
        %v437 = vld [vmem:[%s1 + $0x2b8] sm:$0xff]
        %v438 = vld [vmem:[%s1 + $0x2c0] sm:$0xff]
        %v439 = vld [vmem:[%s1 + $0x2c8] sm:$0xff]
        %v440 = vld [vmem:[%s1 + $0x2d0] sm:$0xff]
        %v441 = vld [vmem:[%s1 + $0x2d8] sm:$0xff]
        %v442 = vld [vmem:[%s1 + $0x2e0] sm:$0xff]
        %v443 = vld [vmem:[%s1 + $0x2e8] sm:$0xff]
        %v444 = vld [vmem:[%s1 + $0x2f0] sm:$0xff]
        %v445 = vld [vmem:[%s1 + $0x2f8] sm:$0xff]
        %s446 = scalar_lea.vmem %s292, 48
        %v447 = vld [vmem:[%s446] sm:$0xff]
        %v448 = vld [vmem:[%s446 + $0x8] sm:$0xff]
        %v449 = vld [vmem:[%s446 + $0x10] sm:$0xff]
        %v450 = vld [vmem:[%s446 + $0x18] sm:$0xff]
        %v451 = vld [vmem:[%s446 + $0x20] sm:$0xff]
        %v452 = vld [vmem:[%s446 + $0x28] sm:$0xff]
        %v453 = vld [vmem:[%s446 + $0x30] sm:$0xff]
        %v454 = vld [vmem:[%s446 + $0x38] sm:$0xff]
        %v455 = vld [vmem:[%s446 + $0x40] sm:$0xff]
        %v456 = vld [vmem:[%s446 + $0x48] sm:$0xff]
        %v457 = vld [vmem:[%s446 + $0x50] sm:$0xff]
        %v458 = vld [vmem:[%s446 + $0x58] sm:$0xff]
        %v459 = vld [vmem:[%s446 + $0x60] sm:$0xff]
        %v460 = vld [vmem:[%s446 + $0x68] sm:$0xff]
        %v461 = vld [vmem:[%s446 + $0x70] sm:$0xff]
        %v462 = vld [vmem:[%s446 + $0x78] sm:$0xff]
        %v463 = vld [vmem:[%s446 + $0x80] sm:$0xff]
        %v464 = vld [vmem:[%s446 + $0x88] sm:$0xff]
        %v465 = vld [vmem:[%s446 + $0x90] sm:$0xff]
        %v466 = vld [vmem:[%s446 + $0x98] sm:$0xff]
        %v467 = vld [vmem:[%s446 + $0xa0] sm:$0xff]
        %v468 = vld [vmem:[%s446 + $0xa8] sm:$0xff]
        %v469 = vld [vmem:[%s446 + $0xb0] sm:$0xff]
        %v470 = vld [vmem:[%s446 + $0xb8] sm:$0xff]
        %v471 = vld [vmem:[%s446 + $0xc0] sm:$0xff]
        %v472 = vld [vmem:[%s446 + $0xc8] sm:$0xff]
        %v473 = vld [vmem:[%s446 + $0xd0] sm:$0xff]
        %v474 = vld [vmem:[%s446 + $0xd8] sm:$0xff]
        %v475 = vld [vmem:[%s446 + $0xe0] sm:$0xff]
        %v476 = vld [vmem:[%s446 + $0xe8] sm:$0xff]
        %v477 = vld [vmem:[%s446 + $0xf0] sm:$0xff]
        %v478 = vld [vmem:[%s446 + $0xf8] sm:$0xff]
        %v479 = vld [vmem:[%s446 + $0x100] sm:$0xff]
        %v480 = vld [vmem:[%s446 + $0x108] sm:$0xff]
        %v481 = vld [vmem:[%s446 + $0x110] sm:$0xff]
        %v482 = vld [vmem:[%s446 + $0x118] sm:$0xff]
        %v483 = vld [vmem:[%s446 + $0x120] sm:$0xff]
        %v484 = vld [vmem:[%s446 + $0x128] sm:$0xff]
        %v485 = vld [vmem:[%s446 + $0x130] sm:$0xff]
        %v486 = vld [vmem:[%s446 + $0x138] sm:$0xff]
        %v487 = vld [vmem:[%s446 + $0x140] sm:$0xff]
        %v488 = vld [vmem:[%s446 + $0x148] sm:$0xff]
        %v489 = vld [vmem:[%s446 + $0x150] sm:$0xff]
        %v490 = vld [vmem:[%s446 + $0x158] sm:$0xff]
        %v491 = vld [vmem:[%s446 + $0x160] sm:$0xff]
        %v492 = vld [vmem:[%s446 + $0x168] sm:$0xff]
        %v493 = vld [vmem:[%s446 + $0x170] sm:$0xff]
        %v494 = vld [vmem:[%s446 + $0x178] sm:$0xff]
        %s495 = scalar_lea.vmem %s1, 768
        %v496 = vld [vmem:[%s495] sm:$0xff]
        %v497 = vld [vmem:[%s495 + $0x8] sm:$0xff]
        %v498 = vld [vmem:[%s495 + $0x10] sm:$0xff]
        %v499 = vld [vmem:[%s495 + $0x18] sm:$0xff]
        %v500 = vld [vmem:[%s495 + $0x20] sm:$0xff]
        %v501 = vld [vmem:[%s495 + $0x28] sm:$0xff]
        %v502 = vld [vmem:[%s495 + $0x30] sm:$0xff]
        %v503 = vld [vmem:[%s495 + $0x38] sm:$0xff]
        %v504 = vld [vmem:[%s495 + $0x40] sm:$0xff]
        %v505 = vld [vmem:[%s495 + $0x48] sm:$0xff]
        %v506 = vld [vmem:[%s495 + $0x50] sm:$0xff]
        %v507 = vld [vmem:[%s495 + $0x58] sm:$0xff]
        %v508 = vld [vmem:[%s495 + $0x60] sm:$0xff]
        %v509 = vld [vmem:[%s495 + $0x68] sm:$0xff]
        %v510 = vld [vmem:[%s495 + $0x70] sm:$0xff]
        %v511 = vld [vmem:[%s495 + $0x78] sm:$0xff]
        %v512 = vld [vmem:[%s495 + $0x80] sm:$0xff]
        %v513 = vld [vmem:[%s495 + $0x88] sm:$0xff]
        %v514 = vld [vmem:[%s495 + $0x90] sm:$0xff]
        %v515 = vld [vmem:[%s495 + $0x98] sm:$0xff]
        %v516 = vld [vmem:[%s495 + $0xa0] sm:$0xff]
        %v517 = vld [vmem:[%s495 + $0xa8] sm:$0xff]
        %v518 = vld [vmem:[%s495 + $0xb0] sm:$0xff]
        %v519 = vld [vmem:[%s495 + $0xb8] sm:$0xff]
        %v520 = vld [vmem:[%s495 + $0xc0] sm:$0xff]
        %v521 = vld [vmem:[%s495 + $0xc8] sm:$0xff]
        %v522 = vld [vmem:[%s495 + $0xd0] sm:$0xff]
        %v523 = vld [vmem:[%s495 + $0xd8] sm:$0xff]
        %v524 = vld [vmem:[%s495 + $0xe0] sm:$0xff]
        %v525 = vld [vmem:[%s495 + $0xe8] sm:$0xff]
        %v526 = vld [vmem:[%s495 + $0xf0] sm:$0xff]
        %v527 = vld [vmem:[%s495 + $0xf8] sm:$0xff]
        %v528 = vld [vmem:[%s495 + $0x100] sm:$0xff]
        %v529 = vld [vmem:[%s495 + $0x108] sm:$0xff]
        %v530 = vld [vmem:[%s495 + $0x110] sm:$0xff]
        %v531 = vld [vmem:[%s495 + $0x118] sm:$0xff]
        %v532 = vld [vmem:[%s495 + $0x120] sm:$0xff]
        %v533 = vld [vmem:[%s495 + $0x128] sm:$0xff]
        %v534 = vld [vmem:[%s495 + $0x130] sm:$0xff]
        %v535 = vld [vmem:[%s495 + $0x138] sm:$0xff]
        %v536 = vld [vmem:[%s495 + $0x140] sm:$0xff]
        %v537 = vld [vmem:[%s495 + $0x148] sm:$0xff]
        %v538 = vld [vmem:[%s495 + $0x150] sm:$0xff]
        %v539 = vld [vmem:[%s495 + $0x158] sm:$0xff]
        %v540 = vld [vmem:[%s495 + $0x160] sm:$0xff]
        %v541 = vld [vmem:[%s495 + $0x168] sm:$0xff]
        %v542 = vld [vmem:[%s495 + $0x170] sm:$0xff]
        %v543 = vld [vmem:[%s495 + $0x178] sm:$0xff]
        %v544 = vld [vmem:[%s495 + $0x180] sm:$0xff]
        %v545 = vld [vmem:[%s495 + $0x188] sm:$0xff]
        %v546 = vld [vmem:[%s495 + $0x190] sm:$0xff]
        %v547 = vld [vmem:[%s495 + $0x198] sm:$0xff]
        %v548 = vld [vmem:[%s495 + $0x1a0] sm:$0xff]
        %v549 = vld [vmem:[%s495 + $0x1a8] sm:$0xff]
        %v550 = vld [vmem:[%s495 + $0x1b0] sm:$0xff]
        %v551 = vld [vmem:[%s495 + $0x1b8] sm:$0xff]
        %v552 = vld [vmem:[%s495 + $0x1c0] sm:$0xff]
        %v553 = vld [vmem:[%s495 + $0x1c8] sm:$0xff]
        %v554 = vld [vmem:[%s495 + $0x1d0] sm:$0xff]
        %v555 = vld [vmem:[%s495 + $0x1d8] sm:$0xff]
        %v556 = vld [vmem:[%s495 + $0x1e0] sm:$0xff]
        %v557 = vld [vmem:[%s495 + $0x1e8] sm:$0xff]
        %v558 = vld [vmem:[%s495 + $0x1f0] sm:$0xff]
        %v559 = vld [vmem:[%s495 + $0x1f8] sm:$0xff]
        %v560 = vld [vmem:[%s495 + $0x200] sm:$0xff]
        %v561 = vld [vmem:[%s495 + $0x208] sm:$0xff]
        %v562 = vld [vmem:[%s495 + $0x210] sm:$0xff]
        %v563 = vld [vmem:[%s495 + $0x218] sm:$0xff]
        %v564 = vld [vmem:[%s495 + $0x220] sm:$0xff]
        %v565 = vld [vmem:[%s495 + $0x228] sm:$0xff]
        %v566 = vld [vmem:[%s495 + $0x230] sm:$0xff]
        %v567 = vld [vmem:[%s495 + $0x238] sm:$0xff]
        %v568 = vld [vmem:[%s495 + $0x240] sm:$0xff]
        %v569 = vld [vmem:[%s495 + $0x248] sm:$0xff]
        %v570 = vld [vmem:[%s495 + $0x250] sm:$0xff]
        %v571 = vld [vmem:[%s495 + $0x258] sm:$0xff]
        %v572 = vld [vmem:[%s495 + $0x260] sm:$0xff]
        %v573 = vld [vmem:[%s495 + $0x268] sm:$0xff]
        %v574 = vld [vmem:[%s495 + $0x270] sm:$0xff]
        %v575 = vld [vmem:[%s495 + $0x278] sm:$0xff]
        %v576 = vld [vmem:[%s495 + $0x280] sm:$0xff]
        %v577 = vld [vmem:[%s495 + $0x288] sm:$0xff]
        %v578 = vld [vmem:[%s495 + $0x290] sm:$0xff]
        %v579 = vld [vmem:[%s495 + $0x298] sm:$0xff]
        %v580 = vld [vmem:[%s495 + $0x2a0] sm:$0xff]
        %v581 = vld [vmem:[%s495 + $0x2a8] sm:$0xff]
        %v582 = vld [vmem:[%s495 + $0x2b0] sm:$0xff]
        %v583 = vld [vmem:[%s495 + $0x2b8] sm:$0xff]
        %v584 = vld [vmem:[%s495 + $0x2c0] sm:$0xff]
        %v585 = vld [vmem:[%s495 + $0x2c8] sm:$0xff]
        %v586 = vld [vmem:[%s495 + $0x2d0] sm:$0xff]
        %v587 = vld [vmem:[%s495 + $0x2d8] sm:$0xff]
        %v588 = vld [vmem:[%s495 + $0x2e0] sm:$0xff]
        %v589 = vld [vmem:[%s495 + $0x2e8] sm:$0xff]
        %v590 = vld [vmem:[%s495 + $0x2f0] sm:$0xff]
        %v591 = vld [vmem:[%s495 + $0x2f8] sm:$0xff]
        %v640 = vunpack.c.l.b16 %v447
        %v641 = vunpack.c.h.b16 %v447
        %v642 = vunpack.c.l.b16 %v448
        %v643 = vunpack.c.h.b16 %v448
        %v644 = vunpack.c.l.b16 %v449
        %v645 = vunpack.c.h.b16 %v449
        %v646 = vunpack.c.l.b16 %v450
        %v647 = vunpack.c.h.b16 %v450
        %v648 = vunpack.c.l.b16 %v451
        %v649 = vunpack.c.h.b16 %v451
        %v650 = vunpack.c.l.b16 %v452
        %v651 = vunpack.c.h.b16 %v452
        %v652 = vunpack.c.l.b16 %v453
        %v653 = vunpack.c.h.b16 %v453
        %v654 = vunpack.c.l.b16 %v454
        %v655 = vunpack.c.h.b16 %v454
        %v656 = vunpack.c.l.b16 %v455
        %v657 = vunpack.c.h.b16 %v455
        %v658 = vunpack.c.l.b16 %v456
        %v659 = vunpack.c.h.b16 %v456
        %v660 = vunpack.c.l.b16 %v457
        %v661 = vunpack.c.h.b16 %v457
        %v662 = vunpack.c.l.b16 %v458
        %v663 = vunpack.c.h.b16 %v458
        %v664 = vunpack.c.l.b16 %v459
        %v665 = vunpack.c.h.b16 %v459
        %v666 = vunpack.c.l.b16 %v460
        %v667 = vunpack.c.h.b16 %v460
        %v668 = vunpack.c.l.b16 %v461
        %v669 = vunpack.c.h.b16 %v461
        %v670 = vunpack.c.l.b16 %v462
        %v671 = vunpack.c.h.b16 %v462
        %v672 = vunpack.c.l.b16 %v463
        %v673 = vunpack.c.h.b16 %v463
        %v674 = vunpack.c.l.b16 %v464
        %v675 = vunpack.c.h.b16 %v464
        %v676 = vunpack.c.l.b16 %v465
        %v677 = vunpack.c.h.b16 %v465
        %v678 = vunpack.c.l.b16 %v466
        %v679 = vunpack.c.h.b16 %v466
        %v680 = vunpack.c.l.b16 %v467
        %v681 = vunpack.c.h.b16 %v467
        %v682 = vunpack.c.l.b16 %v468
        %v683 = vunpack.c.h.b16 %v468
        %v684 = vunpack.c.l.b16 %v469
        %v685 = vunpack.c.h.b16 %v469
        %v686 = vunpack.c.l.b16 %v470
        %v687 = vunpack.c.h.b16 %v470
        %v688 = vunpack.c.l.b16 %v471
        %v689 = vunpack.c.h.b16 %v471
        %v690 = vunpack.c.l.b16 %v472
        %v691 = vunpack.c.h.b16 %v472
        %v692 = vunpack.c.l.b16 %v473
        %v693 = vunpack.c.h.b16 %v473
        %v694 = vunpack.c.l.b16 %v474
        %v695 = vunpack.c.h.b16 %v474
        %v696 = vunpack.c.l.b16 %v475
        %v697 = vunpack.c.h.b16 %v475
        %v698 = vunpack.c.l.b16 %v476
        %v699 = vunpack.c.h.b16 %v476
        %v700 = vunpack.c.l.b16 %v477
        %v701 = vunpack.c.h.b16 %v477
        %v702 = vunpack.c.l.b16 %v478
        %v703 = vunpack.c.h.b16 %v478
        %v704 = vunpack.c.l.b16 %v479
        %v705 = vunpack.c.h.b16 %v479
        %v706 = vunpack.c.l.b16 %v480
        %v707 = vunpack.c.h.b16 %v480
        %v708 = vunpack.c.l.b16 %v481
        %v709 = vunpack.c.h.b16 %v481
        %v710 = vunpack.c.l.b16 %v482
        %v711 = vunpack.c.h.b16 %v482
        %v712 = vunpack.c.l.b16 %v483
        %v713 = vunpack.c.h.b16 %v483
        %v714 = vunpack.c.l.b16 %v484
        %v715 = vunpack.c.h.b16 %v484
        %v716 = vunpack.c.l.b16 %v485
        %v717 = vunpack.c.h.b16 %v485
        %v718 = vunpack.c.l.b16 %v486
        %v719 = vunpack.c.h.b16 %v486
        %v720 = vunpack.c.l.b16 %v487
        %v721 = vunpack.c.h.b16 %v487
        %v722 = vunpack.c.l.b16 %v488
        %v723 = vunpack.c.h.b16 %v488
        %v724 = vunpack.c.l.b16 %v489
        %v725 = vunpack.c.h.b16 %v489
        %v726 = vunpack.c.l.b16 %v490
        %v727 = vunpack.c.h.b16 %v490
        %v728 = vunpack.c.l.b16 %v491
        %v729 = vunpack.c.h.b16 %v491
        %v730 = vunpack.c.l.b16 %v492
        %v731 = vunpack.c.h.b16 %v492
        %v732 = vunpack.c.l.b16 %v493
        %v733 = vunpack.c.h.b16 %v493
        %v734 = vunpack.c.l.b16 %v494
        %v735 = vunpack.c.h.b16 %v494
        %v736 = vpack.c.b16 %v646, %v640
        %v737 = vpack.c.b16 %v647, %v641
        %v738 = vpack.c.b16 %v648, %v642
        %v739 = vpack.c.b16 %v649, %v643
        %v740 = vpack.c.b16 %v650, %v644
        %v741 = vpack.c.b16 %v651, %v645
        %v742 = vpack.c.b16 %v658, %v652
        %v743 = vpack.c.b16 %v659, %v653
        %v744 = vpack.c.b16 %v660, %v654
        %v745 = vpack.c.b16 %v661, %v655
        %v746 = vpack.c.b16 %v662, %v656
        %v747 = vpack.c.b16 %v663, %v657
        %v748 = vpack.c.b16 %v670, %v664
        %v749 = vpack.c.b16 %v671, %v665
        %v750 = vpack.c.b16 %v672, %v666
        %v751 = vpack.c.b16 %v673, %v667
        %v752 = vpack.c.b16 %v674, %v668
        %v753 = vpack.c.b16 %v675, %v669
        %v754 = vpack.c.b16 %v682, %v676
        %v755 = vpack.c.b16 %v683, %v677
        %v756 = vpack.c.b16 %v684, %v678
        %v757 = vpack.c.b16 %v685, %v679
        %v758 = vpack.c.b16 %v686, %v680
        %v759 = vpack.c.b16 %v687, %v681
        %v760 = vpack.c.b16 %v694, %v688
        %v761 = vpack.c.b16 %v695, %v689
        %v762 = vpack.c.b16 %v696, %v690
        %v763 = vpack.c.b16 %v697, %v691
        %v764 = vpack.c.b16 %v698, %v692
        %v765 = vpack.c.b16 %v699, %v693
        %v766 = vpack.c.b16 %v706, %v700
        %v767 = vpack.c.b16 %v707, %v701
        %v768 = vpack.c.b16 %v708, %v702
        %v769 = vpack.c.b16 %v709, %v703
        %v770 = vpack.c.b16 %v710, %v704
        %v771 = vpack.c.b16 %v711, %v705
        %v772 = vpack.c.b16 %v718, %v712
        %v773 = vpack.c.b16 %v719, %v713
        %v774 = vpack.c.b16 %v720, %v714
        %v775 = vpack.c.b16 %v721, %v715
        %v776 = vpack.c.b16 %v722, %v716
        %v777 = vpack.c.b16 %v723, %v717
        %v778 = vpack.c.b16 %v730, %v724
        %v779 = vpack.c.b16 %v731, %v725
        %v780 = vpack.c.b16 %v732, %v726
        %v781 = vpack.c.b16 %v733, %v727
        %v782 = vpack.c.b16 %v734, %v728
        %v783 = vpack.c.b16 %v735, %v729
        %v928 = vunpack.c.l.b16 %v496
        %v929 = vunpack.c.h.b16 %v496
        %v930 = vunpack.c.l.b16 %v497
        %v931 = vunpack.c.h.b16 %v497
        %v932 = vunpack.c.l.b16 %v498
        %v933 = vunpack.c.h.b16 %v498
        %v934 = vunpack.c.l.b16 %v499
        %v935 = vunpack.c.h.b16 %v499
        %v936 = vunpack.c.l.b16 %v500
        %v937 = vunpack.c.h.b16 %v500
        %v938 = vunpack.c.l.b16 %v501
        %v939 = vunpack.c.h.b16 %v501
        %v940 = vunpack.c.l.b16 %v502
        %v941 = vunpack.c.h.b16 %v502
        %v942 = vunpack.c.l.b16 %v503
        %v943 = vunpack.c.h.b16 %v503
        %v944 = vunpack.c.l.b16 %v504
        %v945 = vunpack.c.h.b16 %v504
        %v946 = vunpack.c.l.b16 %v505
        %v947 = vunpack.c.h.b16 %v505
        %v948 = vunpack.c.l.b16 %v506
        %v949 = vunpack.c.h.b16 %v506
        %v950 = vunpack.c.l.b16 %v507
        %v951 = vunpack.c.h.b16 %v507
        %v952 = vunpack.c.l.b16 %v508
        %v953 = vunpack.c.h.b16 %v508
        %v954 = vunpack.c.l.b16 %v509
        %v955 = vunpack.c.h.b16 %v509
        %v956 = vunpack.c.l.b16 %v510
        %v957 = vunpack.c.h.b16 %v510
        %v958 = vunpack.c.l.b16 %v511
        %v959 = vunpack.c.h.b16 %v511
        %v960 = vunpack.c.l.b16 %v512
        %v961 = vunpack.c.h.b16 %v512
        %v962 = vunpack.c.l.b16 %v513
        %v963 = vunpack.c.h.b16 %v513
        %v964 = vunpack.c.l.b16 %v514
        %v965 = vunpack.c.h.b16 %v514
        %v966 = vunpack.c.l.b16 %v515
        %v967 = vunpack.c.h.b16 %v515
        %v968 = vunpack.c.l.b16 %v516
        %v969 = vunpack.c.h.b16 %v516
        %v970 = vunpack.c.l.b16 %v517
        %v971 = vunpack.c.h.b16 %v517
        %v972 = vunpack.c.l.b16 %v518
        %v973 = vunpack.c.h.b16 %v518
        %v974 = vunpack.c.l.b16 %v519
        %v975 = vunpack.c.h.b16 %v519
        %v976 = vunpack.c.l.b16 %v520
        %v977 = vunpack.c.h.b16 %v520
        %v978 = vunpack.c.l.b16 %v521
        %v979 = vunpack.c.h.b16 %v521
        %v980 = vunpack.c.l.b16 %v522
        %v981 = vunpack.c.h.b16 %v522
        %v982 = vunpack.c.l.b16 %v523
        %v983 = vunpack.c.h.b16 %v523
        %v984 = vunpack.c.l.b16 %v524
        %v985 = vunpack.c.h.b16 %v524
        %v986 = vunpack.c.l.b16 %v525
        %v987 = vunpack.c.h.b16 %v525
        %v988 = vunpack.c.l.b16 %v526
        %v989 = vunpack.c.h.b16 %v526
        %v990 = vunpack.c.l.b16 %v527
        %v991 = vunpack.c.h.b16 %v527
        %v992 = vunpack.c.l.b16 %v528
        %v993 = vunpack.c.h.b16 %v528
        %v994 = vunpack.c.l.b16 %v529
        %v995 = vunpack.c.h.b16 %v529
        %v996 = vunpack.c.l.b16 %v530
        %v997 = vunpack.c.h.b16 %v530
        %v998 = vunpack.c.l.b16 %v531
        %v999 = vunpack.c.h.b16 %v531
        %v1000 = vunpack.c.l.b16 %v532
        %v1001 = vunpack.c.h.b16 %v532
        %v1002 = vunpack.c.l.b16 %v533
        %v1003 = vunpack.c.h.b16 %v533
        %v1004 = vunpack.c.l.b16 %v534
        %v1005 = vunpack.c.h.b16 %v534
        %v1006 = vunpack.c.l.b16 %v535
        %v1007 = vunpack.c.h.b16 %v535
        %v1008 = vunpack.c.l.b16 %v536
        %v1009 = vunpack.c.h.b16 %v536
        %v1010 = vunpack.c.l.b16 %v537
        %v1011 = vunpack.c.h.b16 %v537
        %v1012 = vunpack.c.l.b16 %v538
        %v1013 = vunpack.c.h.b16 %v538
        %v1014 = vunpack.c.l.b16 %v539
        %v1015 = vunpack.c.h.b16 %v539
        %v1016 = vunpack.c.l.b16 %v540
        %v1017 = vunpack.c.h.b16 %v540
        %v1018 = vunpack.c.l.b16 %v541
        %v1019 = vunpack.c.h.b16 %v541
        %v1020 = vunpack.c.l.b16 %v542
        %v1021 = vunpack.c.h.b16 %v542
        %v1022 = vunpack.c.l.b16 %v543
        %v1023 = vunpack.c.h.b16 %v543
        %v1024 = vunpack.c.l.b16 %v544
        %v1025 = vunpack.c.h.b16 %v544
        %v1026 = vunpack.c.l.b16 %v545
        %v1027 = vunpack.c.h.b16 %v545
        %v1028 = vunpack.c.l.b16 %v546
        %v1029 = vunpack.c.h.b16 %v546
        %v1030 = vunpack.c.l.b16 %v547
        %v1031 = vunpack.c.h.b16 %v547
        %v1032 = vunpack.c.l.b16 %v548
        %v1033 = vunpack.c.h.b16 %v548
        %v1034 = vunpack.c.l.b16 %v549
        %v1035 = vunpack.c.h.b16 %v549
        %v1036 = vunpack.c.l.b16 %v550
        %v1037 = vunpack.c.h.b16 %v550
        %v1038 = vunpack.c.l.b16 %v551
        %v1039 = vunpack.c.h.b16 %v551
        %v1040 = vunpack.c.l.b16 %v552
        %v1041 = vunpack.c.h.b16 %v552
        %v1042 = vunpack.c.l.b16 %v553
        %v1043 = vunpack.c.h.b16 %v553
        %v1044 = vunpack.c.l.b16 %v554
        %v1045 = vunpack.c.h.b16 %v554
        %v1046 = vunpack.c.l.b16 %v555
        %v1047 = vunpack.c.h.b16 %v555
        %v1048 = vunpack.c.l.b16 %v556
        %v1049 = vunpack.c.h.b16 %v556
        %v1050 = vunpack.c.l.b16 %v557
        %v1051 = vunpack.c.h.b16 %v557
        %v1052 = vunpack.c.l.b16 %v558
        %v1053 = vunpack.c.h.b16 %v558
        %v1054 = vunpack.c.l.b16 %v559
        %v1055 = vunpack.c.h.b16 %v559
        %v1056 = vunpack.c.l.b16 %v560
        %v1057 = vunpack.c.h.b16 %v560
        %v1058 = vunpack.c.l.b16 %v561
        %v1059 = vunpack.c.h.b16 %v561
        %v1060 = vunpack.c.l.b16 %v562
        %v1061 = vunpack.c.h.b16 %v562
        %v1062 = vunpack.c.l.b16 %v563
        %v1063 = vunpack.c.h.b16 %v563
        %v1064 = vunpack.c.l.b16 %v564
        %v1065 = vunpack.c.h.b16 %v564
        %v1066 = vunpack.c.l.b16 %v565
        %v1067 = vunpack.c.h.b16 %v565
        %v1068 = vunpack.c.l.b16 %v566
        %v1069 = vunpack.c.h.b16 %v566
        %v1070 = vunpack.c.l.b16 %v567
        %v1071 = vunpack.c.h.b16 %v567
        %v1072 = vunpack.c.l.b16 %v568
        %v1073 = vunpack.c.h.b16 %v568
        %v1074 = vunpack.c.l.b16 %v569
        %v1075 = vunpack.c.h.b16 %v569
        %v1076 = vunpack.c.l.b16 %v570
        %v1077 = vunpack.c.h.b16 %v570
        %v1078 = vunpack.c.l.b16 %v571
        %v1079 = vunpack.c.h.b16 %v571
        %v1080 = vunpack.c.l.b16 %v572
        %v1081 = vunpack.c.h.b16 %v572
        %v1082 = vunpack.c.l.b16 %v573
        %v1083 = vunpack.c.h.b16 %v573
        %v1084 = vunpack.c.l.b16 %v574
        %v1085 = vunpack.c.h.b16 %v574
        %v1086 = vunpack.c.l.b16 %v575
        %v1087 = vunpack.c.h.b16 %v575
        %v1088 = vunpack.c.l.b16 %v576
        %v1089 = vunpack.c.h.b16 %v576
        %v1090 = vunpack.c.l.b16 %v577
        %v1091 = vunpack.c.h.b16 %v577
        %v1092 = vunpack.c.l.b16 %v578
        %v1093 = vunpack.c.h.b16 %v578
        %v1094 = vunpack.c.l.b16 %v579
        %v1095 = vunpack.c.h.b16 %v579
        %v1096 = vunpack.c.l.b16 %v580
        %v1097 = vunpack.c.h.b16 %v580
        %v1098 = vunpack.c.l.b16 %v581
        %v1099 = vunpack.c.h.b16 %v581
        %v1100 = vunpack.c.l.b16 %v582
        %v1101 = vunpack.c.h.b16 %v582
        %v1102 = vunpack.c.l.b16 %v583
        %v1103 = vunpack.c.h.b16 %v583
        %v1104 = vunpack.c.l.b16 %v584
        %v1105 = vunpack.c.h.b16 %v584
        %v1106 = vunpack.c.l.b16 %v585
        %v1107 = vunpack.c.h.b16 %v585
        %v1108 = vunpack.c.l.b16 %v586
        %v1109 = vunpack.c.h.b16 %v586
        %v1110 = vunpack.c.l.b16 %v587
        %v1111 = vunpack.c.h.b16 %v587
        %v1112 = vunpack.c.l.b16 %v588
        %v1113 = vunpack.c.h.b16 %v588
        %v1114 = vunpack.c.l.b16 %v589
        %v1115 = vunpack.c.h.b16 %v589
        %v1116 = vunpack.c.l.b16 %v590
        %v1117 = vunpack.c.h.b16 %v590
        %v1118 = vunpack.c.l.b16 %v591
        %v1119 = vunpack.c.h.b16 %v591
        %v1120 = vpack.c.b16 %v930, %v928
        %v1121 = vpack.c.b16 %v931, %v929
        %v1122 = vpack.c.b16 %v934, %v932
        %v1123 = vpack.c.b16 %v935, %v933
        %v1124 = vpack.c.b16 %v938, %v936
        %v1125 = vpack.c.b16 %v939, %v937
        %v1126 = vpack.c.b16 %v942, %v940
        %v1127 = vpack.c.b16 %v943, %v941
        %v1128 = vpack.c.b16 %v946, %v944
        %v1129 = vpack.c.b16 %v947, %v945
        %v1130 = vpack.c.b16 %v950, %v948
        %v1131 = vpack.c.b16 %v951, %v949
        %v1132 = vpack.c.b16 %v954, %v952
        %v1133 = vpack.c.b16 %v955, %v953
        %v1134 = vpack.c.b16 %v958, %v956
        %v1135 = vpack.c.b16 %v959, %v957
        %v1136 = vpack.c.b16 %v962, %v960
        %v1137 = vpack.c.b16 %v963, %v961
        %v1138 = vpack.c.b16 %v966, %v964
        %v1139 = vpack.c.b16 %v967, %v965
        %v1140 = vpack.c.b16 %v970, %v968
        %v1141 = vpack.c.b16 %v971, %v969
        %v1142 = vpack.c.b16 %v974, %v972
        %v1143 = vpack.c.b16 %v975, %v973
        %v1144 = vpack.c.b16 %v978, %v976
        %v1145 = vpack.c.b16 %v979, %v977
        %v1146 = vpack.c.b16 %v982, %v980
        %v1147 = vpack.c.b16 %v983, %v981
        %v1148 = vpack.c.b16 %v986, %v984
        %v1149 = vpack.c.b16 %v987, %v985
        %v1150 = vpack.c.b16 %v990, %v988
        %v1151 = vpack.c.b16 %v991, %v989
        %v1152 = vpack.c.b16 %v994, %v992
        %v1153 = vpack.c.b16 %v995, %v993
        %v1154 = vpack.c.b16 %v998, %v996
        %v1155 = vpack.c.b16 %v999, %v997
        %v1156 = vpack.c.b16 %v1002, %v1000
        %v1157 = vpack.c.b16 %v1003, %v1001
        %v1158 = vpack.c.b16 %v1006, %v1004
        %v1159 = vpack.c.b16 %v1007, %v1005
        %v1160 = vpack.c.b16 %v1010, %v1008
        %v1161 = vpack.c.b16 %v1011, %v1009
        %v1162 = vpack.c.b16 %v1014, %v1012
        %v1163 = vpack.c.b16 %v1015, %v1013
        %v1164 = vpack.c.b16 %v1018, %v1016
        %v1165 = vpack.c.b16 %v1019, %v1017
        %v1166 = vpack.c.b16 %v1022, %v1020
        %v1167 = vpack.c.b16 %v1023, %v1021
        %v1168 = vpack.c.b16 %v1026, %v1024
        %v1169 = vpack.c.b16 %v1027, %v1025
        %v1170 = vpack.c.b16 %v1030, %v1028
        %v1171 = vpack.c.b16 %v1031, %v1029
        %v1172 = vpack.c.b16 %v1034, %v1032
        %v1173 = vpack.c.b16 %v1035, %v1033
        %v1174 = vpack.c.b16 %v1038, %v1036
        %v1175 = vpack.c.b16 %v1039, %v1037
        %v1176 = vpack.c.b16 %v1042, %v1040
        %v1177 = vpack.c.b16 %v1043, %v1041
        %v1178 = vpack.c.b16 %v1046, %v1044
        %v1179 = vpack.c.b16 %v1047, %v1045
        %v1180 = vpack.c.b16 %v1050, %v1048
        %v1181 = vpack.c.b16 %v1051, %v1049
        %v1182 = vpack.c.b16 %v1054, %v1052
        %v1183 = vpack.c.b16 %v1055, %v1053
        %v1184 = vpack.c.b16 %v1058, %v1056
        %v1185 = vpack.c.b16 %v1059, %v1057
        %v1186 = vpack.c.b16 %v1062, %v1060
        %v1187 = vpack.c.b16 %v1063, %v1061
        %v1188 = vpack.c.b16 %v1066, %v1064
        %v1189 = vpack.c.b16 %v1067, %v1065
        %v1190 = vpack.c.b16 %v1070, %v1068
        %v1191 = vpack.c.b16 %v1071, %v1069
        %v1192 = vpack.c.b16 %v1074, %v1072
        %v1193 = vpack.c.b16 %v1075, %v1073
        %v1194 = vpack.c.b16 %v1078, %v1076
        %v1195 = vpack.c.b16 %v1079, %v1077
        %v1196 = vpack.c.b16 %v1082, %v1080
        %v1197 = vpack.c.b16 %v1083, %v1081
        %v1198 = vpack.c.b16 %v1086, %v1084
        %v1199 = vpack.c.b16 %v1087, %v1085
        %v1200 = vpack.c.b16 %v1090, %v1088
        %v1201 = vpack.c.b16 %v1091, %v1089
        %v1202 = vpack.c.b16 %v1094, %v1092
        %v1203 = vpack.c.b16 %v1095, %v1093
        %v1204 = vpack.c.b16 %v1098, %v1096
        %v1205 = vpack.c.b16 %v1099, %v1097
        %v1206 = vpack.c.b16 %v1102, %v1100
        %v1207 = vpack.c.b16 %v1103, %v1101
        %v1208 = vpack.c.b16 %v1106, %v1104
        %v1209 = vpack.c.b16 %v1107, %v1105
        %v1210 = vpack.c.b16 %v1110, %v1108
        %v1211 = vpack.c.b16 %v1111, %v1109
        %v1212 = vpack.c.b16 %v1114, %v1112
        %v1213 = vpack.c.b16 %v1115, %v1113
        %v1214 = vpack.c.b16 %v1118, %v1116
        %v1215 = vpack.c.b16 %v1119, %v1117
        %1312 = vmatprep.subr.bf16.mxu0 %v1121
        %1313 = vmatpush1.bf16.msra.mxu0 %v1120
        %1314 = vmatprep.subr.bf16.mxu0 %v1123
        %1315 = vmatpush1.bf16.msra.mxu0 %v1122
        %1316 = vmatprep.subr.bf16.mxu0 %v1125
        %1317 = vmatpush1.bf16.msra.mxu0 %v1124
        %1318 = vmatprep.subr.bf16.mxu0 %v1127
        %1319 = vmatpush1.bf16.msra.mxu0 %v1126
        %1320 = vmatprep.subr.bf16.mxu0 %v1129
        %1321 = vmatpush1.bf16.msra.mxu0 %v1128
        %1322 = vmatprep.subr.bf16.mxu0 %v1131
        %1323 = vmatpush1.bf16.msra.mxu0 %v1130
        %1324 = vmatprep.subr.bf16.mxu0 %v1133
        %1325 = vmatpush1.bf16.msra.mxu0 %v1132
        %1326 = vmatprep.subr.bf16.mxu0 %v1135
        %1327 = vmatpush1.bf16.msra.mxu0 %v1134
        %1328 = vmatprep.subr.bf16.mxu0 %v1137
        %1329 = vmatpush1.bf16.msra.mxu0 %v1136
        %1330 = vmatprep.subr.bf16.mxu0 %v1139
        %1331 = vmatpush1.bf16.msra.mxu0 %v1138
        %1332 = vmatprep.subr.bf16.mxu0 %v1141
        %1333 = vmatpush1.bf16.msra.mxu0 %v1140
        %1334 = vmatprep.subr.bf16.mxu0 %v1143
        %1335 = vmatpush1.bf16.msra.mxu0 %v1142
        %1336 = vmatprep.subr.bf16.mxu0 %v1145
        %1337 = vmatpush1.bf16.msra.mxu0 %v1144
        %1338 = vmatprep.subr.bf16.mxu0 %v1147
        %1339 = vmatpush1.bf16.msra.mxu0 %v1146
        %1340 = vmatprep.subr.bf16.mxu0 %v1149
        %1341 = vmatpush1.bf16.msra.mxu0 %v1148
        %1342 = vmatprep.subr.bf16.mxu0 %v1151
        %1343 = vmatpush1.bf16.msra.mxu0 %v1150
        %1344 = vmatprep.mubr.bf16.mxu0 %v737
        %1345 = vmatmul.mubr.bf16.gmra.mrb[0].mxu0 %v736
        %v1346 = vpop.f32.mrb[0].mxu0
        %v1347 = vadd.f32 0.0, %v1346
        %v1348 = vpop.f32.mrb[0].mxu0
        %v1349 = vadd.f32 0.0, %v1348
        %v1350 = vpop.f32.mrb[0].mxu0
        %v1351 = vadd.f32 0.0, %v1350
        %v1352 = vpop.f32.mrb[0].mxu0
        %v1353 = vadd.f32 0.0, %v1352
        %1354 = vmatprep.mubr.bf16.mxu0 %v743
        %1355 = vmatmul.mubr.bf16.gmra.mrb[0].mxu0 %v742
        %v1356 = vpop.f32.mrb[0].mxu0
        %v1357 = vadd.f32 0.0, %v1356
        %v1358 = vpop.f32.mrb[0].mxu0
        %v1359 = vadd.f32 0.0, %v1358
        %v1360 = vpop.f32.mrb[0].mxu0
        %v1361 = vadd.f32 0.0, %v1360
        %v1362 = vpop.f32.mrb[0].mxu0
        %v1363 = vadd.f32 0.0, %v1362
        %1364 = vmatprep.mubr.bf16.mxu0 %v749
        %1365 = vmatmul.mubr.bf16.gmra.mrb[0].mxu0 %v748
        %v1366 = vpop.f32.mrb[0].mxu0
        %v1367 = vadd.f32 0.0, %v1366
        %v1368 = vpop.f32.mrb[0].mxu0
        %v1369 = vadd.f32 0.0, %v1368
        %v1370 = vpop.f32.mrb[0].mxu0
        %v1371 = vadd.f32 0.0, %v1370
        %v1372 = vpop.f32.mrb[0].mxu0
        %v1373 = vadd.f32 0.0, %v1372
        %1374 = vmatprep.mubr.bf16.mxu0 %v755
        %1375 = vmatmul.mubr.bf16.gmra.mrb[0].mxu0 %v754
        %v1376 = vpop.f32.mrb[0].mxu0
        %v1377 = vadd.f32 0.0, %v1376
        %v1378 = vpop.f32.mrb[0].mxu0
        %v1379 = vadd.f32 0.0, %v1378
        %v1380 = vpop.f32.mrb[0].mxu0
        %v1381 = vadd.f32 0.0, %v1380
        %v1382 = vpop.f32.mrb[0].mxu0
        %v1383 = vadd.f32 0.0, %v1382
        %1384 = vmatprep.mubr.bf16.mxu0 %v761
        %1385 = vmatmul.mubr.bf16.gmra.mrb[0].mxu0 %v760
        %v1386 = vpop.f32.mrb[0].mxu0
        %v1387 = vadd.f32 0.0, %v1386
        %v1388 = vpop.f32.mrb[0].mxu0
        %v1389 = vadd.f32 0.0, %v1388
        %v1390 = vpop.f32.mrb[0].mxu0
        %v1391 = vadd.f32 0.0, %v1390
        %v1392 = vpop.f32.mrb[0].mxu0
        %v1393 = vadd.f32 0.0, %v1392
        %1394 = vmatprep.mubr.bf16.mxu0 %v767
        %1395 = vmatmul.mubr.bf16.gmra.mrb[0].mxu0 %v766
        %v1396 = vpop.f32.mrb[0].mxu0
        %v1397 = vadd.f32 0.0, %v1396
        %v1398 = vpop.f32.mrb[0].mxu0
        %v1399 = vadd.f32 0.0, %v1398
        %v1400 = vpop.f32.mrb[0].mxu0
        %v1401 = vadd.f32 0.0, %v1400
        %v1402 = vpop.f32.mrb[0].mxu0
        %v1403 = vadd.f32 0.0, %v1402
        %1404 = vmatprep.mubr.bf16.mxu0 %v773
        %1405 = vmatmul.mubr.bf16.gmra.mrb[0].mxu0 %v772
        %v1406 = vpop.f32.mrb[0].mxu0
        %v1407 = vadd.f32 0.0, %v1406
        %v1408 = vpop.f32.mrb[0].mxu0
        %v1409 = vadd.f32 0.0, %v1408
        %v1410 = vpop.f32.mrb[0].mxu0
        %v1411 = vadd.f32 0.0, %v1410
        %v1412 = vpop.f32.mrb[0].mxu0
        %v1413 = vadd.f32 0.0, %v1412
        %1414 = vmatprep.mubr.bf16.mxu0 %v779
        %1415 = vmatmul.mubr.bf16.gmra.mrb[0].mxu0 %v778
        %v1416 = vpop.f32.mrb[0].mxu0
        %v1417 = vadd.f32 0.0, %v1416
        %v1418 = vpop.f32.mrb[0].mxu0
        %v1419 = vadd.f32 0.0, %v1418
        %v1420 = vpop.f32.mrb[0].mxu0
        %v1421 = vadd.f32 0.0, %v1420
        %v1422 = vpop.f32.mrb[0].mxu0
        %v1423 = vadd.f32 0.0, %v1422
        %1424 = vdwg.mxu0
        %1425 = vmatprep.subr.bf16.mxu0 %v1153
        %1426 = vmatpush1.bf16.msra.mxu0 %v1152
        %1427 = vmatprep.subr.bf16.mxu0 %v1155
        %1428 = vmatpush1.bf16.msra.mxu0 %v1154
        %1429 = vmatprep.subr.bf16.mxu0 %v1157
        %1430 = vmatpush1.bf16.msra.mxu0 %v1156
        %1431 = vmatprep.subr.bf16.mxu0 %v1159
        %1432 = vmatpush1.bf16.msra.mxu0 %v1158
        %1433 = vmatprep.subr.bf16.mxu0 %v1161
        %1434 = vmatpush1.bf16.msra.mxu0 %v1160
        %1435 = vmatprep.subr.bf16.mxu0 %v1163
        %1436 = vmatpush1.bf16.msra.mxu0 %v1162
        %1437 = vmatprep.subr.bf16.mxu0 %v1165
        %1438 = vmatpush1.bf16.msra.mxu0 %v1164
        %1439 = vmatprep.subr.bf16.mxu0 %v1167
        %1440 = vmatpush1.bf16.msra.mxu0 %v1166
        %1441 = vmatprep.subr.bf16.mxu0 %v1169
        %1442 = vmatpush1.bf16.msra.mxu0 %v1168
        %1443 = vmatprep.subr.bf16.mxu0 %v1171
        %1444 = vmatpush1.bf16.msra.mxu0 %v1170
        %1445 = vmatprep.subr.bf16.mxu0 %v1173
        %1446 = vmatpush1.bf16.msra.mxu0 %v1172
        %1447 = vmatprep.subr.bf16.mxu0 %v1175
        %1448 = vmatpush1.bf16.msra.mxu0 %v1174
        %1449 = vmatprep.subr.bf16.mxu0 %v1177
        %1450 = vmatpush1.bf16.msra.mxu0 %v1176
        %1451 = vmatprep.subr.bf16.mxu0 %v1179
        %1452 = vmatpush1.bf16.msra.mxu0 %v1178
        %1453 = vmatprep.subr.bf16.mxu0 %v1181
        %1454 = vmatpush1.bf16.msra.mxu0 %v1180
        %1455 = vmatprep.subr.bf16.mxu0 %v1183
        %1456 = vmatpush1.bf16.msra.mxu0 %v1182
        %1457 = vmatprep.mubr.bf16.mxu0 %v739
        %1458 = vmatmul.mubr.bf16.gmra.mrb[0].mxu0 %v738
        %v1459 = vpop.f32.mrb[0].mxu0
        %v1460 = vadd.f32 %v1347, %v1459
        %v1461 = vpop.f32.mrb[0].mxu0
        %v1462 = vadd.f32 %v1349, %v1461
        %v1463 = vpop.f32.mrb[0].mxu0
        %v1464 = vadd.f32 %v1351, %v1463
        %v1465 = vpop.f32.mrb[0].mxu0
        %v1466 = vadd.f32 %v1353, %v1465
        %1467 = vmatprep.mubr.bf16.mxu0 %v745
        %1468 = vmatmul.mubr.bf16.gmra.mrb[0].mxu0 %v744
        %v1469 = vpop.f32.mrb[0].mxu0
        %v1470 = vadd.f32 %v1357, %v1469
        %v1471 = vpop.f32.mrb[0].mxu0
        %v1472 = vadd.f32 %v1359, %v1471
        %v1473 = vpop.f32.mrb[0].mxu0
        %v1474 = vadd.f32 %v1361, %v1473
        %v1475 = vpop.f32.mrb[0].mxu0
        %v1476 = vadd.f32 %v1363, %v1475
        %1477 = vmatprep.mubr.bf16.mxu0 %v751
        %1478 = vmatmul.mubr.bf16.gmra.mrb[0].mxu0 %v750
        %v1479 = vpop.f32.mrb[0].mxu0
        %v1480 = vadd.f32 %v1367, %v1479
        %v1481 = vpop.f32.mrb[0].mxu0
        %v1482 = vadd.f32 %v1369, %v1481
        %v1483 = vpop.f32.mrb[0].mxu0
        %v1484 = vadd.f32 %v1371, %v1483
        %v1485 = vpop.f32.mrb[0].mxu0
        %v1486 = vadd.f32 %v1373, %v1485
        %1487 = vmatprep.mubr.bf16.mxu0 %v757
        %1488 = vmatmul.mubr.bf16.gmra.mrb[0].mxu0 %v756
        %v1489 = vpop.f32.mrb[0].mxu0
        %v1490 = vadd.f32 %v1377, %v1489
        %v1491 = vpop.f32.mrb[0].mxu0
        %v1492 = vadd.f32 %v1379, %v1491
        %v1493 = vpop.f32.mrb[0].mxu0
        %v1494 = vadd.f32 %v1381, %v1493
        %v1495 = vpop.f32.mrb[0].mxu0
        %v1496 = vadd.f32 %v1383, %v1495
        %1497 = vmatprep.mubr.bf16.mxu0 %v763
        %1498 = vmatmul.mubr.bf16.gmra.mrb[0].mxu0 %v762
        %v1499 = vpop.f32.mrb[0].mxu0
        %v1500 = vadd.f32 %v1387, %v1499
        %v1501 = vpop.f32.mrb[0].mxu0
        %v1502 = vadd.f32 %v1389, %v1501
        %v1503 = vpop.f32.mrb[0].mxu0
        %v1504 = vadd.f32 %v1391, %v1503
        %v1505 = vpop.f32.mrb[0].mxu0
        %v1506 = vadd.f32 %v1393, %v1505
        %1507 = vmatprep.mubr.bf16.mxu0 %v769
        %1508 = vmatmul.mubr.bf16.gmra.mrb[0].mxu0 %v768
        %v1509 = vpop.f32.mrb[0].mxu0
        %v1510 = vadd.f32 %v1397, %v1509
        %v1511 = vpop.f32.mrb[0].mxu0
        %v1512 = vadd.f32 %v1399, %v1511
        %v1513 = vpop.f32.mrb[0].mxu0
        %v1514 = vadd.f32 %v1401, %v1513
        %v1515 = vpop.f32.mrb[0].mxu0
        %v1516 = vadd.f32 %v1403, %v1515
        %1517 = vmatprep.mubr.bf16.mxu0 %v775
        %1518 = vmatmul.mubr.bf16.gmra.mrb[0].mxu0 %v774
        %v1519 = vpop.f32.mrb[0].mxu0
        %v1520 = vadd.f32 %v1407, %v1519
        %v1521 = vpop.f32.mrb[0].mxu0
        %v1522 = vadd.f32 %v1409, %v1521
        %v1523 = vpop.f32.mrb[0].mxu0
        %v1524 = vadd.f32 %v1411, %v1523
        %v1525 = vpop.f32.mrb[0].mxu0
        %v1526 = vadd.f32 %v1413, %v1525
        %1527 = vmatprep.mubr.bf16.mxu0 %v781
        %1528 = vmatmul.mubr.bf16.gmra.mrb[0].mxu0 %v780
        %v1529 = vpop.f32.mrb[0].mxu0
        %v1530 = vadd.f32 %v1417, %v1529
        %v1531 = vpop.f32.mrb[0].mxu0
        %v1532 = vadd.f32 %v1419, %v1531
        %v1533 = vpop.f32.mrb[0].mxu0
        %v1534 = vadd.f32 %v1421, %v1533
        %v1535 = vpop.f32.mrb[0].mxu0
        %v1536 = vadd.f32 %v1423, %v1535
        %1537 = vdwg.mxu0
        %1538 = vmatprep.subr.bf16.mxu0 %v1185
        %1539 = vmatpush1.bf16.msra.mxu0 %v1184
        %1540 = vmatprep.subr.bf16.mxu0 %v1187
        %1541 = vmatpush1.bf16.msra.mxu0 %v1186
        %1542 = vmatprep.subr.bf16.mxu0 %v1189
        %1543 = vmatpush1.bf16.msra.mxu0 %v1188
        %1544 = vmatprep.subr.bf16.mxu0 %v1191
        %1545 = vmatpush1.bf16.msra.mxu0 %v1190
        %1546 = vmatprep.subr.bf16.mxu0 %v1193
        %1547 = vmatpush1.bf16.msra.mxu0 %v1192
        %1548 = vmatprep.subr.bf16.mxu0 %v1195
        %1549 = vmatpush1.bf16.msra.mxu0 %v1194
        %1550 = vmatprep.subr.bf16.mxu0 %v1197
        %1551 = vmatpush1.bf16.msra.mxu0 %v1196
        %1552 = vmatprep.subr.bf16.mxu0 %v1199
        %1553 = vmatpush1.bf16.msra.mxu0 %v1198
        %1554 = vmatprep.subr.bf16.mxu0 %v1201
        %1555 = vmatpush1.bf16.msra.mxu0 %v1200
        %1556 = vmatprep.subr.bf16.mxu0 %v1203
        %1557 = vmatpush1.bf16.msra.mxu0 %v1202
        %1558 = vmatprep.subr.bf16.mxu0 %v1205
        %1559 = vmatpush1.bf16.msra.mxu0 %v1204
        %1560 = vmatprep.subr.bf16.mxu0 %v1207
        %1561 = vmatpush1.bf16.msra.mxu0 %v1206
        %1562 = vmatprep.subr.bf16.mxu0 %v1209
        %1563 = vmatpush1.bf16.msra.mxu0 %v1208
        %1564 = vmatprep.subr.bf16.mxu0 %v1211
        %1565 = vmatpush1.bf16.msra.mxu0 %v1210
        %1566 = vmatprep.subr.bf16.mxu0 %v1213
        %1567 = vmatpush1.bf16.msra.mxu0 %v1212
        %1568 = vmatprep.subr.bf16.mxu0 %v1215
        %1569 = vmatpush1.bf16.msra.mxu0 %v1214
        %1570 = vmatprep.mubr.bf16.mxu0 %v741
        %1571 = vmatmul.mubr.bf16.gmra.mrb[0].mxu0 %v740
        %v1572 = vpop.f32.mrb[0].mxu0
        %v1573 = vadd.f32 %v1460, %v1572
        %v1574 = vpop.f32.mrb[0].mxu0
        %v1575 = vadd.f32 %v1462, %v1574
        %v1576 = vpop.f32.mrb[0].mxu0
        %v1577 = vadd.f32 %v1464, %v1576
        %v1578 = vpop.f32.mrb[0].mxu0
        %v1579 = vadd.f32 %v1466, %v1578
        %1580 = vmatprep.mubr.bf16.mxu0 %v747
        %1581 = vmatmul.mubr.bf16.gmra.mrb[0].mxu0 %v746
        %v1582 = vpop.f32.mrb[0].mxu0
        %v1583 = vadd.f32 %v1470, %v1582
        %v1584 = vpop.f32.mrb[0].mxu0
        %v1585 = vadd.f32 %v1472, %v1584
        %v1586 = vpop.f32.mrb[0].mxu0
        %v1587 = vadd.f32 %v1474, %v1586
        %v1588 = vpop.f32.mrb[0].mxu0
        %v1589 = vadd.f32 %v1476, %v1588
        %1590 = vmatprep.mubr.bf16.mxu0 %v753
        %1591 = vmatmul.mubr.bf16.gmra.mrb[0].mxu0 %v752
        %v1592 = vpop.f32.mrb[0].mxu0
        %v1593 = vadd.f32 %v1480, %v1592
        %v1594 = vpop.f32.mrb[0].mxu0
        %v1595 = vadd.f32 %v1482, %v1594
        %v1596 = vpop.f32.mrb[0].mxu0
        %v1597 = vadd.f32 %v1484, %v1596
        %v1598 = vpop.f32.mrb[0].mxu0
        %v1599 = vadd.f32 %v1486, %v1598
        %1600 = vmatprep.mubr.bf16.mxu0 %v759
        %1601 = vmatmul.mubr.bf16.gmra.mrb[0].mxu0 %v758
        %v1602 = vpop.f32.mrb[0].mxu0
        %v1603 = vadd.f32 %v1490, %v1602
        %v1604 = vpop.f32.mrb[0].mxu0
        %v1605 = vadd.f32 %v1492, %v1604
        %v1606 = vpop.f32.mrb[0].mxu0
        %v1607 = vadd.f32 %v1494, %v1606
        %v1608 = vpop.f32.mrb[0].mxu0
        %v1609 = vadd.f32 %v1496, %v1608
        %1610 = vmatprep.mubr.bf16.mxu0 %v765
        %1611 = vmatmul.mubr.bf16.gmra.mrb[0].mxu0 %v764
        %v1612 = vpop.f32.mrb[0].mxu0
        %v1613 = vadd.f32 %v1500, %v1612
        %v1614 = vpop.f32.mrb[0].mxu0
        %v1615 = vadd.f32 %v1502, %v1614
        %v1616 = vpop.f32.mrb[0].mxu0
        %v1617 = vadd.f32 %v1504, %v1616
        %v1618 = vpop.f32.mrb[0].mxu0
        %v1619 = vadd.f32 %v1506, %v1618
        %1620 = vmatprep.mubr.bf16.mxu0 %v771
        %1621 = vmatmul.mubr.bf16.gmra.mrb[0].mxu0 %v770
        %v1622 = vpop.f32.mrb[0].mxu0
        %v1623 = vadd.f32 %v1510, %v1622
        %v1624 = vpop.f32.mrb[0].mxu0
        %v1625 = vadd.f32 %v1512, %v1624
        %v1626 = vpop.f32.mrb[0].mxu0
        %v1627 = vadd.f32 %v1514, %v1626
        %v1628 = vpop.f32.mrb[0].mxu0
        %v1629 = vadd.f32 %v1516, %v1628
        %1630 = vmatprep.mubr.bf16.mxu0 %v777
        %1631 = vmatmul.mubr.bf16.gmra.mrb[0].mxu0 %v776
        %v1632 = vpop.f32.mrb[0].mxu0
        %v1633 = vadd.f32 %v1520, %v1632
        %v1634 = vpop.f32.mrb[0].mxu0
        %v1635 = vadd.f32 %v1522, %v1634
        %v1636 = vpop.f32.mrb[0].mxu0
        %v1637 = vadd.f32 %v1524, %v1636
        %v1638 = vpop.f32.mrb[0].mxu0
        %v1639 = vadd.f32 %v1526, %v1638
        %1640 = vmatprep.mubr.bf16.mxu0 %v783
        %1641 = vmatmul.mubr.bf16.gmra.mrb[0].mxu0 %v782
        %v1642 = vpop.f32.mrb[0].mxu0
        %v1643 = vadd.f32 %v1530, %v1642
        %v1644 = vpop.f32.mrb[0].mxu0
        %v1645 = vadd.f32 %v1532, %v1644
        %v1646 = vpop.f32.mrb[0].mxu0
        %v1647 = vadd.f32 %v1534, %v1646
        %v1648 = vpop.f32.mrb[0].mxu0
        %v1649 = vadd.f32 %v1536, %v1648
        %1650 = vdwg.mxu0
        %v1699 = vunpack.c.l.b16 %v302
        %v1700 = vunpack.c.h.b16 %v302
        %v1701 = vunpack.c.l.b16 %v303
        %v1702 = vunpack.c.h.b16 %v303
        %v1703 = vunpack.c.l.b16 %v304
        %v1704 = vunpack.c.h.b16 %v304
        %v1705 = vunpack.c.l.b16 %v305
        %v1706 = vunpack.c.h.b16 %v305
        %v1707 = vunpack.c.l.b16 %v306
        %v1708 = vunpack.c.h.b16 %v306
        %v1709 = vunpack.c.l.b16 %v307
        %v1710 = vunpack.c.h.b16 %v307
        %v1711 = vunpack.c.l.b16 %v308
        %v1712 = vunpack.c.h.b16 %v308
        %v1713 = vunpack.c.l.b16 %v309
        %v1714 = vunpack.c.h.b16 %v309
        %v1715 = vunpack.c.l.b16 %v310
        %v1716 = vunpack.c.h.b16 %v310
        %v1717 = vunpack.c.l.b16 %v311
        %v1718 = vunpack.c.h.b16 %v311
        %v1719 = vunpack.c.l.b16 %v312
        %v1720 = vunpack.c.h.b16 %v312
        %v1721 = vunpack.c.l.b16 %v313
        %v1722 = vunpack.c.h.b16 %v313
        %v1723 = vunpack.c.l.b16 %v314
        %v1724 = vunpack.c.h.b16 %v314
        %v1725 = vunpack.c.l.b16 %v315
        %v1726 = vunpack.c.h.b16 %v315
        %v1727 = vunpack.c.l.b16 %v316
        %v1728 = vunpack.c.h.b16 %v316
        %v1729 = vunpack.c.l.b16 %v317
        %v1730 = vunpack.c.h.b16 %v317
        %v1731 = vunpack.c.l.b16 %v318
        %v1732 = vunpack.c.h.b16 %v318
        %v1733 = vunpack.c.l.b16 %v319
        %v1734 = vunpack.c.h.b16 %v319
        %v1735 = vunpack.c.l.b16 %v320
        %v1736 = vunpack.c.h.b16 %v320
        %v1737 = vunpack.c.l.b16 %v321
        %v1738 = vunpack.c.h.b16 %v321
        %v1739 = vunpack.c.l.b16 %v322
        %v1740 = vunpack.c.h.b16 %v322
        %v1741 = vunpack.c.l.b16 %v323
        %v1742 = vunpack.c.h.b16 %v323
        %v1743 = vunpack.c.l.b16 %v324
        %v1744 = vunpack.c.h.b16 %v324
        %v1745 = vunpack.c.l.b16 %v325
        %v1746 = vunpack.c.h.b16 %v325
        %v1747 = vunpack.c.l.b16 %v326
        %v1748 = vunpack.c.h.b16 %v326
        %v1749 = vunpack.c.l.b16 %v327
        %v1750 = vunpack.c.h.b16 %v327
        %v1751 = vunpack.c.l.b16 %v328
        %v1752 = vunpack.c.h.b16 %v328
        %v1753 = vunpack.c.l.b16 %v329
        %v1754 = vunpack.c.h.b16 %v329
        %v1755 = vunpack.c.l.b16 %v330
        %v1756 = vunpack.c.h.b16 %v330
        %v1757 = vunpack.c.l.b16 %v331
        %v1758 = vunpack.c.h.b16 %v331
        %v1759 = vunpack.c.l.b16 %v332
        %v1760 = vunpack.c.h.b16 %v332
        %v1761 = vunpack.c.l.b16 %v333
        %v1762 = vunpack.c.h.b16 %v333
        %v1763 = vunpack.c.l.b16 %v334
        %v1764 = vunpack.c.h.b16 %v334
        %v1765 = vunpack.c.l.b16 %v335
        %v1766 = vunpack.c.h.b16 %v335
        %v1767 = vunpack.c.l.b16 %v336
        %v1768 = vunpack.c.h.b16 %v336
        %v1769 = vunpack.c.l.b16 %v337
        %v1770 = vunpack.c.h.b16 %v337
        %v1771 = vunpack.c.l.b16 %v338
        %v1772 = vunpack.c.h.b16 %v338
        %v1773 = vunpack.c.l.b16 %v339
        %v1774 = vunpack.c.h.b16 %v339
        %v1775 = vunpack.c.l.b16 %v340
        %v1776 = vunpack.c.h.b16 %v340
        %v1777 = vunpack.c.l.b16 %v341
        %v1778 = vunpack.c.h.b16 %v341
        %v1779 = vunpack.c.l.b16 %v342
        %v1780 = vunpack.c.h.b16 %v342
        %v1781 = vunpack.c.l.b16 %v343
        %v1782 = vunpack.c.h.b16 %v343
        %v1783 = vunpack.c.l.b16 %v344
        %v1784 = vunpack.c.h.b16 %v344
        %v1785 = vunpack.c.l.b16 %v345
        %v1786 = vunpack.c.h.b16 %v345
        %v1787 = vunpack.c.l.b16 %v346
        %v1788 = vunpack.c.h.b16 %v346
        %v1789 = vunpack.c.l.b16 %v347
        %v1790 = vunpack.c.h.b16 %v347
        %v1791 = vunpack.c.l.b16 %v348
        %v1792 = vunpack.c.h.b16 %v348
        %v1793 = vunpack.c.l.b16 %v349
        %v1794 = vunpack.c.h.b16 %v349
        %v1795 = vpack.c.b16 %v1705, %v1699
        %v1796 = vpack.c.b16 %v1706, %v1700
        %v1797 = vpack.c.b16 %v1707, %v1701
        %v1798 = vpack.c.b16 %v1708, %v1702
        %v1799 = vpack.c.b16 %v1709, %v1703
        %v1800 = vpack.c.b16 %v1710, %v1704
        %v1801 = vpack.c.b16 %v1717, %v1711
        %v1802 = vpack.c.b16 %v1718, %v1712
        %v1803 = vpack.c.b16 %v1719, %v1713
        %v1804 = vpack.c.b16 %v1720, %v1714
        %v1805 = vpack.c.b16 %v1721, %v1715
        %v1806 = vpack.c.b16 %v1722, %v1716
        %v1807 = vpack.c.b16 %v1729, %v1723
        %v1808 = vpack.c.b16 %v1730, %v1724
        %v1809 = vpack.c.b16 %v1731, %v1725
        %v1810 = vpack.c.b16 %v1732, %v1726
        %v1811 = vpack.c.b16 %v1733, %v1727
        %v1812 = vpack.c.b16 %v1734, %v1728
        %v1813 = vpack.c.b16 %v1741, %v1735
        %v1814 = vpack.c.b16 %v1742, %v1736
        %v1815 = vpack.c.b16 %v1743, %v1737
        %v1816 = vpack.c.b16 %v1744, %v1738
        %v1817 = vpack.c.b16 %v1745, %v1739
        %v1818 = vpack.c.b16 %v1746, %v1740
        %v1819 = vpack.c.b16 %v1753, %v1747
        %v1820 = vpack.c.b16 %v1754, %v1748
        %v1821 = vpack.c.b16 %v1755, %v1749
        %v1822 = vpack.c.b16 %v1756, %v1750
        %v1823 = vpack.c.b16 %v1757, %v1751
        %v1824 = vpack.c.b16 %v1758, %v1752
        %v1825 = vpack.c.b16 %v1765, %v1759
        %v1826 = vpack.c.b16 %v1766, %v1760
        %v1827 = vpack.c.b16 %v1767, %v1761
        %v1828 = vpack.c.b16 %v1768, %v1762
        %v1829 = vpack.c.b16 %v1769, %v1763
        %v1830 = vpack.c.b16 %v1770, %v1764
        %v1831 = vpack.c.b16 %v1777, %v1771
        %v1832 = vpack.c.b16 %v1778, %v1772
        %v1833 = vpack.c.b16 %v1779, %v1773
        %v1834 = vpack.c.b16 %v1780, %v1774
        %v1835 = vpack.c.b16 %v1781, %v1775
        %v1836 = vpack.c.b16 %v1782, %v1776
        %v1837 = vpack.c.b16 %v1789, %v1783
        %v1838 = vpack.c.b16 %v1790, %v1784
        %v1839 = vpack.c.b16 %v1791, %v1785
        %v1840 = vpack.c.b16 %v1792, %v1786
        %v1841 = vpack.c.b16 %v1793, %v1787
        %v1842 = vpack.c.b16 %v1794, %v1788
        %v1987 = vunpack.c.l.b16 %v350
        %v1988 = vunpack.c.h.b16 %v350
        %v1989 = vunpack.c.l.b16 %v351
        %v1990 = vunpack.c.h.b16 %v351
        %v1991 = vunpack.c.l.b16 %v352
        %v1992 = vunpack.c.h.b16 %v352
        %v1993 = vunpack.c.l.b16 %v353
        %v1994 = vunpack.c.h.b16 %v353
        %v1995 = vunpack.c.l.b16 %v354
        %v1996 = vunpack.c.h.b16 %v354
        %v1997 = vunpack.c.l.b16 %v355
        %v1998 = vunpack.c.h.b16 %v355
        %v1999 = vunpack.c.l.b16 %v356
        %v2000 = vunpack.c.h.b16 %v356
        %v2001 = vunpack.c.l.b16 %v357
        %v2002 = vunpack.c.h.b16 %v357
        %v2003 = vunpack.c.l.b16 %v358
        %v2004 = vunpack.c.h.b16 %v358
        %v2005 = vunpack.c.l.b16 %v359
        %v2006 = vunpack.c.h.b16 %v359
        %v2007 = vunpack.c.l.b16 %v360
        %v2008 = vunpack.c.h.b16 %v360
        %v2009 = vunpack.c.l.b16 %v361
        %v2010 = vunpack.c.h.b16 %v361
        %v2011 = vunpack.c.l.b16 %v362
        %v2012 = vunpack.c.h.b16 %v362
        %v2013 = vunpack.c.l.b16 %v363
        %v2014 = vunpack.c.h.b16 %v363
        %v2015 = vunpack.c.l.b16 %v364
        %v2016 = vunpack.c.h.b16 %v364
        %v2017 = vunpack.c.l.b16 %v365
        %v2018 = vunpack.c.h.b16 %v365
        %v2019 = vunpack.c.l.b16 %v366
        %v2020 = vunpack.c.h.b16 %v366
        %v2021 = vunpack.c.l.b16 %v367
        %v2022 = vunpack.c.h.b16 %v367
        %v2023 = vunpack.c.l.b16 %v368
        %v2024 = vunpack.c.h.b16 %v368
        %v2025 = vunpack.c.l.b16 %v369
        %v2026 = vunpack.c.h.b16 %v369
        %v2027 = vunpack.c.l.b16 %v370
        %v2028 = vunpack.c.h.b16 %v370
        %v2029 = vunpack.c.l.b16 %v371
        %v2030 = vunpack.c.h.b16 %v371
        %v2031 = vunpack.c.l.b16 %v372
        %v2032 = vunpack.c.h.b16 %v372
        %v2033 = vunpack.c.l.b16 %v373
        %v2034 = vunpack.c.h.b16 %v373
        %v2035 = vunpack.c.l.b16 %v374
        %v2036 = vunpack.c.h.b16 %v374
        %v2037 = vunpack.c.l.b16 %v375
        %v2038 = vunpack.c.h.b16 %v375
        %v2039 = vunpack.c.l.b16 %v376
        %v2040 = vunpack.c.h.b16 %v376
        %v2041 = vunpack.c.l.b16 %v377
        %v2042 = vunpack.c.h.b16 %v377
        %v2043 = vunpack.c.l.b16 %v378
        %v2044 = vunpack.c.h.b16 %v378
        %v2045 = vunpack.c.l.b16 %v379
        %v2046 = vunpack.c.h.b16 %v379
        %v2047 = vunpack.c.l.b16 %v380
        %v2048 = vunpack.c.h.b16 %v380
        %v2049 = vunpack.c.l.b16 %v381
        %v2050 = vunpack.c.h.b16 %v381
        %v2051 = vunpack.c.l.b16 %v382
        %v2052 = vunpack.c.h.b16 %v382
        %v2053 = vunpack.c.l.b16 %v383
        %v2054 = vunpack.c.h.b16 %v383
        %v2055 = vunpack.c.l.b16 %v384
        %v2056 = vunpack.c.h.b16 %v384
        %v2057 = vunpack.c.l.b16 %v385
        %v2058 = vunpack.c.h.b16 %v385
        %v2059 = vunpack.c.l.b16 %v386
        %v2060 = vunpack.c.h.b16 %v386
        %v2061 = vunpack.c.l.b16 %v387
        %v2062 = vunpack.c.h.b16 %v387
        %v2063 = vunpack.c.l.b16 %v388
        %v2064 = vunpack.c.h.b16 %v388
        %v2065 = vunpack.c.l.b16 %v389
        %v2066 = vunpack.c.h.b16 %v389
        %v2067 = vunpack.c.l.b16 %v390
        %v2068 = vunpack.c.h.b16 %v390
        %v2069 = vunpack.c.l.b16 %v391
        %v2070 = vunpack.c.h.b16 %v391
        %v2071 = vunpack.c.l.b16 %v392
        %v2072 = vunpack.c.h.b16 %v392
        %v2073 = vunpack.c.l.b16 %v393
        %v2074 = vunpack.c.h.b16 %v393
        %v2075 = vunpack.c.l.b16 %v394
        %v2076 = vunpack.c.h.b16 %v394
        %v2077 = vunpack.c.l.b16 %v395
        %v2078 = vunpack.c.h.b16 %v395
        %v2079 = vunpack.c.l.b16 %v396
        %v2080 = vunpack.c.h.b16 %v396
        %v2081 = vunpack.c.l.b16 %v397
        %v2082 = vunpack.c.h.b16 %v397
        %v2083 = vunpack.c.l.b16 %v398
        %v2084 = vunpack.c.h.b16 %v398
        %v2085 = vunpack.c.l.b16 %v399
        %v2086 = vunpack.c.h.b16 %v399
        %v2087 = vunpack.c.l.b16 %v400
        %v2088 = vunpack.c.h.b16 %v400
        %v2089 = vunpack.c.l.b16 %v401
        %v2090 = vunpack.c.h.b16 %v401
        %v2091 = vunpack.c.l.b16 %v402
        %v2092 = vunpack.c.h.b16 %v402
        %v2093 = vunpack.c.l.b16 %v403
        %v2094 = vunpack.c.h.b16 %v403
        %v2095 = vunpack.c.l.b16 %v404
        %v2096 = vunpack.c.h.b16 %v404
        %v2097 = vunpack.c.l.b16 %v405
        %v2098 = vunpack.c.h.b16 %v405
        %v2099 = vunpack.c.l.b16 %v406
        %v2100 = vunpack.c.h.b16 %v406
        %v2101 = vunpack.c.l.b16 %v407
        %v2102 = vunpack.c.h.b16 %v407
        %v2103 = vunpack.c.l.b16 %v408
        %v2104 = vunpack.c.h.b16 %v408
        %v2105 = vunpack.c.l.b16 %v409
        %v2106 = vunpack.c.h.b16 %v409
        %v2107 = vunpack.c.l.b16 %v410
        %v2108 = vunpack.c.h.b16 %v410
        %v2109 = vunpack.c.l.b16 %v411
        %v2110 = vunpack.c.h.b16 %v411
        %v2111 = vunpack.c.l.b16 %v412
        %v2112 = vunpack.c.h.b16 %v412
        %v2113 = vunpack.c.l.b16 %v413
        %v2114 = vunpack.c.h.b16 %v413
        %v2115 = vunpack.c.l.b16 %v414
        %v2116 = vunpack.c.h.b16 %v414
        %v2117 = vunpack.c.l.b16 %v415
        %v2118 = vunpack.c.h.b16 %v415
        %v2119 = vunpack.c.l.b16 %v416
        %v2120 = vunpack.c.h.b16 %v416
        %v2121 = vunpack.c.l.b16 %v417
        %v2122 = vunpack.c.h.b16 %v417
        %v2123 = vunpack.c.l.b16 %v418
        %v2124 = vunpack.c.h.b16 %v418
        %v2125 = vunpack.c.l.b16 %v419
        %v2126 = vunpack.c.h.b16 %v419
        %v2127 = vunpack.c.l.b16 %v420
        %v2128 = vunpack.c.h.b16 %v420
        %v2129 = vunpack.c.l.b16 %v421
        %v2130 = vunpack.c.h.b16 %v421
        %v2131 = vunpack.c.l.b16 %v422
        %v2132 = vunpack.c.h.b16 %v422
        %v2133 = vunpack.c.l.b16 %v423
        %v2134 = vunpack.c.h.b16 %v423
        %v2135 = vunpack.c.l.b16 %v424
        %v2136 = vunpack.c.h.b16 %v424
        %v2137 = vunpack.c.l.b16 %v425
        %v2138 = vunpack.c.h.b16 %v425
        %v2139 = vunpack.c.l.b16 %v426
        %v2140 = vunpack.c.h.b16 %v426
        %v2141 = vunpack.c.l.b16 %v427
        %v2142 = vunpack.c.h.b16 %v427
        %v2143 = vunpack.c.l.b16 %v428
        %v2144 = vunpack.c.h.b16 %v428
        %v2145 = vunpack.c.l.b16 %v429
        %v2146 = vunpack.c.h.b16 %v429
        %v2147 = vunpack.c.l.b16 %v430
        %v2148 = vunpack.c.h.b16 %v430
        %v2149 = vunpack.c.l.b16 %v431
        %v2150 = vunpack.c.h.b16 %v431
        %v2151 = vunpack.c.l.b16 %v432
        %v2152 = vunpack.c.h.b16 %v432
        %v2153 = vunpack.c.l.b16 %v433
        %v2154 = vunpack.c.h.b16 %v433
        %v2155 = vunpack.c.l.b16 %v434
        %v2156 = vunpack.c.h.b16 %v434
        %v2157 = vunpack.c.l.b16 %v435
        %v2158 = vunpack.c.h.b16 %v435
        %v2159 = vunpack.c.l.b16 %v436
        %v2160 = vunpack.c.h.b16 %v436
        %v2161 = vunpack.c.l.b16 %v437
        %v2162 = vunpack.c.h.b16 %v437
        %v2163 = vunpack.c.l.b16 %v438
        %v2164 = vunpack.c.h.b16 %v438
        %v2165 = vunpack.c.l.b16 %v439
        %v2166 = vunpack.c.h.b16 %v439
        %v2167 = vunpack.c.l.b16 %v440
        %v2168 = vunpack.c.h.b16 %v440
        %v2169 = vunpack.c.l.b16 %v441
        %v2170 = vunpack.c.h.b16 %v441
        %v2171 = vunpack.c.l.b16 %v442
        %v2172 = vunpack.c.h.b16 %v442
        %v2173 = vunpack.c.l.b16 %v443
        %v2174 = vunpack.c.h.b16 %v443
        %v2175 = vunpack.c.l.b16 %v444
        %v2176 = vunpack.c.h.b16 %v444
        %v2177 = vunpack.c.l.b16 %v445
        %v2178 = vunpack.c.h.b16 %v445
        %v2179 = vpack.c.b16 %v1989, %v1987
        %v2180 = vpack.c.b16 %v1990, %v1988
        %v2181 = vpack.c.b16 %v1993, %v1991
        %v2182 = vpack.c.b16 %v1994, %v1992
        %v2183 = vpack.c.b16 %v1997, %v1995
        %v2184 = vpack.c.b16 %v1998, %v1996
        %v2185 = vpack.c.b16 %v2001, %v1999
        %v2186 = vpack.c.b16 %v2002, %v2000
        %v2187 = vpack.c.b16 %v2005, %v2003
        %v2188 = vpack.c.b16 %v2006, %v2004
        %v2189 = vpack.c.b16 %v2009, %v2007
        %v2190 = vpack.c.b16 %v2010, %v2008
        %v2191 = vpack.c.b16 %v2013, %v2011
        %v2192 = vpack.c.b16 %v2014, %v2012
        %v2193 = vpack.c.b16 %v2017, %v2015
        %v2194 = vpack.c.b16 %v2018, %v2016
        %v2195 = vpack.c.b16 %v2021, %v2019
        %v2196 = vpack.c.b16 %v2022, %v2020
        %v2197 = vpack.c.b16 %v2025, %v2023
        %v2198 = vpack.c.b16 %v2026, %v2024
        %v2199 = vpack.c.b16 %v2029, %v2027
        %v2200 = vpack.c.b16 %v2030, %v2028
        %v2201 = vpack.c.b16 %v2033, %v2031
        %v2202 = vpack.c.b16 %v2034, %v2032
        %v2203 = vpack.c.b16 %v2037, %v2035
        %v2204 = vpack.c.b16 %v2038, %v2036
        %v2205 = vpack.c.b16 %v2041, %v2039
        %v2206 = vpack.c.b16 %v2042, %v2040
        %v2207 = vpack.c.b16 %v2045, %v2043
        %v2208 = vpack.c.b16 %v2046, %v2044
        %v2209 = vpack.c.b16 %v2049, %v2047
        %v2210 = vpack.c.b16 %v2050, %v2048
        %v2211 = vpack.c.b16 %v2053, %v2051
        %v2212 = vpack.c.b16 %v2054, %v2052
        %v2213 = vpack.c.b16 %v2057, %v2055
        %v2214 = vpack.c.b16 %v2058, %v2056
        %v2215 = vpack.c.b16 %v2061, %v2059
        %v2216 = vpack.c.b16 %v2062, %v2060
        %v2217 = vpack.c.b16 %v2065, %v2063
        %v2218 = vpack.c.b16 %v2066, %v2064
        %v2219 = vpack.c.b16 %v2069, %v2067
        %v2220 = vpack.c.b16 %v2070, %v2068
        %v2221 = vpack.c.b16 %v2073, %v2071
        %v2222 = vpack.c.b16 %v2074, %v2072
        %v2223 = vpack.c.b16 %v2077, %v2075
        %v2224 = vpack.c.b16 %v2078, %v2076
        %v2225 = vpack.c.b16 %v2081, %v2079
        %v2226 = vpack.c.b16 %v2082, %v2080
        %v2227 = vpack.c.b16 %v2085, %v2083
        %v2228 = vpack.c.b16 %v2086, %v2084
        %v2229 = vpack.c.b16 %v2089, %v2087
        %v2230 = vpack.c.b16 %v2090, %v2088
        %v2231 = vpack.c.b16 %v2093, %v2091
        %v2232 = vpack.c.b16 %v2094, %v2092
        %v2233 = vpack.c.b16 %v2097, %v2095
        %v2234 = vpack.c.b16 %v2098, %v2096
        %v2235 = vpack.c.b16 %v2101, %v2099
        %v2236 = vpack.c.b16 %v2102, %v2100
        %v2237 = vpack.c.b16 %v2105, %v2103
        %v2238 = vpack.c.b16 %v2106, %v2104
        %v2239 = vpack.c.b16 %v2109, %v2107
        %v2240 = vpack.c.b16 %v2110, %v2108
        %v2241 = vpack.c.b16 %v2113, %v2111
        %v2242 = vpack.c.b16 %v2114, %v2112
        %v2243 = vpack.c.b16 %v2117, %v2115
        %v2244 = vpack.c.b16 %v2118, %v2116
        %v2245 = vpack.c.b16 %v2121, %v2119
        %v2246 = vpack.c.b16 %v2122, %v2120
        %v2247 = vpack.c.b16 %v2125, %v2123
        %v2248 = vpack.c.b16 %v2126, %v2124
        %v2249 = vpack.c.b16 %v2129, %v2127
        %v2250 = vpack.c.b16 %v2130, %v2128
        %v2251 = vpack.c.b16 %v2133, %v2131
        %v2252 = vpack.c.b16 %v2134, %v2132
        %v2253 = vpack.c.b16 %v2137, %v2135
        %v2254 = vpack.c.b16 %v2138, %v2136
        %v2255 = vpack.c.b16 %v2141, %v2139
        %v2256 = vpack.c.b16 %v2142, %v2140
        %v2257 = vpack.c.b16 %v2145, %v2143
        %v2258 = vpack.c.b16 %v2146, %v2144
        %v2259 = vpack.c.b16 %v2149, %v2147
        %v2260 = vpack.c.b16 %v2150, %v2148
        %v2261 = vpack.c.b16 %v2153, %v2151
        %v2262 = vpack.c.b16 %v2154, %v2152
        %v2263 = vpack.c.b16 %v2157, %v2155
        %v2264 = vpack.c.b16 %v2158, %v2156
        %v2265 = vpack.c.b16 %v2161, %v2159
        %v2266 = vpack.c.b16 %v2162, %v2160
        %v2267 = vpack.c.b16 %v2165, %v2163
        %v2268 = vpack.c.b16 %v2166, %v2164
        %v2269 = vpack.c.b16 %v2169, %v2167
        %v2270 = vpack.c.b16 %v2170, %v2168
        %v2271 = vpack.c.b16 %v2173, %v2171
        %v2272 = vpack.c.b16 %v2174, %v2172
        %v2273 = vpack.c.b16 %v2177, %v2175
        %v2274 = vpack.c.b16 %v2178, %v2176
        %2371 = vmatprep.subr.bf16.mxu0 %v2180
        %2372 = vmatpush1.bf16.msra.mxu0 %v2179
        %2373 = vmatprep.subr.bf16.mxu0 %v2182
        %2374 = vmatpush1.bf16.msra.mxu0 %v2181
        %2375 = vmatprep.subr.bf16.mxu0 %v2184
        %2376 = vmatpush1.bf16.msra.mxu0 %v2183
        %2377 = vmatprep.subr.bf16.mxu0 %v2186
        %2378 = vmatpush1.bf16.msra.mxu0 %v2185
        %2379 = vmatprep.subr.bf16.mxu0 %v2188
        %2380 = vmatpush1.bf16.msra.mxu0 %v2187
        %2381 = vmatprep.subr.bf16.mxu0 %v2190
        %2382 = vmatpush1.bf16.msra.mxu0 %v2189
        %2383 = vmatprep.subr.bf16.mxu0 %v2192
        %2384 = vmatpush1.bf16.msra.mxu0 %v2191
        %2385 = vmatprep.subr.bf16.mxu0 %v2194
        %2386 = vmatpush1.bf16.msra.mxu0 %v2193
        %2387 = vmatprep.subr.bf16.mxu0 %v2196
        %2388 = vmatpush1.bf16.msra.mxu0 %v2195
        %2389 = vmatprep.subr.bf16.mxu0 %v2198
        %2390 = vmatpush1.bf16.msra.mxu0 %v2197
        %2391 = vmatprep.subr.bf16.mxu0 %v2200
        %2392 = vmatpush1.bf16.msra.mxu0 %v2199
        %2393 = vmatprep.subr.bf16.mxu0 %v2202
        %2394 = vmatpush1.bf16.msra.mxu0 %v2201
        %2395 = vmatprep.subr.bf16.mxu0 %v2204
        %2396 = vmatpush1.bf16.msra.mxu0 %v2203
        %2397 = vmatprep.subr.bf16.mxu0 %v2206
        %2398 = vmatpush1.bf16.msra.mxu0 %v2205
        %2399 = vmatprep.subr.bf16.mxu0 %v2208
        %2400 = vmatpush1.bf16.msra.mxu0 %v2207
        %2401 = vmatprep.subr.bf16.mxu0 %v2210
        %2402 = vmatpush1.bf16.msra.mxu0 %v2209
        %2403 = vmatprep.mubr.bf16.mxu0 %v1796
        %2404 = vmatmul.mubr.bf16.gmra.mrb[0].mxu0 %v1795
        %v2405 = vpop.f32.mrb[0].mxu0
        %v2406 = vadd.f32 %v1573, %v2405
        %v2407 = vpop.f32.mrb[0].mxu0
        %v2408 = vadd.f32 %v1575, %v2407
        %v2409 = vpop.f32.mrb[0].mxu0
        %v2410 = vadd.f32 %v1577, %v2409
        %v2411 = vpop.f32.mrb[0].mxu0
        %v2412 = vadd.f32 %v1579, %v2411
        %2413 = vmatprep.mubr.bf16.mxu0 %v1802
        %2414 = vmatmul.mubr.bf16.gmra.mrb[0].mxu0 %v1801
        %v2415 = vpop.f32.mrb[0].mxu0
        %v2416 = vadd.f32 %v1583, %v2415
        %v2417 = vpop.f32.mrb[0].mxu0
        %v2418 = vadd.f32 %v1585, %v2417
        %v2419 = vpop.f32.mrb[0].mxu0
        %v2420 = vadd.f32 %v1587, %v2419
        %v2421 = vpop.f32.mrb[0].mxu0
        %v2422 = vadd.f32 %v1589, %v2421
        %2423 = vmatprep.mubr.bf16.mxu0 %v1808
        %2424 = vmatmul.mubr.bf16.gmra.mrb[0].mxu0 %v1807
        %v2425 = vpop.f32.mrb[0].mxu0
        %v2426 = vadd.f32 %v1593, %v2425
        %v2427 = vpop.f32.mrb[0].mxu0
        %v2428 = vadd.f32 %v1595, %v2427
        %v2429 = vpop.f32.mrb[0].mxu0
        %v2430 = vadd.f32 %v1597, %v2429
        %v2431 = vpop.f32.mrb[0].mxu0
        %v2432 = vadd.f32 %v1599, %v2431
        %2433 = vmatprep.mubr.bf16.mxu0 %v1814
        %2434 = vmatmul.mubr.bf16.gmra.mrb[0].mxu0 %v1813
        %v2435 = vpop.f32.mrb[0].mxu0
        %v2436 = vadd.f32 %v1603, %v2435
        %v2437 = vpop.f32.mrb[0].mxu0
        %v2438 = vadd.f32 %v1605, %v2437
        %v2439 = vpop.f32.mrb[0].mxu0
        %v2440 = vadd.f32 %v1607, %v2439
        %v2441 = vpop.f32.mrb[0].mxu0
        %v2442 = vadd.f32 %v1609, %v2441
        %2443 = vmatprep.mubr.bf16.mxu0 %v1820
        %2444 = vmatmul.mubr.bf16.gmra.mrb[0].mxu0 %v1819
        %v2445 = vpop.f32.mrb[0].mxu0
        %v2446 = vadd.f32 %v1613, %v2445
        %v2447 = vpop.f32.mrb[0].mxu0
        %v2448 = vadd.f32 %v1615, %v2447
        %v2449 = vpop.f32.mrb[0].mxu0
        %v2450 = vadd.f32 %v1617, %v2449
        %v2451 = vpop.f32.mrb[0].mxu0
        %v2452 = vadd.f32 %v1619, %v2451
        %2453 = vmatprep.mubr.bf16.mxu0 %v1826
        %2454 = vmatmul.mubr.bf16.gmra.mrb[0].mxu0 %v1825
        %v2455 = vpop.f32.mrb[0].mxu0
        %v2456 = vadd.f32 %v1623, %v2455
        %v2457 = vpop.f32.mrb[0].mxu0
        %v2458 = vadd.f32 %v1625, %v2457
        %v2459 = vpop.f32.mrb[0].mxu0
        %v2460 = vadd.f32 %v1627, %v2459
        %v2461 = vpop.f32.mrb[0].mxu0
        %v2462 = vadd.f32 %v1629, %v2461
        %2463 = vmatprep.mubr.bf16.mxu0 %v1832
        %2464 = vmatmul.mubr.bf16.gmra.mrb[0].mxu0 %v1831
        %v2465 = vpop.f32.mrb[0].mxu0
        %v2466 = vadd.f32 %v1633, %v2465
        %v2467 = vpop.f32.mrb[0].mxu0
        %v2468 = vadd.f32 %v1635, %v2467
        %v2469 = vpop.f32.mrb[0].mxu0
        %v2470 = vadd.f32 %v1637, %v2469
        %v2471 = vpop.f32.mrb[0].mxu0
        %v2472 = vadd.f32 %v1639, %v2471
        %2473 = vmatprep.mubr.bf16.mxu0 %v1838
        %2474 = vmatmul.mubr.bf16.gmra.mrb[0].mxu0 %v1837
        %v2475 = vpop.f32.mrb[0].mxu0
        %v2476 = vadd.f32 %v1643, %v2475
        %v2477 = vpop.f32.mrb[0].mxu0
        %v2478 = vadd.f32 %v1645, %v2477
        %v2479 = vpop.f32.mrb[0].mxu0
        %v2480 = vadd.f32 %v1647, %v2479
        %v2481 = vpop.f32.mrb[0].mxu0
        %v2482 = vadd.f32 %v1649, %v2481
        %2483 = vdwg.mxu0
        %2484 = vmatprep.subr.bf16.mxu0 %v2212
        %2485 = vmatpush1.bf16.msra.mxu0 %v2211
        %2486 = vmatprep.subr.bf16.mxu0 %v2214
        %2487 = vmatpush1.bf16.msra.mxu0 %v2213
        %2488 = vmatprep.subr.bf16.mxu0 %v2216
        %2489 = vmatpush1.bf16.msra.mxu0 %v2215
        %2490 = vmatprep.subr.bf16.mxu0 %v2218
        %2491 = vmatpush1.bf16.msra.mxu0 %v2217
        %2492 = vmatprep.subr.bf16.mxu0 %v2220
        %2493 = vmatpush1.bf16.msra.mxu0 %v2219
        %2494 = vmatprep.subr.bf16.mxu0 %v2222
        %2495 = vmatpush1.bf16.msra.mxu0 %v2221
        %2496 = vmatprep.subr.bf16.mxu0 %v2224
        %2497 = vmatpush1.bf16.msra.mxu0 %v2223
        %2498 = vmatprep.subr.bf16.mxu0 %v2226
        %2499 = vmatpush1.bf16.msra.mxu0 %v2225
        %2500 = vmatprep.subr.bf16.mxu0 %v2228
        %2501 = vmatpush1.bf16.msra.mxu0 %v2227
        %2502 = vmatprep.subr.bf16.mxu0 %v2230
        %2503 = vmatpush1.bf16.msra.mxu0 %v2229
        %2504 = vmatprep.subr.bf16.mxu0 %v2232
        %2505 = vmatpush1.bf16.msra.mxu0 %v2231
        %2506 = vmatprep.subr.bf16.mxu0 %v2234
        %2507 = vmatpush1.bf16.msra.mxu0 %v2233
        %2508 = vmatprep.subr.bf16.mxu0 %v2236
        %2509 = vmatpush1.bf16.msra.mxu0 %v2235
        %2510 = vmatprep.subr.bf16.mxu0 %v2238
        %2511 = vmatpush1.bf16.msra.mxu0 %v2237
        %2512 = vmatprep.subr.bf16.mxu0 %v2240
        %2513 = vmatpush1.bf16.msra.mxu0 %v2239
        %2514 = vmatprep.subr.bf16.mxu0 %v2242
        %2515 = vmatpush1.bf16.msra.mxu0 %v2241
        %2516 = vmatprep.mubr.bf16.mxu0 %v1798
        %2517 = vmatmul.mubr.bf16.gmra.mrb[0].mxu0 %v1797
        %v2518 = vpop.f32.mrb[0].mxu0
        %v2519 = vadd.f32 %v2406, %v2518
        %v2520 = vpop.f32.mrb[0].mxu0
        %v2521 = vadd.f32 %v2408, %v2520
        %v2522 = vpop.f32.mrb[0].mxu0
        %v2523 = vadd.f32 %v2410, %v2522
        %v2524 = vpop.f32.mrb[0].mxu0
        %v2525 = vadd.f32 %v2412, %v2524
        %2526 = vmatprep.mubr.bf16.mxu0 %v1804
        %2527 = vmatmul.mubr.bf16.gmra.mrb[0].mxu0 %v1803
        %v2528 = vpop.f32.mrb[0].mxu0
        %v2529 = vadd.f32 %v2416, %v2528
        %v2530 = vpop.f32.mrb[0].mxu0
        %v2531 = vadd.f32 %v2418, %v2530
        %v2532 = vpop.f32.mrb[0].mxu0
        %v2533 = vadd.f32 %v2420, %v2532
        %v2534 = vpop.f32.mrb[0].mxu0
        %v2535 = vadd.f32 %v2422, %v2534
        %2536 = vmatprep.mubr.bf16.mxu0 %v1810
        %2537 = vmatmul.mubr.bf16.gmra.mrb[0].mxu0 %v1809
        %v2538 = vpop.f32.mrb[0].mxu0
        %v2539 = vadd.f32 %v2426, %v2538
        %v2540 = vpop.f32.mrb[0].mxu0
        %v2541 = vadd.f32 %v2428, %v2540
        %v2542 = vpop.f32.mrb[0].mxu0
        %v2543 = vadd.f32 %v2430, %v2542
        %v2544 = vpop.f32.mrb[0].mxu0
        %v2545 = vadd.f32 %v2432, %v2544
        %2546 = vmatprep.mubr.bf16.mxu0 %v1816
        %2547 = vmatmul.mubr.bf16.gmra.mrb[0].mxu0 %v1815
        %v2548 = vpop.f32.mrb[0].mxu0
        %v2549 = vadd.f32 %v2436, %v2548
        %v2550 = vpop.f32.mrb[0].mxu0
        %v2551 = vadd.f32 %v2438, %v2550
        %v2552 = vpop.f32.mrb[0].mxu0
        %v2553 = vadd.f32 %v2440, %v2552
        %v2554 = vpop.f32.mrb[0].mxu0
        %v2555 = vadd.f32 %v2442, %v2554
        %2556 = vmatprep.mubr.bf16.mxu0 %v1822
        %2557 = vmatmul.mubr.bf16.gmra.mrb[0].mxu0 %v1821
        %v2558 = vpop.f32.mrb[0].mxu0
        %v2559 = vadd.f32 %v2446, %v2558
        %v2560 = vpop.f32.mrb[0].mxu0
        %v2561 = vadd.f32 %v2448, %v2560
        %v2562 = vpop.f32.mrb[0].mxu0
        %v2563 = vadd.f32 %v2450, %v2562
        %v2564 = vpop.f32.mrb[0].mxu0
        %v2565 = vadd.f32 %v2452, %v2564
        %2566 = vmatprep.mubr.bf16.mxu0 %v1828
        %2567 = vmatmul.mubr.bf16.gmra.mrb[0].mxu0 %v1827
        %v2568 = vpop.f32.mrb[0].mxu0
        %v2569 = vadd.f32 %v2456, %v2568
        %v2570 = vpop.f32.mrb[0].mxu0
        %v2571 = vadd.f32 %v2458, %v2570
        %v2572 = vpop.f32.mrb[0].mxu0
        %v2573 = vadd.f32 %v2460, %v2572
        %v2574 = vpop.f32.mrb[0].mxu0
        %v2575 = vadd.f32 %v2462, %v2574
        %2576 = vmatprep.mubr.bf16.mxu0 %v1834
        %2577 = vmatmul.mubr.bf16.gmra.mrb[0].mxu0 %v1833
        %v2578 = vpop.f32.mrb[0].mxu0
        %v2579 = vadd.f32 %v2466, %v2578
        %v2580 = vpop.f32.mrb[0].mxu0
        %v2581 = vadd.f32 %v2468, %v2580
        %v2582 = vpop.f32.mrb[0].mxu0
        %v2583 = vadd.f32 %v2470, %v2582
        %v2584 = vpop.f32.mrb[0].mxu0
        %v2585 = vadd.f32 %v2472, %v2584
        %2586 = vmatprep.mubr.bf16.mxu0 %v1840
        %2587 = vmatmul.mubr.bf16.gmra.mrb[0].mxu0 %v1839
        %v2588 = vpop.f32.mrb[0].mxu0
        %v2589 = vadd.f32 %v2476, %v2588
        %v2590 = vpop.f32.mrb[0].mxu0
        %v2591 = vadd.f32 %v2478, %v2590
        %v2592 = vpop.f32.mrb[0].mxu0
        %v2593 = vadd.f32 %v2480, %v2592
        %v2594 = vpop.f32.mrb[0].mxu0
        %v2595 = vadd.f32 %v2482, %v2594
        %2596 = vdwg.mxu0
        %2597 = vmatprep.subr.bf16.mxu0 %v2244
        %2598 = vmatpush1.bf16.msra.mxu0 %v2243
        %2599 = vmatprep.subr.bf16.mxu0 %v2246
        %2600 = vmatpush1.bf16.msra.mxu0 %v2245
        %2601 = vmatprep.subr.bf16.mxu0 %v2248
        %2602 = vmatpush1.bf16.msra.mxu0 %v2247
        %2603 = vmatprep.subr.bf16.mxu0 %v2250
        %2604 = vmatpush1.bf16.msra.mxu0 %v2249
        %2605 = vmatprep.subr.bf16.mxu0 %v2252
        %2606 = vmatpush1.bf16.msra.mxu0 %v2251
        %2607 = vmatprep.subr.bf16.mxu0 %v2254
        %2608 = vmatpush1.bf16.msra.mxu0 %v2253
        %2609 = vmatprep.subr.bf16.mxu0 %v2256
        %2610 = vmatpush1.bf16.msra.mxu0 %v2255
        %2611 = vmatprep.subr.bf16.mxu0 %v2258
        %2612 = vmatpush1.bf16.msra.mxu0 %v2257
        %2613 = vmatprep.subr.bf16.mxu0 %v2260
        %2614 = vmatpush1.bf16.msra.mxu0 %v2259
        %2615 = vmatprep.subr.bf16.mxu0 %v2262
        %2616 = vmatpush1.bf16.msra.mxu0 %v2261
        %2617 = vmatprep.subr.bf16.mxu0 %v2264
        %2618 = vmatpush1.bf16.msra.mxu0 %v2263
        %2619 = vmatprep.subr.bf16.mxu0 %v2266
        %2620 = vmatpush1.bf16.msra.mxu0 %v2265
        %2621 = vmatprep.subr.bf16.mxu0 %v2268
        %2622 = vmatpush1.bf16.msra.mxu0 %v2267
        %2623 = vmatprep.subr.bf16.mxu0 %v2270
        %2624 = vmatpush1.bf16.msra.mxu0 %v2269
        %2625 = vmatprep.subr.bf16.mxu0 %v2272
        %2626 = vmatpush1.bf16.msra.mxu0 %v2271
        %2627 = vmatprep.subr.bf16.mxu0 %v2274
        %2628 = vmatpush1.bf16.msra.mxu0 %v2273
        %2629 = vmatprep.mubr.bf16.mxu0 %v1800
        %2630 = vmatmul.mubr.bf16.gmra.mrb[0].mxu0 %v1799
        %v2631 = vpop.f32.mrb[0].mxu0
        %v2632 = vadd.f32 %v2519, %v2631
        %v2633 = vpop.f32.mrb[0].mxu0
        %v2634 = vadd.f32 %v2521, %v2633
        %v2635 = vpop.f32.mrb[0].mxu0
        %v2636 = vadd.f32 %v2523, %v2635
        %v2637 = vpop.f32.mrb[0].mxu0
        %v2638 = vadd.f32 %v2525, %v2637
        %2639 = vmatprep.mubr.bf16.mxu0 %v1806
        %2640 = vmatmul.mubr.bf16.gmra.mrb[0].mxu0 %v1805
        %v2641 = vpop.f32.mrb[0].mxu0
        %v2642 = vadd.f32 %v2529, %v2641
        %v2643 = vpop.f32.mrb[0].mxu0
        %v2644 = vadd.f32 %v2531, %v2643
        %v2645 = vpop.f32.mrb[0].mxu0
        %v2646 = vadd.f32 %v2533, %v2645
        %v2647 = vpop.f32.mrb[0].mxu0
        %v2648 = vadd.f32 %v2535, %v2647
        %2649 = vmatprep.mubr.bf16.mxu0 %v1812
        %2650 = vmatmul.mubr.bf16.gmra.mrb[0].mxu0 %v1811
        %v2651 = vpop.f32.mrb[0].mxu0
        %v2652 = vadd.f32 %v2539, %v2651
        %v2653 = vpop.f32.mrb[0].mxu0
        %v2654 = vadd.f32 %v2541, %v2653
        %v2655 = vpop.f32.mrb[0].mxu0
        %v2656 = vadd.f32 %v2543, %v2655
        %v2657 = vpop.f32.mrb[0].mxu0
        %v2658 = vadd.f32 %v2545, %v2657
        %2659 = vmatprep.mubr.bf16.mxu0 %v1818
        %2660 = vmatmul.mubr.bf16.gmra.mrb[0].mxu0 %v1817
        %v2661 = vpop.f32.mrb[0].mxu0
        %v2662 = vadd.f32 %v2549, %v2661
        %v2663 = vpop.f32.mrb[0].mxu0
        %v2664 = vadd.f32 %v2551, %v2663
        %v2665 = vpop.f32.mrb[0].mxu0
        %v2666 = vadd.f32 %v2553, %v2665
        %v2667 = vpop.f32.mrb[0].mxu0
        %v2668 = vadd.f32 %v2555, %v2667
        %2669 = vmatprep.mubr.bf16.mxu0 %v1824
        %2670 = vmatmul.mubr.bf16.gmra.mrb[0].mxu0 %v1823
        %v2671 = vpop.f32.mrb[0].mxu0
        %v2672 = vadd.f32 %v2559, %v2671
        %v2673 = vpop.f32.mrb[0].mxu0
        %v2674 = vadd.f32 %v2561, %v2673
        %v2675 = vpop.f32.mrb[0].mxu0
        %v2676 = vadd.f32 %v2563, %v2675
        %v2677 = vpop.f32.mrb[0].mxu0
        %v2678 = vadd.f32 %v2565, %v2677
        %2679 = vmatprep.mubr.bf16.mxu0 %v1830
        %2680 = vmatmul.mubr.bf16.gmra.mrb[0].mxu0 %v1829
        %v2681 = vpop.f32.mrb[0].mxu0
        %v2682 = vadd.f32 %v2569, %v2681
        %v2683 = vpop.f32.mrb[0].mxu0
        %v2684 = vadd.f32 %v2571, %v2683
        %v2685 = vpop.f32.mrb[0].mxu0
        %v2686 = vadd.f32 %v2573, %v2685
        %v2687 = vpop.f32.mrb[0].mxu0
        %v2688 = vadd.f32 %v2575, %v2687
        %2689 = vmatprep.mubr.bf16.mxu0 %v1836
        %2690 = vmatmul.mubr.bf16.gmra.mrb[0].mxu0 %v1835
        %v2691 = vpop.f32.mrb[0].mxu0
        %v2692 = vadd.f32 %v2579, %v2691
        %v2693 = vpop.f32.mrb[0].mxu0
        %v2694 = vadd.f32 %v2581, %v2693
        %v2695 = vpop.f32.mrb[0].mxu0
        %v2696 = vadd.f32 %v2583, %v2695
        %v2697 = vpop.f32.mrb[0].mxu0
        %v2698 = vadd.f32 %v2585, %v2697
        %2699 = vmatprep.mubr.bf16.mxu0 %v1842
        %2700 = vmatmul.mubr.bf16.gmra.mrb[0].mxu0 %v1841
        %v2701 = vpop.f32.mrb[0].mxu0
        %v2702 = vadd.f32 %v2589, %v2701
        %v2703 = vpop.f32.mrb[0].mxu0
        %v2704 = vadd.f32 %v2591, %v2703
        %v2705 = vpop.f32.mrb[0].mxu0
        %v2706 = vadd.f32 %v2593, %v2705
        %v2707 = vpop.f32.mrb[0].mxu0
        %v2708 = vadd.f32 %v2595, %v2707
        %2709 = vdwg.mxu0
        %s2710 = scalar_lea.vmem %s292, 96
        %v2711 = vld [vmem:[%s2710] sm:$0xff]
        %v2712 = vld [vmem:[%s2710 + $0x8] sm:$0xff]
        %v2713 = vld [vmem:[%s2710 + $0x10] sm:$0xff]
        %v2714 = vld [vmem:[%s2710 + $0x18] sm:$0xff]
        %v2715 = vld [vmem:[%s2710 + $0x20] sm:$0xff]
        %v2716 = vld [vmem:[%s2710 + $0x28] sm:$0xff]
        %v2717 = vld [vmem:[%s2710 + $0x30] sm:$0xff]
        %v2718 = vld [vmem:[%s2710 + $0x38] sm:$0xff]
        %v2719 = vld [vmem:[%s2710 + $0x40] sm:$0xff]
        %v2720 = vld [vmem:[%s2710 + $0x48] sm:$0xff]
        %v2721 = vld [vmem:[%s2710 + $0x50] sm:$0xff]
        %v2722 = vld [vmem:[%s2710 + $0x58] sm:$0xff]
        %v2723 = vld [vmem:[%s2710 + $0x60] sm:$0xff]
        %v2724 = vld [vmem:[%s2710 + $0x68] sm:$0xff]
        %v2725 = vld [vmem:[%s2710 + $0x70] sm:$0xff]
        %v2726 = vld [vmem:[%s2710 + $0x78] sm:$0xff]
        %v2727 = vld [vmem:[%s2710 + $0x80] sm:$0xff]
        %v2728 = vld [vmem:[%s2710 + $0x88] sm:$0xff]
        %v2729 = vld [vmem:[%s2710 + $0x90] sm:$0xff]
        %v2730 = vld [vmem:[%s2710 + $0x98] sm:$0xff]
        %v2731 = vld [vmem:[%s2710 + $0xa0] sm:$0xff]
        %v2732 = vld [vmem:[%s2710 + $0xa8] sm:$0xff]
        %v2733 = vld [vmem:[%s2710 + $0xb0] sm:$0xff]
        %v2734 = vld [vmem:[%s2710 + $0xb8] sm:$0xff]
        %v2735 = vld [vmem:[%s2710 + $0xc0] sm:$0xff]
        %v2736 = vld [vmem:[%s2710 + $0xc8] sm:$0xff]
        %v2737 = vld [vmem:[%s2710 + $0xd0] sm:$0xff]
        %v2738 = vld [vmem:[%s2710 + $0xd8] sm:$0xff]
        %v2739 = vld [vmem:[%s2710 + $0xe0] sm:$0xff]
        %v2740 = vld [vmem:[%s2710 + $0xe8] sm:$0xff]
        %v2741 = vld [vmem:[%s2710 + $0xf0] sm:$0xff]
        %v2742 = vld [vmem:[%s2710 + $0xf8] sm:$0xff]
        %v2743 = vld [vmem:[%s2710 + $0x100] sm:$0xff]
        %v2744 = vld [vmem:[%s2710 + $0x108] sm:$0xff]
        %v2745 = vld [vmem:[%s2710 + $0x110] sm:$0xff]
        %v2746 = vld [vmem:[%s2710 + $0x118] sm:$0xff]
        %v2747 = vld [vmem:[%s2710 + $0x120] sm:$0xff]
        %v2748 = vld [vmem:[%s2710 + $0x128] sm:$0xff]
        %v2749 = vld [vmem:[%s2710 + $0x130] sm:$0xff]
        %v2750 = vld [vmem:[%s2710 + $0x138] sm:$0xff]
        %v2751 = vld [vmem:[%s2710 + $0x140] sm:$0xff]
        %v2752 = vld [vmem:[%s2710 + $0x148] sm:$0xff]
        %v2753 = vld [vmem:[%s2710 + $0x150] sm:$0xff]
        %v2754 = vld [vmem:[%s2710 + $0x158] sm:$0xff]
        %v2755 = vld [vmem:[%s2710 + $0x160] sm:$0xff]
        %v2756 = vld [vmem:[%s2710 + $0x168] sm:$0xff]
        %v2757 = vld [vmem:[%s2710 + $0x170] sm:$0xff]
        %v2758 = vld [vmem:[%s2710 + $0x178] sm:$0xff]
        %s2759 = scalar_lea.vmem %s1, 1536
        %v2760 = vld [vmem:[%s2759] sm:$0xff]
        %v2761 = vld [vmem:[%s2759 + $0x8] sm:$0xff]
        %v2762 = vld [vmem:[%s2759 + $0x10] sm:$0xff]
        %v2763 = vld [vmem:[%s2759 + $0x18] sm:$0xff]
        %v2764 = vld [vmem:[%s2759 + $0x20] sm:$0xff]
        %v2765 = vld [vmem:[%s2759 + $0x28] sm:$0xff]
        %v2766 = vld [vmem:[%s2759 + $0x30] sm:$0xff]
        %v2767 = vld [vmem:[%s2759 + $0x38] sm:$0xff]
        %v2768 = vld [vmem:[%s2759 + $0x40] sm:$0xff]
        %v2769 = vld [vmem:[%s2759 + $0x48] sm:$0xff]
        %v2770 = vld [vmem:[%s2759 + $0x50] sm:$0xff]
        %v2771 = vld [vmem:[%s2759 + $0x58] sm:$0xff]
        %v2772 = vld [vmem:[%s2759 + $0x60] sm:$0xff]
        %v2773 = vld [vmem:[%s2759 + $0x68] sm:$0xff]
        %v2774 = vld [vmem:[%s2759 + $0x70] sm:$0xff]
        %v2775 = vld [vmem:[%s2759 + $0x78] sm:$0xff]
        %v2776 = vld [vmem:[%s2759 + $0x80] sm:$0xff]
        %v2777 = vld [vmem:[%s2759 + $0x88] sm:$0xff]
        %v2778 = vld [vmem:[%s2759 + $0x90] sm:$0xff]
        %v2779 = vld [vmem:[%s2759 + $0x98] sm:$0xff]
        %v2780 = vld [vmem:[%s2759 + $0xa0] sm:$0xff]
        %v2781 = vld [vmem:[%s2759 + $0xa8] sm:$0xff]
        %v2782 = vld [vmem:[%s2759 + $0xb0] sm:$0xff]
        %v2783 = vld [vmem:[%s2759 + $0xb8] sm:$0xff]
        %v2784 = vld [vmem:[%s2759 + $0xc0] sm:$0xff]
        %v2785 = vld [vmem:[%s2759 + $0xc8] sm:$0xff]
        %v2786 = vld [vmem:[%s2759 + $0xd0] sm:$0xff]
        %v2787 = vld [vmem:[%s2759 + $0xd8] sm:$0xff]
        %v2788 = vld [vmem:[%s2759 + $0xe0] sm:$0xff]
        %v2789 = vld [vmem:[%s2759 + $0xe8] sm:$0xff]
        %v2790 = vld [vmem:[%s2759 + $0xf0] sm:$0xff]
        %v2791 = vld [vmem:[%s2759 + $0xf8] sm:$0xff]
        %v2792 = vld [vmem:[%s2759 + $0x100] sm:$0xff]
        %v2793 = vld [vmem:[%s2759 + $0x108] sm:$0xff]
        %v2794 = vld [vmem:[%s2759 + $0x110] sm:$0xff]
        %v2795 = vld [vmem:[%s2759 + $0x118] sm:$0xff]
        %v2796 = vld [vmem:[%s2759 + $0x120] sm:$0xff]
        %v2797 = vld [vmem:[%s2759 + $0x128] sm:$0xff]
        %v2798 = vld [vmem:[%s2759 + $0x130] sm:$0xff]
        %v2799 = vld [vmem:[%s2759 + $0x138] sm:$0xff]
        %v2800 = vld [vmem:[%s2759 + $0x140] sm:$0xff]
        %v2801 = vld [vmem:[%s2759 + $0x148] sm:$0xff]
        %v2802 = vld [vmem:[%s2759 + $0x150] sm:$0xff]
        %v2803 = vld [vmem:[%s2759 + $0x158] sm:$0xff]
        %v2804 = vld [vmem:[%s2759 + $0x160] sm:$0xff]
        %v2805 = vld [vmem:[%s2759 + $0x168] sm:$0xff]
        %v2806 = vld [vmem:[%s2759 + $0x170] sm:$0xff]
        %v2807 = vld [vmem:[%s2759 + $0x178] sm:$0xff]
        %v2808 = vld [vmem:[%s2759 + $0x180] sm:$0xff]
        %v2809 = vld [vmem:[%s2759 + $0x188] sm:$0xff]
        %v2810 = vld [vmem:[%s2759 + $0x190] sm:$0xff]
        %v2811 = vld [vmem:[%s2759 + $0x198] sm:$0xff]
        %v2812 = vld [vmem:[%s2759 + $0x1a0] sm:$0xff]
        %v2813 = vld [vmem:[%s2759 + $0x1a8] sm:$0xff]
        %v2814 = vld [vmem:[%s2759 + $0x1b0] sm:$0xff]
        %v2815 = vld [vmem:[%s2759 + $0x1b8] sm:$0xff]
        %v2816 = vld [vmem:[%s2759 + $0x1c0] sm:$0xff]
        %v2817 = vld [vmem:[%s2759 + $0x1c8] sm:$0xff]
        %v2818 = vld [vmem:[%s2759 + $0x1d0] sm:$0xff]
        %v2819 = vld [vmem:[%s2759 + $0x1d8] sm:$0xff]
        %v2820 = vld [vmem:[%s2759 + $0x1e0] sm:$0xff]
        %v2821 = vld [vmem:[%s2759 + $0x1e8] sm:$0xff]
        %v2822 = vld [vmem:[%s2759 + $0x1f0] sm:$0xff]
        %v2823 = vld [vmem:[%s2759 + $0x1f8] sm:$0xff]
        %v2824 = vld [vmem:[%s2759 + $0x200] sm:$0xff]
        %v2825 = vld [vmem:[%s2759 + $0x208] sm:$0xff]
        %v2826 = vld [vmem:[%s2759 + $0x210] sm:$0xff]
        %v2827 = vld [vmem:[%s2759 + $0x218] sm:$0xff]
        %v2828 = vld [vmem:[%s2759 + $0x220] sm:$0xff]
        %v2829 = vld [vmem:[%s2759 + $0x228] sm:$0xff]
        %v2830 = vld [vmem:[%s2759 + $0x230] sm:$0xff]
        %v2831 = vld [vmem:[%s2759 + $0x238] sm:$0xff]
        %v2832 = vld [vmem:[%s2759 + $0x240] sm:$0xff]
        %v2833 = vld [vmem:[%s2759 + $0x248] sm:$0xff]
        %v2834 = vld [vmem:[%s2759 + $0x250] sm:$0xff]
        %v2835 = vld [vmem:[%s2759 + $0x258] sm:$0xff]
        %v2836 = vld [vmem:[%s2759 + $0x260] sm:$0xff]
        %v2837 = vld [vmem:[%s2759 + $0x268] sm:$0xff]
        %v2838 = vld [vmem:[%s2759 + $0x270] sm:$0xff]
        %v2839 = vld [vmem:[%s2759 + $0x278] sm:$0xff]
        %v2840 = vld [vmem:[%s2759 + $0x280] sm:$0xff]
        %v2841 = vld [vmem:[%s2759 + $0x288] sm:$0xff]
        %v2842 = vld [vmem:[%s2759 + $0x290] sm:$0xff]
        %v2843 = vld [vmem:[%s2759 + $0x298] sm:$0xff]
        %v2844 = vld [vmem:[%s2759 + $0x2a0] sm:$0xff]
        %v2845 = vld [vmem:[%s2759 + $0x2a8] sm:$0xff]
        %v2846 = vld [vmem:[%s2759 + $0x2b0] sm:$0xff]
        %v2847 = vld [vmem:[%s2759 + $0x2b8] sm:$0xff]
        %v2848 = vld [vmem:[%s2759 + $0x2c0] sm:$0xff]
        %v2849 = vld [vmem:[%s2759 + $0x2c8] sm:$0xff]
        %v2850 = vld [vmem:[%s2759 + $0x2d0] sm:$0xff]
        %v2851 = vld [vmem:[%s2759 + $0x2d8] sm:$0xff]
        %v2852 = vld [vmem:[%s2759 + $0x2e0] sm:$0xff]
        %v2853 = vld [vmem:[%s2759 + $0x2e8] sm:$0xff]
        %v2854 = vld [vmem:[%s2759 + $0x2f0] sm:$0xff]
        %v2855 = vld [vmem:[%s2759 + $0x2f8] sm:$0xff]
        %v2904 = vunpack.c.l.b16 %v2711
        %v2905 = vunpack.c.h.b16 %v2711
        %v2906 = vunpack.c.l.b16 %v2712
        %v2907 = vunpack.c.h.b16 %v2712
        %v2908 = vunpack.c.l.b16 %v2713
        %v2909 = vunpack.c.h.b16 %v2713
        %v2910 = vunpack.c.l.b16 %v2714
        %v2911 = vunpack.c.h.b16 %v2714
        %v2912 = vunpack.c.l.b16 %v2715
        %v2913 = vunpack.c.h.b16 %v2715
        %v2914 = vunpack.c.l.b16 %v2716
        %v2915 = vunpack.c.h.b16 %v2716
        %v2916 = vunpack.c.l.b16 %v2717
        %v2917 = vunpack.c.h.b16 %v2717
        %v2918 = vunpack.c.l.b16 %v2718
        %v2919 = vunpack.c.h.b16 %v2718
        %v2920 = vunpack.c.l.b16 %v2719
        %v2921 = vunpack.c.h.b16 %v2719
        %v2922 = vunpack.c.l.b16 %v2720
        %v2923 = vunpack.c.h.b16 %v2720
        %v2924 = vunpack.c.l.b16 %v2721
        %v2925 = vunpack.c.h.b16 %v2721
        %v2926 = vunpack.c.l.b16 %v2722
        %v2927 = vunpack.c.h.b16 %v2722
        %v2928 = vunpack.c.l.b16 %v2723
        %v2929 = vunpack.c.h.b16 %v2723
        %v2930 = vunpack.c.l.b16 %v2724
        %v2931 = vunpack.c.h.b16 %v2724
        %v2932 = vunpack.c.l.b16 %v2725
        %v2933 = vunpack.c.h.b16 %v2725
        %v2934 = vunpack.c.l.b16 %v2726
        %v2935 = vunpack.c.h.b16 %v2726
        %v2936 = vunpack.c.l.b16 %v2727
        %v2937 = vunpack.c.h.b16 %v2727
        %v2938 = vunpack.c.l.b16 %v2728
        %v2939 = vunpack.c.h.b16 %v2728
        %v2940 = vunpack.c.l.b16 %v2729
        %v2941 = vunpack.c.h.b16 %v2729
        %v2942 = vunpack.c.l.b16 %v2730
        %v2943 = vunpack.c.h.b16 %v2730
        %v2944 = vunpack.c.l.b16 %v2731
        %v2945 = vunpack.c.h.b16 %v2731
        %v2946 = vunpack.c.l.b16 %v2732
        %v2947 = vunpack.c.h.b16 %v2732
        %v2948 = vunpack.c.l.b16 %v2733
        %v2949 = vunpack.c.h.b16 %v2733
        %v2950 = vunpack.c.l.b16 %v2734
        %v2951 = vunpack.c.h.b16 %v2734
        %v2952 = vunpack.c.l.b16 %v2735
        %v2953 = vunpack.c.h.b16 %v2735
        %v2954 = vunpack.c.l.b16 %v2736
        %v2955 = vunpack.c.h.b16 %v2736
        %v2956 = vunpack.c.l.b16 %v2737
        %v2957 = vunpack.c.h.b16 %v2737
        %v2958 = vunpack.c.l.b16 %v2738
        %v2959 = vunpack.c.h.b16 %v2738
        %v2960 = vunpack.c.l.b16 %v2739
        %v2961 = vunpack.c.h.b16 %v2739
        %v2962 = vunpack.c.l.b16 %v2740
        %v2963 = vunpack.c.h.b16 %v2740
        %v2964 = vunpack.c.l.b16 %v2741
        %v2965 = vunpack.c.h.b16 %v2741
        %v2966 = vunpack.c.l.b16 %v2742
        %v2967 = vunpack.c.h.b16 %v2742
        %v2968 = vunpack.c.l.b16 %v2743
        %v2969 = vunpack.c.h.b16 %v2743
        %v2970 = vunpack.c.l.b16 %v2744
        %v2971 = vunpack.c.h.b16 %v2744
        %v2972 = vunpack.c.l.b16 %v2745
        %v2973 = vunpack.c.h.b16 %v2745
        %v2974 = vunpack.c.l.b16 %v2746
        %v2975 = vunpack.c.h.b16 %v2746
        %v2976 = vunpack.c.l.b16 %v2747
        %v2977 = vunpack.c.h.b16 %v2747
        %v2978 = vunpack.c.l.b16 %v2748
        %v2979 = vunpack.c.h.b16 %v2748
        %v2980 = vunpack.c.l.b16 %v2749
        %v2981 = vunpack.c.h.b16 %v2749
        %v2982 = vunpack.c.l.b16 %v2750
        %v2983 = vunpack.c.h.b16 %v2750
        %v2984 = vunpack.c.l.b16 %v2751
        %v2985 = vunpack.c.h.b16 %v2751
        %v2986 = vunpack.c.l.b16 %v2752
        %v2987 = vunpack.c.h.b16 %v2752
        %v2988 = vunpack.c.l.b16 %v2753
        %v2989 = vunpack.c.h.b16 %v2753
        %v2990 = vunpack.c.l.b16 %v2754
        %v2991 = vunpack.c.h.b16 %v2754
        %v2992 = vunpack.c.l.b16 %v2755
        %v2993 = vunpack.c.h.b16 %v2755
        %v2994 = vunpack.c.l.b16 %v2756
        %v2995 = vunpack.c.h.b16 %v2756
        %v2996 = vunpack.c.l.b16 %v2757
        %v2997 = vunpack.c.h.b16 %v2757
        %v2998 = vunpack.c.l.b16 %v2758
        %v2999 = vunpack.c.h.b16 %v2758
        %v3000 = vpack.c.b16 %v2910, %v2904
        %v3001 = vpack.c.b16 %v2911, %v2905
        %v3002 = vpack.c.b16 %v2912, %v2906
        %v3003 = vpack.c.b16 %v2913, %v2907
        %v3004 = vpack.c.b16 %v2914, %v2908
        %v3005 = vpack.c.b16 %v2915, %v2909
        %v3006 = vpack.c.b16 %v2922, %v2916
        %v3007 = vpack.c.b16 %v2923, %v2917
        %v3008 = vpack.c.b16 %v2924, %v2918
        %v3009 = vpack.c.b16 %v2925, %v2919
        %v3010 = vpack.c.b16 %v2926, %v2920
        %v3011 = vpack.c.b16 %v2927, %v2921
        %v3012 = vpack.c.b16 %v2934, %v2928
        %v3013 = vpack.c.b16 %v2935, %v2929
        %v3014 = vpack.c.b16 %v2936, %v2930
        %v3015 = vpack.c.b16 %v2937, %v2931
        %v3016 = vpack.c.b16 %v2938, %v2932
        %v3017 = vpack.c.b16 %v2939, %v2933
        %v3018 = vpack.c.b16 %v2946, %v2940
        %v3019 = vpack.c.b16 %v2947, %v2941
        %v3020 = vpack.c.b16 %v2948, %v2942
        %v3021 = vpack.c.b16 %v2949, %v2943
        %v3022 = vpack.c.b16 %v2950, %v2944
        %v3023 = vpack.c.b16 %v2951, %v2945
        %v3024 = vpack.c.b16 %v2958, %v2952
        %v3025 = vpack.c.b16 %v2959, %v2953
        %v3026 = vpack.c.b16 %v2960, %v2954
        %v3027 = vpack.c.b16 %v2961, %v2955
        %v3028 = vpack.c.b16 %v2962, %v2956
        %v3029 = vpack.c.b16 %v2963, %v2957
        %v3030 = vpack.c.b16 %v2970, %v2964
        %v3031 = vpack.c.b16 %v2971, %v2965
        %v3032 = vpack.c.b16 %v2972, %v2966
        %v3033 = vpack.c.b16 %v2973, %v2967
        %v3034 = vpack.c.b16 %v2974, %v2968
        %v3035 = vpack.c.b16 %v2975, %v2969
        %v3036 = vpack.c.b16 %v2982, %v2976
        %v3037 = vpack.c.b16 %v2983, %v2977
        %v3038 = vpack.c.b16 %v2984, %v2978
        %v3039 = vpack.c.b16 %v2985, %v2979
        %v3040 = vpack.c.b16 %v2986, %v2980
        %v3041 = vpack.c.b16 %v2987, %v2981
        %v3042 = vpack.c.b16 %v2994, %v2988
        %v3043 = vpack.c.b16 %v2995, %v2989
        %v3044 = vpack.c.b16 %v2996, %v2990
        %v3045 = vpack.c.b16 %v2997, %v2991
        %v3046 = vpack.c.b16 %v2998, %v2992
        %v3047 = vpack.c.b16 %v2999, %v2993
        %v3192 = vunpack.c.l.b16 %v2760
        %v3193 = vunpack.c.h.b16 %v2760
        %v3194 = vunpack.c.l.b16 %v2761
        %v3195 = vunpack.c.h.b16 %v2761
        %v3196 = vunpack.c.l.b16 %v2762
        %v3197 = vunpack.c.h.b16 %v2762
        %v3198 = vunpack.c.l.b16 %v2763
        %v3199 = vunpack.c.h.b16 %v2763
        %v3200 = vunpack.c.l.b16 %v2764
        %v3201 = vunpack.c.h.b16 %v2764
        %v3202 = vunpack.c.l.b16 %v2765
        %v3203 = vunpack.c.h.b16 %v2765
        %v3204 = vunpack.c.l.b16 %v2766
        %v3205 = vunpack.c.h.b16 %v2766
        %v3206 = vunpack.c.l.b16 %v2767
        %v3207 = vunpack.c.h.b16 %v2767
        %v3208 = vunpack.c.l.b16 %v2768
        %v3209 = vunpack.c.h.b16 %v2768
        %v3210 = vunpack.c.l.b16 %v2769
        %v3211 = vunpack.c.h.b16 %v2769
        %v3212 = vunpack.c.l.b16 %v2770
        %v3213 = vunpack.c.h.b16 %v2770
        %v3214 = vunpack.c.l.b16 %v2771
        %v3215 = vunpack.c.h.b16 %v2771
        %v3216 = vunpack.c.l.b16 %v2772
        %v3217 = vunpack.c.h.b16 %v2772
        %v3218 = vunpack.c.l.b16 %v2773
        %v3219 = vunpack.c.h.b16 %v2773
        %v3220 = vunpack.c.l.b16 %v2774
        %v3221 = vunpack.c.h.b16 %v2774
        %v3222 = vunpack.c.l.b16 %v2775
        %v3223 = vunpack.c.h.b16 %v2775
        %v3224 = vunpack.c.l.b16 %v2776
        %v3225 = vunpack.c.h.b16 %v2776
        %v3226 = vunpack.c.l.b16 %v2777
        %v3227 = vunpack.c.h.b16 %v2777
        %v3228 = vunpack.c.l.b16 %v2778
        %v3229 = vunpack.c.h.b16 %v2778
        %v3230 = vunpack.c.l.b16 %v2779
        %v3231 = vunpack.c.h.b16 %v2779
        %v3232 = vunpack.c.l.b16 %v2780
        %v3233 = vunpack.c.h.b16 %v2780
        %v3234 = vunpack.c.l.b16 %v2781
        %v3235 = vunpack.c.h.b16 %v2781
        %v3236 = vunpack.c.l.b16 %v2782
        %v3237 = vunpack.c.h.b16 %v2782
        %v3238 = vunpack.c.l.b16 %v2783
        %v3239 = vunpack.c.h.b16 %v2783
        %v3240 = vunpack.c.l.b16 %v2784
        %v3241 = vunpack.c.h.b16 %v2784
        %v3242 = vunpack.c.l.b16 %v2785
        %v3243 = vunpack.c.h.b16 %v2785
        %v3244 = vunpack.c.l.b16 %v2786
        %v3245 = vunpack.c.h.b16 %v2786
        %v3246 = vunpack.c.l.b16 %v2787
        %v3247 = vunpack.c.h.b16 %v2787
        %v3248 = vunpack.c.l.b16 %v2788
        %v3249 = vunpack.c.h.b16 %v2788
        %v3250 = vunpack.c.l.b16 %v2789
        %v3251 = vunpack.c.h.b16 %v2789
        %v3252 = vunpack.c.l.b16 %v2790
        %v3253 = vunpack.c.h.b16 %v2790
        %v3254 = vunpack.c.l.b16 %v2791
        %v3255 = vunpack.c.h.b16 %v2791
        %v3256 = vunpack.c.l.b16 %v2792
        %v3257 = vunpack.c.h.b16 %v2792
        %v3258 = vunpack.c.l.b16 %v2793
        %v3259 = vunpack.c.h.b16 %v2793
        %v3260 = vunpack.c.l.b16 %v2794
        %v3261 = vunpack.c.h.b16 %v2794
        %v3262 = vunpack.c.l.b16 %v2795
        %v3263 = vunpack.c.h.b16 %v2795
        %v3264 = vunpack.c.l.b16 %v2796
        %v3265 = vunpack.c.h.b16 %v2796
        %v3266 = vunpack.c.l.b16 %v2797
        %v3267 = vunpack.c.h.b16 %v2797
        %v3268 = vunpack.c.l.b16 %v2798
        %v3269 = vunpack.c.h.b16 %v2798
        %v3270 = vunpack.c.l.b16 %v2799
        %v3271 = vunpack.c.h.b16 %v2799
        %v3272 = vunpack.c.l.b16 %v2800
        %v3273 = vunpack.c.h.b16 %v2800
        %v3274 = vunpack.c.l.b16 %v2801
        %v3275 = vunpack.c.h.b16 %v2801
        %v3276 = vunpack.c.l.b16 %v2802
        %v3277 = vunpack.c.h.b16 %v2802
        %v3278 = vunpack.c.l.b16 %v2803
        %v3279 = vunpack.c.h.b16 %v2803
        %v3280 = vunpack.c.l.b16 %v2804
        %v3281 = vunpack.c.h.b16 %v2804
        %v3282 = vunpack.c.l.b16 %v2805
        %v3283 = vunpack.c.h.b16 %v2805
        %v3284 = vunpack.c.l.b16 %v2806
        %v3285 = vunpack.c.h.b16 %v2806
        %v3286 = vunpack.c.l.b16 %v2807
        %v3287 = vunpack.c.h.b16 %v2807
        %v3288 = vunpack.c.l.b16 %v2808
        %v3289 = vunpack.c.h.b16 %v2808
        %v3290 = vunpack.c.l.b16 %v2809
        %v3291 = vunpack.c.h.b16 %v2809
        %v3292 = vunpack.c.l.b16 %v2810
        %v3293 = vunpack.c.h.b16 %v2810
        %v3294 = vunpack.c.l.b16 %v2811
        %v3295 = vunpack.c.h.b16 %v2811
        %v3296 = vunpack.c.l.b16 %v2812
        %v3297 = vunpack.c.h.b16 %v2812
        %v3298 = vunpack.c.l.b16 %v2813
        %v3299 = vunpack.c.h.b16 %v2813
        %v3300 = vunpack.c.l.b16 %v2814
        %v3301 = vunpack.c.h.b16 %v2814
        %v3302 = vunpack.c.l.b16 %v2815
        %v3303 = vunpack.c.h.b16 %v2815
        %v3304 = vunpack.c.l.b16 %v2816
        %v3305 = vunpack.c.h.b16 %v2816
        %v3306 = vunpack.c.l.b16 %v2817
        %v3307 = vunpack.c.h.b16 %v2817
        %v3308 = vunpack.c.l.b16 %v2818
        %v3309 = vunpack.c.h.b16 %v2818
        %v3310 = vunpack.c.l.b16 %v2819
        %v3311 = vunpack.c.h.b16 %v2819
        %v3312 = vunpack.c.l.b16 %v2820
        %v3313 = vunpack.c.h.b16 %v2820
        %v3314 = vunpack.c.l.b16 %v2821
        %v3315 = vunpack.c.h.b16 %v2821
        %v3316 = vunpack.c.l.b16 %v2822
        %v3317 = vunpack.c.h.b16 %v2822
        %v3318 = vunpack.c.l.b16 %v2823
        %v3319 = vunpack.c.h.b16 %v2823
        %v3320 = vunpack.c.l.b16 %v2824
        %v3321 = vunpack.c.h.b16 %v2824
        %v3322 = vunpack.c.l.b16 %v2825
        %v3323 = vunpack.c.h.b16 %v2825
        %v3324 = vunpack.c.l.b16 %v2826
        %v3325 = vunpack.c.h.b16 %v2826
        %v3326 = vunpack.c.l.b16 %v2827
        %v3327 = vunpack.c.h.b16 %v2827
        %v3328 = vunpack.c.l.b16 %v2828
        %v3329 = vunpack.c.h.b16 %v2828
        %v3330 = vunpack.c.l.b16 %v2829
        %v3331 = vunpack.c.h.b16 %v2829
        %v3332 = vunpack.c.l.b16 %v2830
        %v3333 = vunpack.c.h.b16 %v2830
        %v3334 = vunpack.c.l.b16 %v2831
        %v3335 = vunpack.c.h.b16 %v2831
        %v3336 = vunpack.c.l.b16 %v2832
        %v3337 = vunpack.c.h.b16 %v2832
        %v3338 = vunpack.c.l.b16 %v2833
        %v3339 = vunpack.c.h.b16 %v2833
        %v3340 = vunpack.c.l.b16 %v2834
        %v3341 = vunpack.c.h.b16 %v2834
        %v3342 = vunpack.c.l.b16 %v2835
        %v3343 = vunpack.c.h.b16 %v2835
        %v3344 = vunpack.c.l.b16 %v2836
        %v3345 = vunpack.c.h.b16 %v2836
        %v3346 = vunpack.c.l.b16 %v2837
        %v3347 = vunpack.c.h.b16 %v2837
        %v3348 = vunpack.c.l.b16 %v2838
        %v3349 = vunpack.c.h.b16 %v2838
        %v3350 = vunpack.c.l.b16 %v2839
        %v3351 = vunpack.c.h.b16 %v2839
        %v3352 = vunpack.c.l.b16 %v2840
        %v3353 = vunpack.c.h.b16 %v2840
        %v3354 = vunpack.c.l.b16 %v2841
        %v3355 = vunpack.c.h.b16 %v2841
        %v3356 = vunpack.c.l.b16 %v2842
        %v3357 = vunpack.c.h.b16 %v2842
        %v3358 = vunpack.c.l.b16 %v2843
        %v3359 = vunpack.c.h.b16 %v2843
        %v3360 = vunpack.c.l.b16 %v2844
        %v3361 = vunpack.c.h.b16 %v2844
        %v3362 = vunpack.c.l.b16 %v2845
        %v3363 = vunpack.c.h.b16 %v2845
        %v3364 = vunpack.c.l.b16 %v2846
        %v3365 = vunpack.c.h.b16 %v2846
        %v3366 = vunpack.c.l.b16 %v2847
        %v3367 = vunpack.c.h.b16 %v2847
        %v3368 = vunpack.c.l.b16 %v2848
        %v3369 = vunpack.c.h.b16 %v2848
        %v3370 = vunpack.c.l.b16 %v2849
        %v3371 = vunpack.c.h.b16 %v2849
        %v3372 = vunpack.c.l.b16 %v2850
        %v3373 = vunpack.c.h.b16 %v2850
        %v3374 = vunpack.c.l.b16 %v2851
        %v3375 = vunpack.c.h.b16 %v2851
        %v3376 = vunpack.c.l.b16 %v2852
        %v3377 = vunpack.c.h.b16 %v2852
        %v3378 = vunpack.c.l.b16 %v2853
        %v3379 = vunpack.c.h.b16 %v2853
        %v3380 = vunpack.c.l.b16 %v2854
        %v3381 = vunpack.c.h.b16 %v2854
        %v3382 = vunpack.c.l.b16 %v2855
        %v3383 = vunpack.c.h.b16 %v2855
        %v3384 = vpack.c.b16 %v3194, %v3192
        %v3385 = vpack.c.b16 %v3195, %v3193
        %v3386 = vpack.c.b16 %v3198, %v3196
        %v3387 = vpack.c.b16 %v3199, %v3197
        %v3388 = vpack.c.b16 %v3202, %v3200
        %v3389 = vpack.c.b16 %v3203, %v3201
        %v3390 = vpack.c.b16 %v3206, %v3204
        %v3391 = vpack.c.b16 %v3207, %v3205
        %v3392 = vpack.c.b16 %v3210, %v3208
        %v3393 = vpack.c.b16 %v3211, %v3209
        %v3394 = vpack.c.b16 %v3214, %v3212
        %v3395 = vpack.c.b16 %v3215, %v3213
        %v3396 = vpack.c.b16 %v3218, %v3216
        %v3397 = vpack.c.b16 %v3219, %v3217
        %v3398 = vpack.c.b16 %v3222, %v3220
        %v3399 = vpack.c.b16 %v3223, %v3221
        %v3400 = vpack.c.b16 %v3226, %v3224
        %v3401 = vpack.c.b16 %v3227, %v3225
        %v3402 = vpack.c.b16 %v3230, %v3228
        %v3403 = vpack.c.b16 %v3231, %v3229
        %v3404 = vpack.c.b16 %v3234, %v3232
        %v3405 = vpack.c.b16 %v3235, %v3233
        %v3406 = vpack.c.b16 %v3238, %v3236
        %v3407 = vpack.c.b16 %v3239, %v3237
        %v3408 = vpack.c.b16 %v3242, %v3240
        %v3409 = vpack.c.b16 %v3243, %v3241
        %v3410 = vpack.c.b16 %v3246, %v3244
        %v3411 = vpack.c.b16 %v3247, %v3245
        %v3412 = vpack.c.b16 %v3250, %v3248
        %v3413 = vpack.c.b16 %v3251, %v3249
        %v3414 = vpack.c.b16 %v3254, %v3252
        %v3415 = vpack.c.b16 %v3255, %v3253
        %v3416 = vpack.c.b16 %v3258, %v3256
        %v3417 = vpack.c.b16 %v3259, %v3257
        %v3418 = vpack.c.b16 %v3262, %v3260
        %v3419 = vpack.c.b16 %v3263, %v3261
        %v3420 = vpack.c.b16 %v3266, %v3264
        %v3421 = vpack.c.b16 %v3267, %v3265
        %v3422 = vpack.c.b16 %v3270, %v3268
        %v3423 = vpack.c.b16 %v3271, %v3269
        %v3424 = vpack.c.b16 %v3274, %v3272
        %v3425 = vpack.c.b16 %v3275, %v3273
        %v3426 = vpack.c.b16 %v3278, %v3276
        %v3427 = vpack.c.b16 %v3279, %v3277
        %v3428 = vpack.c.b16 %v3282, %v3280
        %v3429 = vpack.c.b16 %v3283, %v3281
        %v3430 = vpack.c.b16 %v3286, %v3284
        %v3431 = vpack.c.b16 %v3287, %v3285
        %v3432 = vpack.c.b16 %v3290, %v3288
        %v3433 = vpack.c.b16 %v3291, %v3289
        %v3434 = vpack.c.b16 %v3294, %v3292
        %v3435 = vpack.c.b16 %v3295, %v3293
        %v3436 = vpack.c.b16 %v3298, %v3296
        %v3437 = vpack.c.b16 %v3299, %v3297
        %v3438 = vpack.c.b16 %v3302, %v3300
        %v3439 = vpack.c.b16 %v3303, %v3301
        %v3440 = vpack.c.b16 %v3306, %v3304
        %v3441 = vpack.c.b16 %v3307, %v3305
        %v3442 = vpack.c.b16 %v3310, %v3308
        %v3443 = vpack.c.b16 %v3311, %v3309
        %v3444 = vpack.c.b16 %v3314, %v3312
        %v3445 = vpack.c.b16 %v3315, %v3313
        %v3446 = vpack.c.b16 %v3318, %v3316
        %v3447 = vpack.c.b16 %v3319, %v3317
        %v3448 = vpack.c.b16 %v3322, %v3320
        %v3449 = vpack.c.b16 %v3323, %v3321
        %v3450 = vpack.c.b16 %v3326, %v3324
        %v3451 = vpack.c.b16 %v3327, %v3325
        %v3452 = vpack.c.b16 %v3330, %v3328
        %v3453 = vpack.c.b16 %v3331, %v3329
        %v3454 = vpack.c.b16 %v3334, %v3332
        %v3455 = vpack.c.b16 %v3335, %v3333
        %v3456 = vpack.c.b16 %v3338, %v3336
        %v3457 = vpack.c.b16 %v3339, %v3337
        %v3458 = vpack.c.b16 %v3342, %v3340
        %v3459 = vpack.c.b16 %v3343, %v3341
        %v3460 = vpack.c.b16 %v3346, %v3344
        %v3461 = vpack.c.b16 %v3347, %v3345
        %v3462 = vpack.c.b16 %v3350, %v3348
        %v3463 = vpack.c.b16 %v3351, %v3349
        %v3464 = vpack.c.b16 %v3354, %v3352
        %v3465 = vpack.c.b16 %v3355, %v3353
        %v3466 = vpack.c.b16 %v3358, %v3356
        %v3467 = vpack.c.b16 %v3359, %v3357
        %v3468 = vpack.c.b16 %v3362, %v3360
        %v3469 = vpack.c.b16 %v3363, %v3361
        %v3470 = vpack.c.b16 %v3366, %v3364
        %v3471 = vpack.c.b16 %v3367, %v3365
        %v3472 = vpack.c.b16 %v3370, %v3368
        %v3473 = vpack.c.b16 %v3371, %v3369
        %v3474 = vpack.c.b16 %v3374, %v3372
        %v3475 = vpack.c.b16 %v3375, %v3373
        %v3476 = vpack.c.b16 %v3378, %v3376
        %v3477 = vpack.c.b16 %v3379, %v3377
        %v3478 = vpack.c.b16 %v3382, %v3380
        %v3479 = vpack.c.b16 %v3383, %v3381
        %3576 = vmatprep.subr.bf16.mxu0 %v3385
        %3577 = vmatpush1.bf16.msra.mxu0 %v3384
        %3578 = vmatprep.subr.bf16.mxu0 %v3387
        %3579 = vmatpush1.bf16.msra.mxu0 %v3386
        %3580 = vmatprep.subr.bf16.mxu0 %v3389
        %3581 = vmatpush1.bf16.msra.mxu0 %v3388
        %3582 = vmatprep.subr.bf16.mxu0 %v3391
        %3583 = vmatpush1.bf16.msra.mxu0 %v3390
        %3584 = vmatprep.subr.bf16.mxu0 %v3393
        %3585 = vmatpush1.bf16.msra.mxu0 %v3392
        %3586 = vmatprep.subr.bf16.mxu0 %v3395
        %3587 = vmatpush1.bf16.msra.mxu0 %v3394
        %3588 = vmatprep.subr.bf16.mxu0 %v3397
        %3589 = vmatpush1.bf16.msra.mxu0 %v3396
        %3590 = vmatprep.subr.bf16.mxu0 %v3399
        %3591 = vmatpush1.bf16.msra.mxu0 %v3398
        %3592 = vmatprep.subr.bf16.mxu0 %v3401
        %3593 = vmatpush1.bf16.msra.mxu0 %v3400
        %3594 = vmatprep.subr.bf16.mxu0 %v3403
        %3595 = vmatpush1.bf16.msra.mxu0 %v3402
        %3596 = vmatprep.subr.bf16.mxu0 %v3405
        %3597 = vmatpush1.bf16.msra.mxu0 %v3404
        %3598 = vmatprep.subr.bf16.mxu0 %v3407
        %3599 = vmatpush1.bf16.msra.mxu0 %v3406
        %3600 = vmatprep.subr.bf16.mxu0 %v3409
        %3601 = vmatpush1.bf16.msra.mxu0 %v3408
        %3602 = vmatprep.subr.bf16.mxu0 %v3411
        %3603 = vmatpush1.bf16.msra.mxu0 %v3410
        %3604 = vmatprep.subr.bf16.mxu0 %v3413
        %3605 = vmatpush1.bf16.msra.mxu0 %v3412
        %3606 = vmatprep.subr.bf16.mxu0 %v3415
        %3607 = vmatpush1.bf16.msra.mxu0 %v3414
        %3608 = vmatprep.mubr.bf16.mxu0 %v3001
        %3609 = vmatmul.mubr.bf16.gmra.mrb[0].mxu0 %v3000
        %v3610 = vpop.f32.mrb[0].mxu0
        %v3611 = vadd.f32 0.0, %v3610
        %v3612 = vpop.f32.mrb[0].mxu0
        %v3613 = vadd.f32 0.0, %v3612
        %v3614 = vpop.f32.mrb[0].mxu0
        %v3615 = vadd.f32 0.0, %v3614
        %v3616 = vpop.f32.mrb[0].mxu0
        %v3617 = vadd.f32 0.0, %v3616
        %3618 = vmatprep.mubr.bf16.mxu0 %v3007
        %3619 = vmatmul.mubr.bf16.gmra.mrb[0].mxu0 %v3006
        %v3620 = vpop.f32.mrb[0].mxu0
        %v3621 = vadd.f32 0.0, %v3620
        %v3622 = vpop.f32.mrb[0].mxu0
        %v3623 = vadd.f32 0.0, %v3622
        %v3624 = vpop.f32.mrb[0].mxu0
        %v3625 = vadd.f32 0.0, %v3624
        %v3626 = vpop.f32.mrb[0].mxu0
        %v3627 = vadd.f32 0.0, %v3626
        %3628 = vmatprep.mubr.bf16.mxu0 %v3013
        %3629 = vmatmul.mubr.bf16.gmra.mrb[0].mxu0 %v3012
        %v3630 = vpop.f32.mrb[0].mxu0
        %v3631 = vadd.f32 0.0, %v3630
        %v3632 = vpop.f32.mrb[0].mxu0
        %v3633 = vadd.f32 0.0, %v3632
        %v3634 = vpop.f32.mrb[0].mxu0
        %v3635 = vadd.f32 0.0, %v3634
        %v3636 = vpop.f32.mrb[0].mxu0
        %v3637 = vadd.f32 0.0, %v3636
        %3638 = vmatprep.mubr.bf16.mxu0 %v3019
        %3639 = vmatmul.mubr.bf16.gmra.mrb[0].mxu0 %v3018
        %v3640 = vpop.f32.mrb[0].mxu0
        %v3641 = vadd.f32 0.0, %v3640
        %v3642 = vpop.f32.mrb[0].mxu0
        %v3643 = vadd.f32 0.0, %v3642
        %v3644 = vpop.f32.mrb[0].mxu0
        %v3645 = vadd.f32 0.0, %v3644
        %v3646 = vpop.f32.mrb[0].mxu0
        %v3647 = vadd.f32 0.0, %v3646
        %3648 = vmatprep.mubr.bf16.mxu0 %v3025
        %3649 = vmatmul.mubr.bf16.gmra.mrb[0].mxu0 %v3024
        %v3650 = vpop.f32.mrb[0].mxu0
        %v3651 = vadd.f32 0.0, %v3650
        %v3652 = vpop.f32.mrb[0].mxu0
        %v3653 = vadd.f32 0.0, %v3652
        %v3654 = vpop.f32.mrb[0].mxu0
        %v3655 = vadd.f32 0.0, %v3654
        %v3656 = vpop.f32.mrb[0].mxu0
        %v3657 = vadd.f32 0.0, %v3656
        %3658 = vmatprep.mubr.bf16.mxu0 %v3031
        %3659 = vmatmul.mubr.bf16.gmra.mrb[0].mxu0 %v3030
        %v3660 = vpop.f32.mrb[0].mxu0
        %v3661 = vadd.f32 0.0, %v3660
        %v3662 = vpop.f32.mrb[0].mxu0
        %v3663 = vadd.f32 0.0, %v3662
        %v3664 = vpop.f32.mrb[0].mxu0
        %v3665 = vadd.f32 0.0, %v3664
        %v3666 = vpop.f32.mrb[0].mxu0
        %v3667 = vadd.f32 0.0, %v3666
        %3668 = vmatprep.mubr.bf16.mxu0 %v3037
        %3669 = vmatmul.mubr.bf16.gmra.mrb[0].mxu0 %v3036
        %v3670 = vpop.f32.mrb[0].mxu0
        %v3671 = vadd.f32 0.0, %v3670
        %v3672 = vpop.f32.mrb[0].mxu0
        %v3673 = vadd.f32 0.0, %v3672
        %v3674 = vpop.f32.mrb[0].mxu0
        %v3675 = vadd.f32 0.0, %v3674
        %v3676 = vpop.f32.mrb[0].mxu0
        %v3677 = vadd.f32 0.0, %v3676
        %3678 = vmatprep.mubr.bf16.mxu0 %v3043
        %3679 = vmatmul.mubr.bf16.gmra.mrb[0].mxu0 %v3042
        %v3680 = vpop.f32.mrb[0].mxu0
        %v3681 = vadd.f32 0.0, %v3680
        %v3682 = vpop.f32.mrb[0].mxu0
        %v3683 = vadd.f32 0.0, %v3682
        %v3684 = vpop.f32.mrb[0].mxu0
        %v3685 = vadd.f32 0.0, %v3684
        %v3686 = vpop.f32.mrb[0].mxu0
        %v3687 = vadd.f32 0.0, %v3686
        %3688 = vdwg.mxu0
        %3689 = vmatprep.subr.bf16.mxu0 %v3417
        %3690 = vmatpush1.bf16.msra.mxu0 %v3416
        %3691 = vmatprep.subr.bf16.mxu0 %v3419
        %3692 = vmatpush1.bf16.msra.mxu0 %v3418
        %3693 = vmatprep.subr.bf16.mxu0 %v3421
        %3694 = vmatpush1.bf16.msra.mxu0 %v3420
        %3695 = vmatprep.subr.bf16.mxu0 %v3423
        %3696 = vmatpush1.bf16.msra.mxu0 %v3422
        %3697 = vmatprep.subr.bf16.mxu0 %v3425
        %3698 = vmatpush1.bf16.msra.mxu0 %v3424
        %3699 = vmatprep.subr.bf16.mxu0 %v3427
        %3700 = vmatpush1.bf16.msra.mxu0 %v3426
        %3701 = vmatprep.subr.bf16.mxu0 %v3429
        %3702 = vmatpush1.bf16.msra.mxu0 %v3428
        %3703 = vmatprep.subr.bf16.mxu0 %v3431
        %3704 = vmatpush1.bf16.msra.mxu0 %v3430
        %3705 = vmatprep.subr.bf16.mxu0 %v3433
        %3706 = vmatpush1.bf16.msra.mxu0 %v3432
        %3707 = vmatprep.subr.bf16.mxu0 %v3435
        %3708 = vmatpush1.bf16.msra.mxu0 %v3434
        %3709 = vmatprep.subr.bf16.mxu0 %v3437
        %3710 = vmatpush1.bf16.msra.mxu0 %v3436
        %3711 = vmatprep.subr.bf16.mxu0 %v3439
        %3712 = vmatpush1.bf16.msra.mxu0 %v3438
        %3713 = vmatprep.subr.bf16.mxu0 %v3441
        %3714 = vmatpush1.bf16.msra.mxu0 %v3440
        %3715 = vmatprep.subr.bf16.mxu0 %v3443
        %3716 = vmatpush1.bf16.msra.mxu0 %v3442
        %3717 = vmatprep.subr.bf16.mxu0 %v3445
        %3718 = vmatpush1.bf16.msra.mxu0 %v3444
        %3719 = vmatprep.subr.bf16.mxu0 %v3447
        %3720 = vmatpush1.bf16.msra.mxu0 %v3446
        %3721 = vmatprep.mubr.bf16.mxu0 %v3003
        %3722 = vmatmul.mubr.bf16.gmra.mrb[0].mxu0 %v3002
        %v3723 = vpop.f32.mrb[0].mxu0
        %v3724 = vadd.f32 %v3611, %v3723
        %v3725 = vpop.f32.mrb[0].mxu0
        %v3726 = vadd.f32 %v3613, %v3725
        %v3727 = vpop.f32.mrb[0].mxu0
        %v3728 = vadd.f32 %v3615, %v3727
        %v3729 = vpop.f32.mrb[0].mxu0
        %v3730 = vadd.f32 %v3617, %v3729
        %3731 = vmatprep.mubr.bf16.mxu0 %v3009
        %3732 = vmatmul.mubr.bf16.gmra.mrb[0].mxu0 %v3008
        %v3733 = vpop.f32.mrb[0].mxu0
        %v3734 = vadd.f32 %v3621, %v3733
        %v3735 = vpop.f32.mrb[0].mxu0
        %v3736 = vadd.f32 %v3623, %v3735
        %v3737 = vpop.f32.mrb[0].mxu0
        %v3738 = vadd.f32 %v3625, %v3737
        %v3739 = vpop.f32.mrb[0].mxu0
        %v3740 = vadd.f32 %v3627, %v3739
        %3741 = vmatprep.mubr.bf16.mxu0 %v3015
        %3742 = vmatmul.mubr.bf16.gmra.mrb[0].mxu0 %v3014
        %v3743 = vpop.f32.mrb[0].mxu0
        %v3744 = vadd.f32 %v3631, %v3743
        %v3745 = vpop.f32.mrb[0].mxu0
        %v3746 = vadd.f32 %v3633, %v3745
        %v3747 = vpop.f32.mrb[0].mxu0
        %v3748 = vadd.f32 %v3635, %v3747
        %v3749 = vpop.f32.mrb[0].mxu0
        %v3750 = vadd.f32 %v3637, %v3749
        %3751 = vmatprep.mubr.bf16.mxu0 %v3021
        %3752 = vmatmul.mubr.bf16.gmra.mrb[0].mxu0 %v3020
        %v3753 = vpop.f32.mrb[0].mxu0
        %v3754 = vadd.f32 %v3641, %v3753
        %v3755 = vpop.f32.mrb[0].mxu0
        %v3756 = vadd.f32 %v3643, %v3755
        %v3757 = vpop.f32.mrb[0].mxu0
        %v3758 = vadd.f32 %v3645, %v3757
        %v3759 = vpop.f32.mrb[0].mxu0
        %v3760 = vadd.f32 %v3647, %v3759
        %3761 = vmatprep.mubr.bf16.mxu0 %v3027
        %3762 = vmatmul.mubr.bf16.gmra.mrb[0].mxu0 %v3026
        %v3763 = vpop.f32.mrb[0].mxu0
        %v3764 = vadd.f32 %v3651, %v3763
        %v3765 = vpop.f32.mrb[0].mxu0
        %v3766 = vadd.f32 %v3653, %v3765
        %v3767 = vpop.f32.mrb[0].mxu0
        %v3768 = vadd.f32 %v3655, %v3767
        %v3769 = vpop.f32.mrb[0].mxu0
        %v3770 = vadd.f32 %v3657, %v3769
        %3771 = vmatprep.mubr.bf16.mxu0 %v3033
        %3772 = vmatmul.mubr.bf16.gmra.mrb[0].mxu0 %v3032
        %v3773 = vpop.f32.mrb[0].mxu0
        %v3774 = vadd.f32 %v3661, %v3773
        %v3775 = vpop.f32.mrb[0].mxu0
        %v3776 = vadd.f32 %v3663, %v3775
        %v3777 = vpop.f32.mrb[0].mxu0
        %v3778 = vadd.f32 %v3665, %v3777
        %v3779 = vpop.f32.mrb[0].mxu0
        %v3780 = vadd.f32 %v3667, %v3779
        %3781 = vmatprep.mubr.bf16.mxu0 %v3039
        %3782 = vmatmul.mubr.bf16.gmra.mrb[0].mxu0 %v3038
        %v3783 = vpop.f32.mrb[0].mxu0
        %v3784 = vadd.f32 %v3671, %v3783
        %v3785 = vpop.f32.mrb[0].mxu0
        %v3786 = vadd.f32 %v3673, %v3785
        %v3787 = vpop.f32.mrb[0].mxu0
        %v3788 = vadd.f32 %v3675, %v3787
        %v3789 = vpop.f32.mrb[0].mxu0
        %v3790 = vadd.f32 %v3677, %v3789
        %3791 = vmatprep.mubr.bf16.mxu0 %v3045
        %3792 = vmatmul.mubr.bf16.gmra.mrb[0].mxu0 %v3044
        %v3793 = vpop.f32.mrb[0].mxu0
        %v3794 = vadd.f32 %v3681, %v3793
        %v3795 = vpop.f32.mrb[0].mxu0
        %v3796 = vadd.f32 %v3683, %v3795
        %v3797 = vpop.f32.mrb[0].mxu0
        %v3798 = vadd.f32 %v3685, %v3797
        %v3799 = vpop.f32.mrb[0].mxu0
        %v3800 = vadd.f32 %v3687, %v3799
        %3801 = vdwg.mxu0
        %3802 = vmatprep.subr.bf16.mxu0 %v3449
        %3803 = vmatpush1.bf16.msra.mxu0 %v3448
        %3804 = vmatprep.subr.bf16.mxu0 %v3451
        %3805 = vmatpush1.bf16.msra.mxu0 %v3450
        %3806 = vmatprep.subr.bf16.mxu0 %v3453
        %3807 = vmatpush1.bf16.msra.mxu0 %v3452
        %3808 = vmatprep.subr.bf16.mxu0 %v3455
        %3809 = vmatpush1.bf16.msra.mxu0 %v3454
        %3810 = vmatprep.subr.bf16.mxu0 %v3457
        %3811 = vmatpush1.bf16.msra.mxu0 %v3456
        %3812 = vmatprep.subr.bf16.mxu0 %v3459
        %3813 = vmatpush1.bf16.msra.mxu0 %v3458
        %3814 = vmatprep.subr.bf16.mxu0 %v3461
        %3815 = vmatpush1.bf16.msra.mxu0 %v3460
        %3816 = vmatprep.subr.bf16.mxu0 %v3463
        %3817 = vmatpush1.bf16.msra.mxu0 %v3462
        %3818 = vmatprep.subr.bf16.mxu0 %v3465
        %3819 = vmatpush1.bf16.msra.mxu0 %v3464
        %3820 = vmatprep.subr.bf16.mxu0 %v3467
        %3821 = vmatpush1.bf16.msra.mxu0 %v3466
        %3822 = vmatprep.subr.bf16.mxu0 %v3469
        %3823 = vmatpush1.bf16.msra.mxu0 %v3468
        %3824 = vmatprep.subr.bf16.mxu0 %v3471
        %3825 = vmatpush1.bf16.msra.mxu0 %v3470
        %3826 = vmatprep.subr.bf16.mxu0 %v3473
        %3827 = vmatpush1.bf16.msra.mxu0 %v3472
        %3828 = vmatprep.subr.bf16.mxu0 %v3475
        %3829 = vmatpush1.bf16.msra.mxu0 %v3474
        %3830 = vmatprep.subr.bf16.mxu0 %v3477
        %3831 = vmatpush1.bf16.msra.mxu0 %v3476
        %3832 = vmatprep.subr.bf16.mxu0 %v3479
        %3833 = vmatpush1.bf16.msra.mxu0 %v3478
        %3834 = vmatprep.mubr.bf16.mxu0 %v3005
        %3835 = vmatmul.mubr.bf16.gmra.mrb[0].mxu0 %v3004
        %v3836 = vpop.f32.mrb[0].mxu0
        %v3837 = vadd.f32 %v3724, %v3836
        %v3838 = vpop.f32.mrb[0].mxu0
        %v3839 = vadd.f32 %v3726, %v3838
        %v3840 = vpop.f32.mrb[0].mxu0
        %v3841 = vadd.f32 %v3728, %v3840
        %v3842 = vpop.f32.mrb[0].mxu0
        %v3843 = vadd.f32 %v3730, %v3842
        %3844 = vmatprep.mubr.bf16.mxu0 %v3011
        %3845 = vmatmul.mubr.bf16.gmra.mrb[0].mxu0 %v3010
        %v3846 = vpop.f32.mrb[0].mxu0
        %v3847 = vadd.f32 %v3734, %v3846
        %v3848 = vpop.f32.mrb[0].mxu0
        %v3849 = vadd.f32 %v3736, %v3848
        %v3850 = vpop.f32.mrb[0].mxu0
        %v3851 = vadd.f32 %v3738, %v3850
        %v3852 = vpop.f32.mrb[0].mxu0
        %v3853 = vadd.f32 %v3740, %v3852
        %3854 = vmatprep.mubr.bf16.mxu0 %v3017
        %3855 = vmatmul.mubr.bf16.gmra.mrb[0].mxu0 %v3016
        %v3856 = vpop.f32.mrb[0].mxu0
        %v3857 = vadd.f32 %v3744, %v3856
        %v3858 = vpop.f32.mrb[0].mxu0
        %v3859 = vadd.f32 %v3746, %v3858
        %v3860 = vpop.f32.mrb[0].mxu0
        %v3861 = vadd.f32 %v3748, %v3860
        %v3862 = vpop.f32.mrb[0].mxu0
        %v3863 = vadd.f32 %v3750, %v3862
        %3864 = vmatprep.mubr.bf16.mxu0 %v3023
        %3865 = vmatmul.mubr.bf16.gmra.mrb[0].mxu0 %v3022
        %v3866 = vpop.f32.mrb[0].mxu0
        %v3867 = vadd.f32 %v3754, %v3866
        %v3868 = vpop.f32.mrb[0].mxu0
        %v3869 = vadd.f32 %v3756, %v3868
        %v3870 = vpop.f32.mrb[0].mxu0
        %v3871 = vadd.f32 %v3758, %v3870
        %v3872 = vpop.f32.mrb[0].mxu0
        %v3873 = vadd.f32 %v3760, %v3872
        %3874 = vmatprep.mubr.bf16.mxu0 %v3029
        %3875 = vmatmul.mubr.bf16.gmra.mrb[0].mxu0 %v3028
        %v3876 = vpop.f32.mrb[0].mxu0
        %v3877 = vadd.f32 %v3764, %v3876
        %v3878 = vpop.f32.mrb[0].mxu0
        %v3879 = vadd.f32 %v3766, %v3878
        %v3880 = vpop.f32.mrb[0].mxu0
        %v3881 = vadd.f32 %v3768, %v3880
        %v3882 = vpop.f32.mrb[0].mxu0
        %v3883 = vadd.f32 %v3770, %v3882
        %3884 = vmatprep.mubr.bf16.mxu0 %v3035
        %3885 = vmatmul.mubr.bf16.gmra.mrb[0].mxu0 %v3034
        %v3886 = vpop.f32.mrb[0].mxu0
        %v3887 = vadd.f32 %v3774, %v3886
        %v3888 = vpop.f32.mrb[0].mxu0
        %v3889 = vadd.f32 %v3776, %v3888
        %v3890 = vpop.f32.mrb[0].mxu0
        %v3891 = vadd.f32 %v3778, %v3890
        %v3892 = vpop.f32.mrb[0].mxu0
        %v3893 = vadd.f32 %v3780, %v3892
        %3894 = vmatprep.mubr.bf16.mxu0 %v3041
        %3895 = vmatmul.mubr.bf16.gmra.mrb[0].mxu0 %v3040
        %v3896 = vpop.f32.mrb[0].mxu0
        %v3897 = vadd.f32 %v3784, %v3896
        %v3898 = vpop.f32.mrb[0].mxu0
        %v3899 = vadd.f32 %v3786, %v3898
        %v3900 = vpop.f32.mrb[0].mxu0
        %v3901 = vadd.f32 %v3788, %v3900
        %v3902 = vpop.f32.mrb[0].mxu0
        %v3903 = vadd.f32 %v3790, %v3902
        %3904 = vmatprep.mubr.bf16.mxu0 %v3047
        %3905 = vmatmul.mubr.bf16.gmra.mrb[0].mxu0 %v3046
        %v3906 = vpop.f32.mrb[0].mxu0
        %v3907 = vadd.f32 %v3794, %v3906
        %v3908 = vpop.f32.mrb[0].mxu0
        %v3909 = vadd.f32 %v3796, %v3908
        %v3910 = vpop.f32.mrb[0].mxu0
        %v3911 = vadd.f32 %v3798, %v3910
        %v3912 = vpop.f32.mrb[0].mxu0
        %v3913 = vadd.f32 %v3800, %v3912
        %3914 = vdwg.mxu0
        %v3915 = vadd.f32 %v2632, %v3837
        %v3916 = vadd.f32 %v2634, %v3839
        %v3917 = vadd.f32 %v2636, %v3841
        %v3918 = vadd.f32 %v2638, %v3843
        %v3919 = vadd.f32 %v2642, %v3847
        %v3920 = vadd.f32 %v2644, %v3849
        %v3921 = vadd.f32 %v2646, %v3851
        %v3922 = vadd.f32 %v2648, %v3853
        %v3923 = vadd.f32 %v2652, %v3857
        %v3924 = vadd.f32 %v2654, %v3859
        %v3925 = vadd.f32 %v2656, %v3861
        %v3926 = vadd.f32 %v2658, %v3863
        %v3927 = vadd.f32 %v2662, %v3867
        %v3928 = vadd.f32 %v2664, %v3869
        %v3929 = vadd.f32 %v2666, %v3871
        %v3930 = vadd.f32 %v2668, %v3873
        %v3931 = vadd.f32 %v2672, %v3877
        %v3932 = vadd.f32 %v2674, %v3879
        %v3933 = vadd.f32 %v2676, %v3881
        %v3934 = vadd.f32 %v2678, %v3883
        %v3935 = vadd.f32 %v2682, %v3887
        %v3936 = vadd.f32 %v2684, %v3889
        %v3937 = vadd.f32 %v2686, %v3891
        %v3938 = vadd.f32 %v2688, %v3893
        %v3939 = vadd.f32 %v2692, %v3897
        %v3940 = vadd.f32 %v2694, %v3899
        %v3941 = vadd.f32 %v2696, %v3901
        %v3942 = vadd.f32 %v2698, %v3903
        %v3943 = vadd.f32 %v2702, %v3907
        %v3944 = vadd.f32 %v2704, %v3909
        %v3945 = vadd.f32 %v2706, %v3911
        %v3946 = vadd.f32 %v2708, %v3913
        %v3947 = vld [vmem:[%s2] sm:$0x3]
        %v3949 = vlaneseq
        %v3950 = vshrl.u32 %v3949, 7
        %v3951 = vsub.s32 0, %v3950
        %v3952 = vrot.slane %v3947, %v3951
        %v3953 = vlaneseq
        %v3954 = vshrl.u32 %v3953, 7
        %v3955 = vsub.s32 1, %v3954
        %v3956 = vrot.slane %v3947, %v3955
        %v3959 = vadd.f32 %v3915, %v3952
        %v3960 = vadd.f32 %v3916, %v3956
        %v3961 = vadd.f32 %v3917, %v3952
        %v3962 = vadd.f32 %v3918, %v3956
        %v3963 = vadd.f32 %v3919, %v3952
        %v3964 = vadd.f32 %v3920, %v3956
        %v3965 = vadd.f32 %v3921, %v3952
        %v3966 = vadd.f32 %v3922, %v3956
        %v3967 = vadd.f32 %v3923, %v3952
        %v3968 = vadd.f32 %v3924, %v3956
        %v3969 = vadd.f32 %v3925, %v3952
        %v3970 = vadd.f32 %v3926, %v3956
        %v3971 = vadd.f32 %v3927, %v3952
        %v3972 = vadd.f32 %v3928, %v3956
        %v3973 = vadd.f32 %v3929, %v3952
        %v3974 = vadd.f32 %v3930, %v3956
        %v3975 = vadd.f32 %v3931, %v3952
        %v3976 = vadd.f32 %v3932, %v3956
        %v3977 = vadd.f32 %v3933, %v3952
        %v3978 = vadd.f32 %v3934, %v3956
        %v3979 = vadd.f32 %v3935, %v3952
        %v3980 = vadd.f32 %v3936, %v3956
        %v3981 = vadd.f32 %v3937, %v3952
        %v3982 = vadd.f32 %v3938, %v3956
        %v3983 = vadd.f32 %v3939, %v3952
        %v3984 = vadd.f32 %v3940, %v3956
        %v3985 = vadd.f32 %v3941, %v3952
        %v3986 = vadd.f32 %v3942, %v3956
        %v3987 = vadd.f32 %v3943, %v3952
        %v3988 = vadd.f32 %v3944, %v3956
        %v3989 = vadd.f32 %v3945, %v3952
        %v3990 = vadd.f32 %v3946, %v3956
        %v3991 = vmax.f32 %v3959, 0.0
        %v3992 = vmax.f32 %v3960, 0.0
        %v3993 = vmax.f32 %v3961, 0.0
        %v3994 = vmax.f32 %v3962, 0.0
        %v3995 = vmax.f32 %v3963, 0.0
        %v3996 = vmax.f32 %v3964, 0.0
        %v3997 = vmax.f32 %v3965, 0.0
        %v3998 = vmax.f32 %v3966, 0.0
        %v3999 = vmax.f32 %v3967, 0.0
        %v4000 = vmax.f32 %v3968, 0.0
        %v4001 = vmax.f32 %v3969, 0.0
        %v4002 = vmax.f32 %v3970, 0.0
        %v4003 = vmax.f32 %v3971, 0.0
        %v4004 = vmax.f32 %v3972, 0.0
        %v4005 = vmax.f32 %v3973, 0.0
        %v4006 = vmax.f32 %v3974, 0.0
        %v4007 = vmax.f32 %v3975, 0.0
        %v4008 = vmax.f32 %v3976, 0.0
        %v4009 = vmax.f32 %v3977, 0.0
        %v4010 = vmax.f32 %v3978, 0.0
        %v4011 = vmax.f32 %v3979, 0.0
        %v4012 = vmax.f32 %v3980, 0.0
        %v4013 = vmax.f32 %v3981, 0.0
        %v4014 = vmax.f32 %v3982, 0.0
        %v4015 = vmax.f32 %v3983, 0.0
        %v4016 = vmax.f32 %v3984, 0.0
        %v4017 = vmax.f32 %v3985, 0.0
        %v4018 = vmax.f32 %v3986, 0.0
        %v4019 = vmax.f32 %v3987, 0.0
        %v4020 = vmax.f32 %v3988, 0.0
        %v4021 = vmax.f32 %v3989, 0.0
        %v4022 = vmax.f32 %v3990, 0.0
        %4023 = vst [vmem:[%s272] sm:$0xff] %v3991
        %4024 = vst [vmem:[%s272 + $0x8] sm:$0xff] %v3992
        %4025 = vst [vmem:[%s272 + $0x10] sm:$0xff] %v3993
        %4026 = vst [vmem:[%s272 + $0x18] sm:$0xff] %v3994
        %4027 = vst [vmem:[%s272 + $0x20] sm:$0xff] %v3995
        %4028 = vst [vmem:[%s272 + $0x28] sm:$0xff] %v3996
        %4029 = vst [vmem:[%s272 + $0x30] sm:$0xff] %v3997
        %4030 = vst [vmem:[%s272 + $0x38] sm:$0xff] %v3998
        %4031 = vst [vmem:[%s272 + $0x40] sm:$0xff] %v3999
        %4032 = vst [vmem:[%s272 + $0x48] sm:$0xff] %v4000
        %4033 = vst [vmem:[%s272 + $0x50] sm:$0xff] %v4001
        %4034 = vst [vmem:[%s272 + $0x58] sm:$0xff] %v4002
        %4035 = vst [vmem:[%s272 + $0x60] sm:$0xff] %v4003
        %4036 = vst [vmem:[%s272 + $0x68] sm:$0xff] %v4004
        %4037 = vst [vmem:[%s272 + $0x70] sm:$0xff] %v4005
        %4038 = vst [vmem:[%s272 + $0x78] sm:$0xff] %v4006
        %4039 = vst [vmem:[%s272 + $0x80] sm:$0xff] %v4007
        %4040 = vst [vmem:[%s272 + $0x88] sm:$0xff] %v4008
        %4041 = vst [vmem:[%s272 + $0x90] sm:$0xff] %v4009
        %4042 = vst [vmem:[%s272 + $0x98] sm:$0xff] %v4010
        %4043 = vst [vmem:[%s272 + $0xa0] sm:$0xff] %v4011
        %4044 = vst [vmem:[%s272 + $0xa8] sm:$0xff] %v4012
        %4045 = vst [vmem:[%s272 + $0xb0] sm:$0xff] %v4013
        %4046 = vst [vmem:[%s272 + $0xb8] sm:$0xff] %v4014
        %4047 = vst [vmem:[%s272 + $0xc0] sm:$0xff] %v4015
        %4048 = vst [vmem:[%s272 + $0xc8] sm:$0xff] %v4016
        %4049 = vst [vmem:[%s272 + $0xd0] sm:$0xff] %v4017
        %4050 = vst [vmem:[%s272 + $0xd8] sm:$0xff] %v4018
        %4051 = vst [vmem:[%s272 + $0xe0] sm:$0xff] %v4019
        %4052 = vst [vmem:[%s272 + $0xe8] sm:$0xff] %v4020
        %4053 = vst [vmem:[%s272 + $0xf0] sm:$0xff] %v4021
        %4054 = vst [vmem:[%s272 + $0xf8] sm:$0xff] %v4022
        %v4055 = vld [vmem:[%s272] sm:$0xff]
        %v4056 = vld [vmem:[%s272 + $0x8] sm:$0xff]
        %v4057 = vld [vmem:[%s272 + $0x10] sm:$0xff]
        %v4058 = vld [vmem:[%s272 + $0x18] sm:$0xff]
        %v4059 = vld [vmem:[%s272 + $0x20] sm:$0xff]
        %v4060 = vld [vmem:[%s272 + $0x28] sm:$0xff]
        %v4061 = vld [vmem:[%s272 + $0x30] sm:$0xff]
        %v4062 = vld [vmem:[%s272 + $0x38] sm:$0xff]
        %v4063 = vld [vmem:[%s272 + $0x40] sm:$0xff]
        %v4064 = vld [vmem:[%s272 + $0x48] sm:$0xff]
        %v4065 = vld [vmem:[%s272 + $0x50] sm:$0xff]
        %v4066 = vld [vmem:[%s272 + $0x58] sm:$0xff]
        %v4067 = vld [vmem:[%s272 + $0x60] sm:$0xff]
        %v4068 = vld [vmem:[%s272 + $0x68] sm:$0xff]
        %v4069 = vld [vmem:[%s272 + $0x70] sm:$0xff]
        %v4070 = vld [vmem:[%s272 + $0x78] sm:$0xff]
        %v4071 = vld [vmem:[%s272 + $0x80] sm:$0xff]
        %v4072 = vld [vmem:[%s272 + $0x88] sm:$0xff]
        %v4073 = vld [vmem:[%s272 + $0x90] sm:$0xff]
        %v4074 = vld [vmem:[%s272 + $0x98] sm:$0xff]
        %v4075 = vld [vmem:[%s272 + $0xa0] sm:$0xff]
        %v4076 = vld [vmem:[%s272 + $0xa8] sm:$0xff]
        %v4077 = vld [vmem:[%s272 + $0xb0] sm:$0xff]
        %v4078 = vld [vmem:[%s272 + $0xb8] sm:$0xff]
        %v4079 = vld [vmem:[%s272 + $0xc0] sm:$0xff]
        %v4080 = vld [vmem:[%s272 + $0xc8] sm:$0xff]
        %v4081 = vld [vmem:[%s272 + $0xd0] sm:$0xff]
        %v4082 = vld [vmem:[%s272 + $0xd8] sm:$0xff]
        %v4083 = vld [vmem:[%s272 + $0xe0] sm:$0xff]
        %v4084 = vld [vmem:[%s272 + $0xe8] sm:$0xff]
        %v4085 = vld [vmem:[%s272 + $0xf0] sm:$0xff]
        %v4086 = vld [vmem:[%s272 + $0xf8] sm:$0xff]
        %v4087 = vld [vmem:[%s3] sm:$0x3]
        %v4089 = vlaneseq
        %v4090 = vshrl.u32 %v4089, 7
        %v4091 = vsub.s32 0, %v4090
        %v4092 = vrot.slane %v4087, %v4091
        %v4093 = vlaneseq
        %v4094 = vshrl.u32 %v4093, 7
        %v4095 = vsub.s32 1, %v4094
        %v4096 = vrot.slane %v4087, %v4095
        %v4099 = vmul.f32 %v4055, %v4092
        %v4100 = vmul.f32 %v4056, %v4096
        %v4101 = vmul.f32 %v4057, %v4092
        %v4102 = vmul.f32 %v4058, %v4096
        %v4103 = vmul.f32 %v4059, %v4092
        %v4104 = vmul.f32 %v4060, %v4096
        %v4105 = vmul.f32 %v4061, %v4092
        %v4106 = vmul.f32 %v4062, %v4096
        %v4107 = vmul.f32 %v4063, %v4092
        %v4108 = vmul.f32 %v4064, %v4096
        %v4109 = vmul.f32 %v4065, %v4092
        %v4110 = vmul.f32 %v4066, %v4096
        %v4111 = vmul.f32 %v4067, %v4092
        %v4112 = vmul.f32 %v4068, %v4096
        %v4113 = vmul.f32 %v4069, %v4092
        %v4114 = vmul.f32 %v4070, %v4096
        %v4115 = vmul.f32 %v4071, %v4092
        %v4116 = vmul.f32 %v4072, %v4096
        %v4117 = vmul.f32 %v4073, %v4092
        %v4118 = vmul.f32 %v4074, %v4096
        %v4119 = vmul.f32 %v4075, %v4092
        %v4120 = vmul.f32 %v4076, %v4096
        %v4121 = vmul.f32 %v4077, %v4092
        %v4122 = vmul.f32 %v4078, %v4096
        %v4123 = vmul.f32 %v4079, %v4092
        %v4124 = vmul.f32 %v4080, %v4096
        %v4125 = vmul.f32 %v4081, %v4092
        %v4126 = vmul.f32 %v4082, %v4096
        %v4127 = vmul.f32 %v4083, %v4092
        %v4128 = vmul.f32 %v4084, %v4096
        %v4129 = vmul.f32 %v4085, %v4092
        %v4130 = vmul.f32 %v4086, %v4096
        %v4131 = vadd.f32 %v4099, %v4100
        %4132 = vadd.xlane.f32.xlu0 %v4131
        %v4133 = vpop.xlane.xlu0 %4132
        %v4134 = vadd.f32 %v4101, %v4102
        %4135 = vadd.xlane.f32.xlu0 %v4134
        %v4136 = vpop.xlane.xlu0 %4135
        %v4137 = vadd.f32 %v4103, %v4104
        %4138 = vadd.xlane.f32.xlu0 %v4137
        %v4139 = vpop.xlane.xlu0 %4138
        %v4140 = vadd.f32 %v4105, %v4106
        %4141 = vadd.xlane.f32.xlu0 %v4140
        %v4142 = vpop.xlane.xlu0 %4141
        %v4143 = vadd.f32 %v4107, %v4108
        %4144 = vadd.xlane.f32.xlu0 %v4143
        %v4145 = vpop.xlane.xlu0 %4144
        %v4146 = vadd.f32 %v4109, %v4110
        %4147 = vadd.xlane.f32.xlu0 %v4146
        %v4148 = vpop.xlane.xlu0 %4147
        %v4149 = vadd.f32 %v4111, %v4112
        %4150 = vadd.xlane.f32.xlu0 %v4149
        %v4151 = vpop.xlane.xlu0 %4150
        %v4152 = vadd.f32 %v4113, %v4114
        %4153 = vadd.xlane.f32.xlu0 %v4152
        %v4154 = vpop.xlane.xlu0 %4153
        %v4155 = vadd.f32 %v4115, %v4116
        %4156 = vadd.xlane.f32.xlu0 %v4155
        %v4157 = vpop.xlane.xlu0 %4156
        %v4158 = vadd.f32 %v4117, %v4118
        %4159 = vadd.xlane.f32.xlu0 %v4158
        %v4160 = vpop.xlane.xlu0 %4159
        %v4161 = vadd.f32 %v4119, %v4120
        %4162 = vadd.xlane.f32.xlu0 %v4161
        %v4163 = vpop.xlane.xlu0 %4162
        %v4164 = vadd.f32 %v4121, %v4122
        %4165 = vadd.xlane.f32.xlu0 %v4164
        %v4166 = vpop.xlane.xlu0 %4165
        %v4167 = vadd.f32 %v4123, %v4124
        %4168 = vadd.xlane.f32.xlu0 %v4167
        %v4169 = vpop.xlane.xlu0 %4168
        %v4170 = vadd.f32 %v4125, %v4126
        %4171 = vadd.xlane.f32.xlu0 %v4170
        %v4172 = vpop.xlane.xlu0 %4171
        %v4173 = vadd.f32 %v4127, %v4128
        %4174 = vadd.xlane.f32.xlu0 %v4173
        %v4175 = vpop.xlane.xlu0 %4174
        %v4176 = vadd.f32 %v4129, %v4130
        %4177 = vadd.xlane.f32.xlu0 %v4176
        %v4178 = vpop.xlane.xlu0 %4177
        %s4179 = sld [smem:[#allocation2]]
        %v4180 = vstv %s4179
        %v4181 = vadd.f32 %v4133, %v4180
        %v4182 = vadd.f32 %v4136, %v4180
        %v4183 = vadd.f32 %v4139, %v4180
        %v4184 = vadd.f32 %v4142, %v4180
        %v4185 = vadd.f32 %v4145, %v4180
        %v4186 = vadd.f32 %v4148, %v4180
        %v4187 = vadd.f32 %v4151, %v4180
        %v4188 = vadd.f32 %v4154, %v4180
        %v4189 = vadd.f32 %v4157, %v4180
        %v4190 = vadd.f32 %v4160, %v4180
        %v4191 = vadd.f32 %v4163, %v4180
        %v4192 = vadd.f32 %v4166, %v4180
        %v4193 = vadd.f32 %v4169, %v4180
        %v4194 = vadd.f32 %v4172, %v4180
        %v4195 = vadd.f32 %v4175, %v4180
        %v4196 = vadd.f32 %v4178, %v4180
        %vm4197 = vcmask 7168
        %4198 = vst.msk [vmem:[%s301] sm:$0xff] %vm4197, %v4181
        %4199 = vst.msk [vmem:[%s301 + $0x8] sm:$0xff] %vm4197, %v4182
        %4200 = vst.msk [vmem:[%s301 + $0x10] sm:$0xff] %vm4197, %v4183
        %4201 = vst.msk [vmem:[%s301 + $0x18] sm:$0xff] %vm4197, %v4184
        %4202 = vst.msk [vmem:[%s301 + $0x20] sm:$0xff] %vm4197, %v4185
        %4203 = vst.msk [vmem:[%s301 + $0x28] sm:$0xff] %vm4197, %v4186
        %4204 = vst.msk [vmem:[%s301 + $0x30] sm:$0xff] %vm4197, %v4187
        %4205 = vst.msk [vmem:[%s301 + $0x38] sm:$0xff] %vm4197, %v4188
        %4206 = vst.msk [vmem:[%s301 + $0x40] sm:$0xff] %vm4197, %v4189
        %4207 = vst.msk [vmem:[%s301 + $0x48] sm:$0xff] %vm4197, %v4190
        %4208 = vst.msk [vmem:[%s301 + $0x50] sm:$0xff] %vm4197, %v4191
        %4209 = vst.msk [vmem:[%s301 + $0x58] sm:$0xff] %vm4197, %v4192
        %4210 = vst.msk [vmem:[%s301 + $0x60] sm:$0xff] %vm4197, %v4193
        %4211 = vst.msk [vmem:[%s301 + $0x68] sm:$0xff] %vm4197, %v4194
        %4212 = vst.msk [vmem:[%s301 + $0x70] sm:$0xff] %vm4197, %v4195
        %4213 = vst.msk [vmem:[%s301 + $0x78] sm:$0xff] %vm4197, %v4196
        %s4214 = sand.u32 %s156, 1
        %s4215 = scalar_lea.sflag [#allocation4], %s4214
        %s4216 = sand.u32 %s156, 1
        %s4217 = smul.addr %s4216, 256
        %s4218 = scalar_lea.vmem [#allocation3], %s4217
        %p4219 = scmp.lt.s32.totalorder %s26, 1
        %s4220 = scalar_select %p4219, %s26, 1
        %p4221 = scmp.lt.s32.totalorder %s27, 1
        %s4222 = scalar_select %p4221, %s27, 1
        %s4223 = smul.addr %s4222, 16
        %s4224 = smul.addr %s4220, 32
        %s4225 = sadd.s32 %s4223, %s4224
        %s4226 = smul.addr %s4225, 8
        %s4227 = scalar_lea.vmem %s6, %s4226
        // Predicated region
        $region41: #{pred_layer_forward.1} parent=39 // pred_check
          %p4228 = pneg %p166
        $region42: #{pred_layer_forward.1} parent=39 // pred_check_branch
          %4230 = sbr.rel (%p4228) target = $region44
        $region43: #{pred_layer_forward.1} parent=39 // pred_region
          %s4232 = ssub.s32 4096, 4096
          %4233 = vsyncadd %s4215, %s4232
          %s4234 = smul.addr %s27, 32
          %s4235 = smul.addr %s26, 64
          %s4236 = sadd.s32 %s4234, %s4235
          %s4237 = smul.addr %s4236, 128
          %s4238 = scalar_lea.hbm %s5, %s4237
          %s4239 = sshll.u32 %s4218, 4
          %s4240 = int_to_ptr.vmem [resolvable:$true] %s4239
          %4245 = dma.vmem_to_hbm [thread:$0]  %s4240, 4096, %s4238, %s4215, 256, 256, 16
        $region44: #{pred_layer_forward.1} parent=39 // pred_fallthru
          _
        // Predicated region
        $region45: #{pred_layer_forward.1} parent=39 // pred_check
          %p4246 = pneg %p194
        $region46: #{pred_layer_forward.1} parent=39 // pred_check_branch
          %4248 = sbr.rel (%p4246) target = $region48
        $region47: #{pred_layer_forward.1} parent=39 // pred_region
          _
        $region48: #{pred_layer_forward.1} parent=39 // pred_fallthru
          _
      $region40: #{pred_layer_forward.1} parent=5 // pred_fallthru
        _
      %p4249 = scmp.le.s32.totalorder 2, %s17
      // Predicated region
      $region49: #{pred_layer_forward.1} parent=5 // pred_check
        %p4250 = pneg %p4249
      $region50: #{pred_layer_forward.1} parent=5 // pred_check_branch
        %4252 = sbr.rel (%p4250) target = $region52
      $region51: #{pred_layer_forward.1} parent=5 // pred_region
        %s4253 = ssub.s32 %s17, 2
        // Predicated region
        $region53: #{pred_layer_forward.1} parent=51 // pred_check
          %p4254 = pneg %p172
        $region54: #{pred_layer_forward.1} parent=51 // pred_check_branch
          %4256 = sbr.rel (%p4254) target = $region56
        $region55: #{pred_layer_forward.1} parent=51 // pred_region
          %s4257 = sand.u32 %s157, 1
          %s4258 = scalar_lea.sflag [#allocation4], %s4257
          %s4259 = sand.u32 %s157, 1
          %s4260 = smul.addr %s4259, 256
          %s4261 = scalar_lea.vmem [#allocation3], %s4260
          %4262 = dma.done %s4258, 4096
        $region56: #{pred_layer_forward.1} parent=51 // pred_fallthru
          _
        // Predicated region
        $region57: #{pred_layer_forward.1} parent=51 // pred_check
          %p4263 = pneg %p200
        $region58: #{pred_layer_forward.1} parent=51 // pred_check_branch
          %4265 = sbr.rel (%p4263) target = $region60
        $region59: #{pred_layer_forward.1} parent=51 // pred_region
          %p4266 = scmp.lt.s32.totalorder %s28, 1
          %s4267 = scalar_select %p4266, %s28, 1
          %p4268 = scmp.lt.s32.totalorder %s29, 1
          %s4269 = scalar_select %p4268, %s29, 1
          %s4270 = smul.addr %s4269, 16
          %s4271 = smul.addr %s4267, 32
          %s4272 = sadd.s32 %s4270, %s4271
          %s4273 = smul.addr %s4272, 8
          %s4274 = scalar_lea.vmem %s6, %s4273
        $region60: #{pred_layer_forward.1} parent=51 // pred_fallthru
          _
      $region52: #{pred_layer_forward.1} parent=5 // pred_fallthru
        _
    $region6: #{pred_layer_forward.1} parent=1 // loop_footer
      %s21 = sadd.s32 1, %s17
    $region7: #{pred_layer_forward.1} parent=1 // loop_footer_branch
      %16 = sbr.rel target = $region3
    $region8: #{pred_layer_forward.1} parent=1 // loop_exit
      _
    %4275 = vsyncpa [#allocation4], 1
    %s4276 = scalar_lea.sflag [#allocation4], 1
    %4277 = vsyncpa %s4276, 1

</llo_original>
